<compile_context>
chip_gen: v5e
topology: v5e:2x2
jax: 0.10.0
libtpu: 0.0.40
codegen_flags: <defaults>
</compile_context>

<pallas_src>
import jax
import jax.numpy as jnp
from jax.experimental import pallas as pl
from jax.experimental.pallas import tpu as pltpu

NEG_SLOPE = 0.01          # torch.nn.LeakyReLU default negative_slope
BN_EPS = 1e-5             # torch.nn.BatchNorm2d default eps
MATMUL_DTYPE = jnp.float32  # set jnp.bfloat16 on v6e/v7x for ~2x MXU throughput
_VMEM_LIMIT = 32 * 1024 * 1024  # safe on v5e/v6e/v7x; tiles below stay well under it

KSIZES = (1, 3, 1, 3, 1)


def _round_up(x, m):
    return (x + m - 1) // m * m


# ---------------------------------------------------------------------------
# Kernel 1: tiled 1x1-conv matmul with fused BN-statistics epilogue
# ---------------------------------------------------------------------------
def _mm_stats_kernel(a_ref, w_ref, y_ref, st_ref, acc_ref):
    ki = pl.program_id(2)

    @pl.when(ki == 0)
    def _init():
        acc_ref[...] = jnp.zeros_like(acc_ref)

    acc_ref[...] += jnp.dot(a_ref[...], w_ref[...],
                            preferred_element_type=jnp.float32)

    @pl.when(ki == pl.num_programs(2) - 1)
    def _finalize():
        acc = acc_ref[...]
        y_ref[...] = acc
        s = jnp.sum(acc, axis=0, keepdims=True)          # (1, tn)
        ss = jnp.sum(acc * acc, axis=0, keepdims=True)   # (1, tn)
        st_ref[0] = jnp.concatenate([s, ss], axis=0)     # (2, tn) partial sums


def conv1x1_matmul_stats(a, w_mat, *, tm=512, tn=256, tk=512):
    """a: (M, K), w_mat: (K, Cout) -> y (M, Cout) f32, stats (2, Cout) f32.

    stats[0] = per-channel column sums of y, stats[1] = column sums of y*y
    (partial per-M-tile sums produced in the kernel epilogue; tiny reduce here).
    """
    M, K = a.shape
    Cout = w_mat.shape[1]
    tm, tn, tk = min(tm, M), min(tn, Cout), min(tk, K)
    Mp, Kp, Np = _round_up(M, tm), _round_up(K, tk), _round_up(Cout, tn)
    if (Mp, Kp) != (M, K):
        a = jnp.pad(a, ((0, Mp - M), (0, Kp - K)))   # zero rows/cols: no effect on stats
    if (Kp, Np) != (K, Cout):
        w_mat = jnp.pad(w_mat, ((0, Kp - K), (0, Np - Cout)))
    a = a.astype(MATMUL_DTYPE)
    w_mat = w_mat.astype(MATMUL_DTYPE)
    gm, gn, gk = Mp // tm, Np // tn, Kp // tk

    y, st = pl.pallas_call(
        _mm_stats_kernel,
        grid=(gm, gn, gk),
        in_specs=[
            pl.BlockSpec((tm, tk), lambda i, j, k: (i, k)),
            pl.BlockSpec((tk, tn), lambda i, j, k: (k, j)),
        ],
        out_specs=(
            pl.BlockSpec((tm, tn), lambda i, j, k: (i, j)),
            pl.BlockSpec((1, 2, tn), lambda i, j, k: (i, 0, j)),
        ),
        out_shape=(
            jax.ShapeDtypeStruct((Mp, Np), jnp.float32),
            jax.ShapeDtypeStruct((gm, 2, Np), jnp.float32),
        ),
        scratch_shapes=[pltpu.VMEM((tm, tn), jnp.float32)],
        compiler_params=pltpu.CompilerParams(
            dimension_semantics=("parallel", "parallel", "arbitrary"),
            vmem_limit_bytes=_VMEM_LIMIT),
        cost_estimate=pl.CostEstimate(
            flops=2 * Mp * Kp * Np, transcendentals=0,
            bytes_accessed=4 * (Mp * Kp + Kp * Np + Mp * Np)),
    )(a, w_mat)

    stats = jnp.sum(st, axis=0)                      # (2, Np)
    return y[:M, :Cout], stats[:, :Cout]


# ---------------------------------------------------------------------------
# Kernel 2: 3x3 conv (pad 1, stride 1) without HBM im2col, fused BN statistics
# ---------------------------------------------------------------------------
def _conv3x3_stats_kernel(x0_ref, x1_ref, x2_ref, w_ref, y_ref, st_ref):
    # x*_ref: (1, 1, W+2, Cin) rows h+0 / h+1 / h+2 of the zero-padded input
    # w_ref : (3, 3, Cin, Cout)
    W = y_ref.shape[2]
    cout = y_ref.shape[3]
    acc = jnp.zeros((W, cout), jnp.float32)
    for kh, xr in enumerate((x0_ref, x1_ref, x2_ref)):
        row = xr[0, 0]                                   # (W+2, Cin)
        for kw in range(3):
            a = row[kw:kw + W, :]                        # static shifted (W, Cin) window
            acc += jnp.dot(a, w_ref[kh, kw],
                           preferred_element_type=jnp.float32)
    y_ref[0, 0] = acc
    s = jnp.sum(acc, axis=0, keepdims=True)              # (1, Cout)
    ss = jnp.sum(acc * acc, axis=0, keepdims=True)       # (1, Cout)
    st_ref[0, 0] = jnp.concatenate([s, ss], axis=0)      # (2, Cout) partial sums


def _shifted_row_spec(kh, W, Cin):
    return pl.BlockSpec((1, 1, W + 2, Cin), lambda n, h: (n, h + kh, 0, 0))


def conv3x3_matmul_stats(x_nhwc, w):
    """x: (N,H,W,Cin), w: (Cout,Cin,3,3) -> y (N*H*W, Cout) f32, stats (2, Cout)."""
    N, H, W, Cin = x_nhwc.shape
    Cout = w.shape[0]
    xp = jnp.pad(x_nhwc, ((0, 0), (1, 1), (1, 1), (0, 0))).astype(MATMUL_DTYPE)
    w_t = jnp.transpose(w, (2, 3, 1, 0)).astype(MATMUL_DTYPE)   # (kh, kw, Cin, Cout)

    y, st = pl.pallas_call(
        _conv3x3_stats_kernel,
        grid=(N, H),
        in_specs=[
            _shifted_row_spec(0, W, Cin),
            _shifted_row_spec(1, W, Cin),
            _shifted_row_spec(2, W, Cin),
            pl.BlockSpec((3, 3, Cin, Cout), lambda n, h: (0, 0, 0, 0)),
        ],
        out_specs=(
            pl.BlockSpec((1, 1, W, Cout), lambda n, h: (n, h, 0, 0)),
            pl.BlockSpec((1, 1, 2, Cout), lambda n, h: (n, h, 0, 0)),
        ),
        out_shape=(
            jax.ShapeDtypeStruct((N, H, W, Cout), jnp.float32),
            jax.ShapeDtypeStruct((N, H, 2, Cout), jnp.float32),
        ),
        compiler_params=pltpu.CompilerParams(
            dimension_semantics=("parallel", "parallel"),
            vmem_limit_bytes=_VMEM_LIMIT),
        cost_estimate=pl.CostEstimate(
            flops=2 * N * H * W * 9 * Cin * Cout, transcendentals=0,
            bytes_accessed=4 * (3 * N * (H + 2) * (W + 2) * Cin
                                + 9 * Cin * Cout
                                + N * H * W * (Cout + 2))),
    )(xp, xp, xp, w_t)

    stats = jnp.sum(st, axis=(0, 1))                     # (2, Cout)
    return y.reshape(N * H * W, Cout), stats


# ---------------------------------------------------------------------------
# Kernel 3: fused BatchNorm-apply (folded affine) + LeakyReLU, tiled over rows
# ---------------------------------------------------------------------------
def _bn_lrelu_kernel(y_ref, ss_ref, o_ref):
    t = y_ref[...] * ss_ref[0:1, :] + ss_ref[1:2, :]
    o_ref[...] = jnp.where(t >= 0.0, t, NEG_SLOPE * t)


def bn_lrelu(y, scale, shift, *, tm=512):
    """y: (M, C) f32, scale/shift: (C,) -> leaky_relu(y*scale + shift)."""
    M, C = y.shape
    tm = min(tm, M)
    Mp = _round_up(M, tm)
    if Mp != M:
        y = jnp.pad(y, ((0, Mp - M), (0, 0)))
    ss = jnp.stack([scale, shift], axis=0)               # (2, C), fetched once
    z = pl.pallas_call(
        _bn_lrelu_kernel,
        grid=(Mp // tm,),
        in_specs=[
            pl.BlockSpec((tm, C), lambda i: (i, 0)),
            pl.BlockSpec((2, C), lambda i: (0, 0)),
        ],
        out_specs=pl.BlockSpec((tm, C), lambda i: (i, 0)),
        out_shape=jax.ShapeDtypeStruct((Mp, C), jnp.float32),
        compiler_params=pltpu.CompilerParams(
            dimension_semantics=("parallel",),
            vmem_limit_bytes=_VMEM_LIMIT),
        cost_estimate=pl.CostEstimate(
            flops=3 * Mp * C, transcendentals=0,
            bytes_accessed=4 * 2 * Mp * C),
    )(y, ss)
    return z[:M]


# ---------------------------------------------------------------------------
# Layer / stack composition
# ---------------------------------------------------------------------------
def conv_bn_lrelu(x_nhwc, w, b, gamma, beta, ksize):
    """One ConvlotionLayer: Conv2d(k, s1, p=k//2) + BatchNorm2d(train) + LeakyReLU."""
    # Conv bias is mathematically cancelled by the training-mode BN mean
    # subtraction (shift = beta - mean*scale), so it is dropped from the hot path.
    del b
    N, H, W, _ = x_nhwc.shape
    Cout = w.shape[0]

    if ksize == 1:
        a = x_nhwc.reshape(N * H * W, x_nhwc.shape[-1])
        w_mat = w.reshape(Cout, -1).T                    # (Cin, Cout)
        y, stats = conv1x1_matmul_stats(a, w_mat)
    else:
        y, stats = conv3x3_matmul_stats(x_nhwc, w)

    # BatchNorm2d training-mode statistics (biased variance) from fused sums.
    count = float(N * H * W)
    mean = stats[0] / count
    var = jnp.maximum(stats[1] / count - mean * mean, 0.0)
    scale = gamma * jax.lax.rsqrt(var + BN_EPS)
    shift = beta - mean * scale

    z = bn_lrelu(y, scale, shift)
    return z.reshape(N, H, W, Cout)


@jax.jit
def convolution_set(x_nchw, params):
    """params: list of 5 tuples (conv_w (Cout,Cin,k,k), conv_b, bn_gamma, bn_beta)."""
    x = jnp.transpose(x_nchw, (0, 2, 3, 1))              # NCHW -> NHWC
    for (w, b, g, bt), k in zip(params, KSIZES):
        x = conv_bn_lrelu(x, w, b, g, bt, k)
    return jnp.transpose(x, (0, 3, 1, 2))                # NHWC -> NCHW


# ---------------------------------------------------------------------------
# Deterministic parameter construction (shapes per the module's __init__)
# ---------------------------------------------------------------------------
def make_params(key, in_channels, out_channels):
    chans = [
        (in_channels, out_channels, 1),
        (out_channels, in_channels, 3),
        (in_channels, out_channels, 1),
        (out_channels, in_channels, 3),
        (in_channels, out_channels, 1),
    ]
    params = []
    for cin, cout, k in chans:
        key, kw, kb = jax.random.split(key, 3)
        fan_in = cin * k * k
        bound = 1.0 / jnp.sqrt(fan_in)
        w = jax.random.uniform(kw, (cout, cin, k, k), jnp.float32, -bound, bound)
        b = jax.random.uniform(kb, (cout,), jnp.float32, -bound, bound)
        gamma = jnp.ones((cout,), jnp.float32)   # BatchNorm2d default weight
        beta = jnp.zeros((cout,), jnp.float32)   # BatchNorm2d default bias
        params.append((w, b, gamma, beta))
    return params


# Pure-JAX reference (f32 everywhere) used only for a self-check in __main__.
def _reference_forward(x_nchw, params):
    x = x_nchw
    for (w, b, gamma, beta), k in zip(params, KSIZES):
        y = jax.lax.conv_general_dilated(
            x, w, window_strides=(1, 1), padding=[(k // 2, k // 2)] * 2,
            dimension_numbers=("NCHW", "OIHW", "NCHW"),
            precision=jax.lax.Precision.HIGHEST)
        y = y + b[None, :, None, None]
        mean = jnp.mean(y, axis=(0, 2, 3), keepdims=True)
        var = jnp.mean((y - mean) ** 2, axis=(0, 2, 3), keepdims=True)
        y = (y - mean) * jax.lax.rsqrt(var + BN_EPS)
        y = y * gamma[None, :, None, None] + beta[None, :, None, None]
        x = jnp.where(y >= 0, y, NEG_SLOPE * y)
    return x


if __name__ == "__main__":
    in_channels, out_channels = 4, 8
    N, H, W = 2, 16, 16

    key = jax.random.PRNGKey(0)
    key, kx = jax.random.split(key)
    x = jax.random.normal(kx, (N, in_channels, H, W), jnp.float32)

    params = make_params(key, in_channels, out_channels)

    out = convolution_set(x, params)
    out = jax.block_until_ready(out)

    assert out.shape == (N, out_channels, H, W), out.shape
    assert out.dtype == jnp.float32
    assert bool(jnp.all(jnp.isfinite(out)))

    ref = _reference_forward(x, params)
    max_err = float(jnp.max(jnp.abs(out - ref)))
    assert max_err < 1e-2, f"mismatch vs reference: max abs err {max_err}"

    print("KERNEL_OK")
</pallas_src>

<mosaic_0001>
module attributes {stable_mosaic.version = 11 : i64} {
  func.func @_mm_stats_kernel(%arg0: i32, %arg1: i32, %arg2: i32, %arg3: memref<512x4xf32, #tpu.memory_space<vmem>>, %arg4: memref<4x8xf32, #tpu.memory_space<vmem>>, %arg5: memref<512x8xf32, #tpu.memory_space<vmem>>, %arg6: memref<1x2x8xf32, #tpu.memory_space<vmem>>, %arg7: memref<512x8xf32, #tpu.memory_space<vmem>>) attributes {dimension_semantics = [#tpu.dimension_semantics<parallel>, #tpu.dimension_semantics<parallel>, #tpu.dimension_semantics<arbitrary>], iteration_bounds = array<i64: 1, 1, 1>, scalar_prefetch = 0 : i64, scratch_operands = 1 : i64, tpu.core_type = #tpu.core_type<tc>, window_params = [{transform_indices = @transform_0, window_bounds = array<i64: 512, 4>}, {transform_indices = @transform_1, window_bounds = array<i64: 4, 8>}, {transform_indices = @transform_2, window_bounds = array<i64: 512, 8>}, {transform_indices = @transform_3, window_bounds = array<i64: 1, 2, 8>}]} {
    %c0_i32 = arith.constant 0 : i32
    %0 = arith.cmpi eq, %arg2, %c0_i32 : i32
    %1 = arith.extui %0 : i1 to i32
    %c0_i32_0 = arith.constant 0 : i32
    %2 = arith.cmpi ne, %1, %c0_i32_0 : i32
    scf.if %2 {
      %cst_10 = arith.constant 0.000000e+00 : f32
      %12 = vector.broadcast %cst_10 : f32 to vector<512x8xf32>
      %c0_11 = arith.constant 0 : index
      %c0_12 = arith.constant 0 : index
      %13 = vector.load %arg7[%c0_11, %c0_12] : memref<512x8xf32, #tpu.memory_space<vmem>>, vector<512x8xf32>
      tpu.vector_store %arg7[%c0_11, %c0_12], %12 {strides = array<i32>} : memref<512x8xf32, #tpu.memory_space<vmem>>, vector<512x8xf32>,
    } else {
    }
    %c0 = arith.constant 0 : index
    %c0_1 = arith.constant 0 : index
    %3 = vector.load %arg7[%c0, %c0_1] : memref<512x8xf32, #tpu.memory_space<vmem>>, vector<512x8xf32>
    %c0_2 = arith.constant 0 : index
    %c0_3 = arith.constant 0 : index
    %4 = vector.load %arg3[%c0_2, %c0_3] : memref<512x4xf32, #tpu.memory_space<vmem>>, vector<512x4xf32>
    %c0_4 = arith.constant 0 : index
    %c0_5 = arith.constant 0 : index
    %5 = vector.load %arg4[%c0_4, %c0_5] : memref<4x8xf32, #tpu.memory_space<vmem>>, vector<4x8xf32>
    %cst = arith.constant dense<0.000000e+00> : vector<512x8xf32>
    %6 = tpu.matmul %4, %5, %cst {dimension_numbers = #tpu.dot_dimension_numbers<[1], [0], [0], [1], [0, 0, 1, 1], [], []>} : vector<512x4xf32>, vector<4x8xf32>, vector<512x8xf32> -> vector<512x8xf32>
    %7 = arith.addf %3, %6 : vector<512x8xf32>
    %c0_6 = arith.constant 0 : index
    %c0_7 = arith.constant 0 : index
    %8 = vector.load %arg7[%c0_6, %c0_7] : memref<512x8xf32, #tpu.memory_space<vmem>>, vector<512x8xf32>
    tpu.vector_store %arg7[%c0_6, %c0_7], %7 {strides = array<i32>} : memref<512x8xf32, #tpu.memory_space<vmem>>, vector<512x8xf32>,
    %c0_i32_8 = arith.constant 0 : i32
    %9 = arith.cmpi eq, %arg2, %c0_i32_8 : i32
    %10 = arith.extui %9 : i1 to i32
    %c0_i32_9 = arith.constant 0 : i32
    %11 = arith.cmpi ne, %10, %c0_i32_9 : i32
    scf.if %11 {
      %c0_10 = arith.constant 0 : index
      %c0_11 = arith.constant 0 : index
      %12 = vector.load %arg7[%c0_10, %c0_11] : memref<512x8xf32, #tpu.memory_space<vmem>>, vector<512x8xf32>
      %c0_12 = arith.constant 0 : index
      %c0_13 = arith.constant 0 : index
      %13 = vector.load %arg5[%c0_12, %c0_13] : memref<512x8xf32, #tpu.memory_space<vmem>>, vector<512x8xf32>
      tpu.vector_store %arg5[%c0_12, %c0_13], %12 {strides = array<i32>} : memref<512x8xf32, #tpu.memory_space<vmem>>, vector<512x8xf32>,
      %cst_14 = arith.constant dense<0.000000e+00> : vector<8xf32>
      %14 = vector.multi_reduction <add>, %12, %cst_14 [0] : vector<512x8xf32> to vector<8xf32>
      %15 = vector.shape_cast %14 : vector<8xf32> to vector<1x8xf32>
      %16 = arith.mulf %12, %12 : vector<512x8xf32>
      %cst_15 = arith.constant dense<0.000000e+00> : vector<8xf32>
      %17 = vector.multi_reduction <add>, %16, %cst_15 [0] : vector<512x8xf32> to vector<8xf32>
      %18 = vector.shape_cast %17 : vector<8xf32> to vector<1x8xf32>
      %19 = tpu.concatenate %15, %18 in 0 : vector<1x8xf32>, vector<1x8xf32> -> vector<2x8xf32>
      %c0_16 = arith.constant 0 : index
      %c0_17 = arith.constant 0 : index
      %c0_18 = arith.constant 0 : index
      %20 = vector.load %arg6[%c0_16, %c0_17, %c0_18] : memref<1x2x8xf32, #tpu.memory_space<vmem>>, vector<1x2x8xf32>
      %21 = vector.shape_cast %20 : vector<1x2x8xf32> to vector<2x8xf32>
      %22 = vector.shape_cast %19 : vector<2x8xf32> to vector<1x2x8xf32>
      tpu.vector_store %arg6[%c0_16, %c0_17, %c0_18], %22 {strides = array<i32>} : memref<1x2x8xf32, #tpu.memory_space<vmem>>, vector<1x2x8xf32>,
    } else {
    }
    return
  }
  func.func @transform_0(%arg0: i32, %arg1: i32, %arg2: i32) -> (i32, i32) {
    %c0_i32 = arith.constant 0 : i32
    return %arg0, %arg2 : i32, i32
  }
  func.func @transform_1(%arg0: i32, %arg1: i32, %arg2: i32) -> (i32, i32) {
    %c0_i32 = arith.constant 0 : i32
    return %arg2, %arg1 : i32, i32
  }
  func.func @transform_2(%arg0: i32, %arg1: i32, %arg2: i32) -> (i32, i32) {
    %c0_i32 = arith.constant 0 : i32
    return %arg0, %arg1 : i32, i32
  }
  func.func @transform_3(%arg0: i32, %arg1: i32, %arg2: i32) -> (i32, i32, i32) {
    %c0_i32 = arith.constant 0 : i32
    %c0_i32_0 = arith.constant 0 : i32
    return %arg0, %c0_i32, %arg1 : i32, i32, i32
  }
}

module attributes {stable_mosaic.version = 11 : i64} {
  func.func @_bn_lrelu_kernel(%arg0: i32, %arg1: memref<512x8xf32, #tpu.memory_space<vmem>>, %arg2: memref<2x8xf32, #tpu.memory_space<vmem>>, %arg3: memref<512x8xf32, #tpu.memory_space<vmem>>) attributes {dimension_semantics = [#tpu.dimension_semantics<parallel>], iteration_bounds = array<i64: 1>, scalar_prefetch = 0 : i64, scratch_operands = 0 : i64, tpu.core_type = #tpu.core_type<tc>, window_params = [{transform_indices = @transform_0, window_bounds = array<i64: 512, 8>}, {pipeline_mode = #tpu.pipeline_mode<synchronous>, transform_indices = @transform_1, window_bounds = array<i64: 2, 8>}, {transform_indices = @transform_2, window_bounds = array<i64: 512, 8>}]} {
    %c0 = arith.constant 0 : index
    %c0_0 = arith.constant 0 : index
    %0 = vector.load %arg1[%c0, %c0_0] : memref<512x8xf32, #tpu.memory_space<vmem>>, vector<512x8xf32>
    %c0_1 = arith.constant 0 : index
    %c0_2 = arith.constant 0 : index
    %1 = vector.load %arg2[%c0_1, %c0_2] : memref<2x8xf32, #tpu.memory_space<vmem>>, vector<1x8xf32>
    %2 = vector.broadcast %1 : vector<1x8xf32> to vector<512x8xf32>
    %3 = arith.mulf %0, %2 : vector<512x8xf32>
    %c1 = arith.constant 1 : index
    %c0_3 = arith.constant 0 : index
    %4 = vector.load %arg2[%c1, %c0_3] : memref<2x8xf32, #tpu.memory_space<vmem>>, vector<1x8xf32>
    %5 = vector.broadcast %4 : vector<1x8xf32> to vector<512x8xf32>
    %6 = arith.addf %3, %5 : vector<512x8xf32>
    %cst = arith.constant 0.000000e+00 : f32
    %7 = vector.broadcast %cst : f32 to vector<512x8xf32>
    %8 = arith.cmpf oge, %6, %7 : vector<512x8xf32>
    %cst_4 = arith.constant 0.00999999977 : f32
    %9 = vector.broadcast %cst_4 : f32 to vector<512x8xf32>
    %10 = arith.mulf %9, %6 : vector<512x8xf32>
    %11 = arith.select %8, %6, %10 : vector<512x8xi1>, vector<512x8xf32>
    %c0_5 = arith.constant 0 : index
    %c0_6 = arith.constant 0 : index
    %12 = vector.load %arg3[%c0_5, %c0_6] : memref<512x8xf32, #tpu.memory_space<vmem>>, vector<512x8xf32>
    tpu.vector_store %arg3[%c0_5, %c0_6], %11 {strides = array<i32>} : memref<512x8xf32, #tpu.memory_space<vmem>>, vector<512x8xf32>,
    return
  }
  func.func @transform_0(%arg0: i32) -> (i32, i32) {
    %c0_i32 = arith.constant 0 : i32
    %c0_i32_0 = arith.constant 0 : i32
    return %arg0, %c0_i32 : i32, i32
  }
  func.func @transform_1(%arg0: i32) -> (i32, i32) {
    %c0_i32 = arith.constant 0 : i32
    %c0_i32_0 = arith.constant 0 : i32
    %c0_i32_1 = arith.constant 0 : i32
    return %c0_i32, %c0_i32_0 : i32, i32
  }
  func.func @transform_2(%arg0: i32) -> (i32, i32) {
    %c0_i32 = arith.constant 0 : i32
    %c0_i32_0 = arith.constant 0 : i32
    return %arg0, %c0_i32 : i32, i32
  }
}

module attributes {stable_mosaic.version = 11 : i64} {
  func.func @_conv3x3_stats_kernel(%arg0: i32, %arg1: i32, %arg2: memref<1x1x18x8xf32, #tpu.memory_space<vmem>>, %arg3: memref<1x1x18x8xf32, #tpu.memory_space<vmem>>, %arg4: memref<1x1x18x8xf32, #tpu.memory_space<vmem>>, %arg5: memref<3x3x8x4xf32, #tpu.memory_space<vmem>>, %arg6: memref<1x1x16x4xf32, #tpu.memory_space<vmem>>, %arg7: memref<1x1x2x4xf32, #tpu.memory_space<vmem>>) attributes {dimension_semantics = [#tpu.dimension_semantics<parallel>, #tpu.dimension_semantics<parallel>], iteration_bounds = array<i64: 2, 16>, scalar_prefetch = 0 : i64, scratch_operands = 0 : i64, tpu.core_type = #tpu.core_type<tc>, window_params = [{transform_indices = @transform_0, window_bounds = array<i64: 1, 1, 18, 8>}, {transform_indices = @transform_1, window_bounds = array<i64: 1, 1, 18, 8>}, {transform_indices = @transform_2, window_bounds = array<i64: 1, 1, 18, 8>}, {pipeline_mode = #tpu.pipeline_mode<synchronous>, transform_indices = @transform_3, window_bounds = array<i64: 3, 3, 8, 4>}, {transform_indices = @transform_4, window_bounds = array<i64: 1, 1, 16, 4>}, {transform_indices = @transform_5, window_bounds = array<i64: 1, 1, 2, 4>}]} {
    %cst = arith.constant 0.000000e+00 : f32
    %0 = vector.broadcast %cst : f32 to vector<16x4xf32>
    %c0 = arith.constant 0 : index
    %c0_0 = arith.constant 0 : index
    %c0_1 = arith.constant 0 : index
    %c0_2 = arith.constant 0 : index
    %1 = vector.load %arg2[%c0, %c0_0, %c0_1, %c0_2] : memref<1x1x18x8xf32, #tpu.memory_space<vmem>>, vector<1x1x18x8xf32>
    %2 = vector.shape_cast %1 : vector<1x1x18x8xf32> to vector<18x8xf32>
    %3 = vector.extract_strided_slice %2 {offsets = [0, 0], sizes = [16, 8], strides = [1, 1]} : vector<18x8xf32> to vector<16x8xf32>
    %c0_3 = arith.constant 0 : index
    %c0_4 = arith.constant 0 : index
    %c0_5 = arith.constant 0 : index
    %c0_6 = arith.constant 0 : index
    %4 = vector.load %arg5[%c0_3, %c0_4, %c0_5, %c0_6] : memref<3x3x8x4xf32, #tpu.memory_space<vmem>>, vector<1x1x8x4xf32>
    %5 = vector.shape_cast %4 : vector<1x1x8x4xf32> to vector<8x4xf32>
    %cst_7 = arith.constant dense<0.000000e+00> : vector<16x4xf32>
    %6 = tpu.matmul %3, %5, %cst_7 {dimension_numbers = #tpu.dot_dimension_numbers<[1], [0], [0], [1], [0, 0, 1, 1], [], []>} : vector<16x8xf32>, vector<8x4xf32>, vector<16x4xf32> -> vector<16x4xf32>
    %7 = arith.addf %0, %6 : vector<16x4xf32>
    %8 = vector.extract_strided_slice %2 {offsets = [1, 0], sizes = [16, 8], strides = [1, 1]} : vector<18x8xf32> to vector<16x8xf32>
    %c0_8 = arith.constant 0 : index
    %c1 = arith.constant 1 : index
    %c0_9 = arith.constant 0 : index
    %c0_10 = arith.constant 0 : index
    %9 = vector.load %arg5[%c0_8, %c1, %c0_9, %c0_10] : memref<3x3x8x4xf32, #tpu.memory_space<vmem>>, vector<1x1x8x4xf32>
    %10 = vector.shape_cast %9 : vector<1x1x8x4xf32> to vector<8x4xf32>
    %cst_11 = arith.constant dense<0.000000e+00> : vector<16x4xf32>
    %11 = tpu.matmul %8, %10, %cst_11 {dimension_numbers = #tpu.dot_dimension_numbers<[1], [0], [0], [1], [0, 0, 1, 1], [], []>} : vector<16x8xf32>, vector<8x4xf32>, vector<16x4xf32> -> vector<16x4xf32>
    %12 = arith.addf %7, %11 : vector<16x4xf32>
    %13 = vector.extract_strided_slice %2 {offsets = [2, 0], sizes = [16, 8], strides = [1, 1]} : vector<18x8xf32> to vector<16x8xf32>
    %c0_12 = arith.constant 0 : index
    %c2 = arith.constant 2 : index
    %c0_13 = arith.constant 0 : index
    %c0_14 = arith.constant 0 : index
    %14 = vector.load %arg5[%c0_12, %c2, %c0_13, %c0_14] : memref<3x3x8x4xf32, #tpu.memory_space<vmem>>, vector<1x1x8x4xf32>
    %15 = vector.shape_cast %14 : vector<1x1x8x4xf32> to vector<8x4xf32>
    %cst_15 = arith.constant dense<0.000000e+00> : vector<16x4xf32>
    %16 = tpu.matmul %13, %15, %cst_15 {dimension_numbers = #tpu.dot_dimension_numbers<[1], [0], [0], [1], [0, 0, 1, 1], [], []>} : vector<16x8xf32>, vector<8x4xf32>, vector<16x4xf32> -> vector<16x4xf32>
    %17 = arith.addf %12, %16 : vector<16x4xf32>
    %c0_16 = arith.constant 0 : index
    %c0_17 = arith.constant 0 : index
    %c0_18 = arith.constant 0 : index
    %c0_19 = arith.constant 0 : index
    %18 = vector.load %arg3[%c0_16, %c0_17, %c0_18, %c0_19] : memref<1x1x18x8xf32, #tpu.memory_space<vmem>>, vector<1x1x18x8xf32>
    %19 = vector.shape_cast %18 : vector<1x1x18x8xf32> to vector<18x8xf32>
    %20 = vector.extract_strided_slice %19 {offsets = [0, 0], sizes = [16, 8], strides = [1, 1]} : vector<18x8xf32> to vector<16x8xf32>
    %c1_20 = arith.constant 1 : index
    %c0_21 = arith.constant 0 : index
    %c0_22 = arith.constant 0 : index
    %c0_23 = arith.constant 0 : index
    %21 = vector.load %arg5[%c1_20, %c0_21, %c0_22, %c0_23] : memref<3x3x8x4xf32, #tpu.memory_space<vmem>>, vector<1x1x8x4xf32>
    %22 = vector.shape_cast %21 : vector<1x1x8x4xf32> to vector<8x4xf32>
    %cst_24 = arith.constant dense<0.000000e+00> : vector<16x4xf32>
    %23 = tpu.matmul %20, %22, %cst_24 {dimension_numbers = #tpu.dot_dimension_numbers<[1], [0], [0], [1], [0, 0, 1, 1], [], []>} : vector<16x8xf32>, vector<8x4xf32>, vector<16x4xf32> -> vector<16x4xf32>
    %24 = arith.addf %17, %23 : vector<16x4xf32>
    %25 = vector.extract_strided_slice %19 {offsets = [1, 0], sizes = [16, 8], strides = [1, 1]} : vector<18x8xf32> to vector<16x8xf32>
    %c1_25 = arith.constant 1 : index
    %c1_26 = arith.constant 1 : index
    %c0_27 = arith.constant 0 : index
    %c0_28 = arith.constant 0 : index
    %26 = vector.load %arg5[%c1_25, %c1_26, %c0_27, %c0_28] : memref<3x3x8x4xf32, #tpu.memory_space<vmem>>, vector<1x1x8x4xf32>
    %27 = vector.shape_cast %26 : vector<1x1x8x4xf32> to vector<8x4xf32>
    %cst_29 = arith.constant dense<0.000000e+00> : vector<16x4xf32>
    %28 = tpu.matmul %25, %27, %cst_29 {dimension_numbers = #tpu.dot_dimension_numbers<[1], [0], [0], [1], [0, 0, 1, 1], [], []>} : vector<16x8xf32>, vector<8x4xf32>, vector<16x4xf32> -> vector<16x4xf32>
    %29 = arith.addf %24, %28 : vector<16x4xf32>
    %30 = vector.extract_strided_slice %19 {offsets = [2, 0], sizes = [16, 8], strides = [1, 1]} : vector<18x8xf32> to vector<16x8xf32>
    %c1_30 = arith.constant 1 : index
    %c2_31 = arith.constant 2 : index
    %c0_32 = arith.constant 0 : index
    %c0_33 = arith.constant 0 : index
    %31 = vector.load %arg5[%c1_30, %c2_31, %c0_32, %c0_33] : memref<3x3x8x4xf32, #tpu.memory_space<vmem>>, vector<1x1x8x4xf32>
    %32 = vector.shape_cast %31 : vector<1x1x8x4xf32> to vector<8x4xf32>
    %cst_34 = arith.constant dense<0.000000e+00> : vector<16x4xf32>
    %33 = tpu.matmul %30, %32, %cst_34 {dimension_numbers = #tpu.dot_dimension_numbers<[1], [0], [0], [1], [0, 0, 1, 1], [], []>} : vector<16x8xf32>, vector<8x4xf32>, vector<16x4xf32> -> vector<16x4xf32>
    %34 = arith.addf %29, %33 : vector<16x4xf32>
    %c0_35 = arith.constant 0 : index
    %c0_36 = arith.constant 0 : index
    %c0_37 = arith.constant 0 : index
    %c0_38 = arith.constant 0 : index
    %35 = vector.load %arg4[%c0_35, %c0_36, %c0_37, %c0_38] : memref<1x1x18x8xf32, #tpu.memory_space<vmem>>, vector<1x1x18x8xf32>
    %36 = vector.shape_cast %35 : vector<1x1x18x8xf32> to vector<18x8xf32>
    %37 = vector.extract_strided_slice %36 {offsets = [0, 0], sizes = [16, 8], strides = [1, 1]} : vector<18x8xf32> to vector<16x8xf32>
    %c2_39 = arith.constant 2 : index
    %c0_40 = arith.constant 0 : index
    %c0_41 = arith.constant 0 : index
    %c0_42 = arith.constant 0 : index
    %38 = vector.load %arg5[%c2_39, %c0_40, %c0_41, %c0_42] : memref<3x3x8x4xf32, #tpu.memory_space<vmem>>, vector<1x1x8x4xf32>
    %39 = vector.shape_cast %38 : vector<1x1x8x4xf32> to vector<8x4xf32>
    %cst_43 = arith.constant dense<0.000000e+00> : vector<16x4xf32>
    %40 = tpu.matmul %37, %39, %cst_43 {dimension_numbers = #tpu.dot_dimension_numbers<[1], [0], [0], [1], [0, 0, 1, 1], [], []>} : vector<16x8xf32>, vector<8x4xf32>, vector<16x4xf32> -> vector<16x4xf32>
    %41 = arith.addf %34, %40 : vector<16x4xf32>
    %42 = vector.extract_strided_slice %36 {offsets = [1, 0], sizes = [16, 8], strides = [1, 1]} : vector<18x8xf32> to vector<16x8xf32>
    %c2_44 = arith.constant 2 : index
    %c1_45 = arith.constant 1 : index
    %c0_46 = arith.constant 0 : index
    %c0_47 = arith.constant 0 : index
    %43 = vector.load %arg5[%c2_44, %c1_45, %c0_46, %c0_47] : memref<3x3x8x4xf32, #tpu.memory_space<vmem>>, vector<1x1x8x4xf32>
    %44 = vector.shape_cast %43 : vector<1x1x8x4xf32> to vector<8x4xf32>
    %cst_48 = arith.constant dense<0.000000e+00> : vector<16x4xf32>
    %45 = tpu.matmul %42, %44, %cst_48 {dimension_numbers = #tpu.dot_dimension_numbers<[1], [0], [0], [1], [0, 0, 1, 1], [], []>} : vector<16x8xf32>, vector<8x4xf32>, vector<16x4xf32> -> vector<16x4xf32>
    %46 = arith.addf %41, %45 : vector<16x4xf32>
    %47 = vector.extract_strided_slice %36 {offsets = [2, 0], sizes = [16, 8], strides = [1, 1]} : vector<18x8xf32> to vector<16x8xf32>
    %c2_49 = arith.constant 2 : index
    %c2_50 = arith.constant 2 : index
    %c0_51 = arith.constant 0 : index
    %c0_52 = arith.constant 0 : index
    %48 = vector.load %arg5[%c2_49, %c2_50, %c0_51, %c0_52] : memref<3x3x8x4xf32, #tpu.memory_space<vmem>>, vector<1x1x8x4xf32>
    %49 = vector.shape_cast %48 : vector<1x1x8x4xf32> to vector<8x4xf32>
    %cst_53 = arith.constant dense<0.000000e+00> : vector<16x4xf32>
    %50 = tpu.matmul %47, %49, %cst_53 {dimension_numbers = #tpu.dot_dimension_numbers<[1], [0], [0], [1], [0, 0, 1, 1], [], []>} : vector<16x8xf32>, vector<8x4xf32>, vector<16x4xf32> -> vector<16x4xf32>
    %51 = arith.addf %46, %50 : vector<16x4xf32>
    %c0_54 = arith.constant 0 : index
    %c0_55 = arith.constant 0 : index
    %c0_56 = arith.constant 0 : index
    %c0_57 = arith.constant 0 : index
    %52 = vector.load %arg6[%c0_54, %c0_55, %c0_56, %c0_57] : memref<1x1x16x4xf32, #tpu.memory_space<vmem>>, vector<1x1x16x4xf32>
    %53 = vector.shape_cast %52 : vector<1x1x16x4xf32> to vector<16x4xf32>
    %54 = vector.shape_cast %51 : vector<16x4xf32> to vector<1x1x16x4xf32>
    tpu.vector_store %arg6[%c0_54, %c0_55, %c0_56, %c0_57], %54 {strides = array<i32>} : memref<1x1x16x4xf32, #tpu.memory_space<vmem>>, vector<1x1x16x4xf32>,
    %cst_58 = arith.constant dense<0.000000e+00> : vector<4xf32>
    %55 = vector.multi_reduction <add>, %51, %cst_58 [0] : vector<16x4xf32> to vector<4xf32>
    %56 = vector.shape_cast %55 : vector<4xf32> to vector<1x4xf32>
    %57 = arith.mulf %51, %51 : vector<16x4xf32>
    %cst_59 = arith.constant dense<0.000000e+00> : vector<4xf32>
    %58 = vector.multi_reduction <add>, %57, %cst_59 [0] : vector<16x4xf32> to vector<4xf32>
    %59 = vector.shape_cast %58 : vector<4xf32> to vector<1x4xf32>
    %60 = tpu.concatenate %56, %59 in 0 : vector<1x4xf32>, vector<1x4xf32> -> vector<2x4xf32>
    %c0_60 = arith.constant 0 : index
    %c0_61 = arith.constant 0 : index
    %c0_62 = arith.constant 0 : index
    %c0_63 = arith.constant 0 : index
    %61 = vector.load %arg7[%c0_60, %c0_61, %c0_62, %c0_63] : memref<1x1x2x4xf32, #tpu.memory_space<vmem>>, vector<1x1x2x4xf32>
    %62 = vector.shape_cast %61 : vector<1x1x2x4xf32> to vector<2x4xf32>
    %63 = vector.shape_cast %60 : vector<2x4xf32> to vector<1x1x2x4xf32>
    tpu.vector_store %arg7[%c0_60, %c0_61, %c0_62, %c0_63], %63 {strides = array<i32>} : memref<1x1x2x4xf32, #tpu.memory_space<vmem>>, vector<1x1x2x4xf32>,
    return
  }
  func.func @transform_0(%arg0: i32, %arg1: i32) -> (i32, i32, i32, i32) {
    %c0_i32 = arith.constant 0 : i32
    %0 = arith.addi %arg1, %c0_i32 : i32
    %c0_i32_0 = arith.constant 0 : i32
    %c0_i32_1 = arith.constant 0 : i32
    %c0_i32_2 = arith.constant 0 : i32
    return %arg0, %0, %c0_i32_0, %c0_i32_1 : i32, i32, i32, i32
  }
  func.func @transform_1(%arg0: i32, %arg1: i32) -> (i32, i32, i32, i32) {
    %c1_i32 = arith.constant 1 : i32
    %0 = arith.addi %arg1, %c1_i32 : i32
    %c0_i32 = arith.constant 0 : i32
    %c0_i32_0 = arith.constant 0 : i32
    %c0_i32_1 = arith.constant 0 : i32
    return %arg0, %0, %c0_i32, %c0_i32_0 : i32, i32, i32, i32
  }
  func.func @transform_2(%arg0: i32, %arg1: i32) -> (i32, i32, i32, i32) {
    %c2_i32 = arith.constant 2 : i32
    %0 = arith.addi %arg1, %c2_i32 : i32
    %c0_i32 = arith.constant 0 : i32
    %c0_i32_0 = arith.constant 0 : i32
    %c0_i32_1 = arith.constant 0 : i32
    return %arg0, %0, %c0_i32, %c0_i32_0 : i32, i32, i32, i32
  }
  func.func @transform_3(%arg0: i32, %arg1: i32) -> (i32, i32, i32, i32) {
    %c0_i32 = arith.constant 0 : i32
    %c0_i32_0 = arith.constant 0 : i32
    %c0_i32_1 = arith.constant 0 : i32
    %c0_i32_2 = arith.constant 0 : i32
    %c0_i32_3 = arith.constant 0 : i32
    return %c0_i32, %c0_i32_0, %c0_i32_1, %c0_i32_2 : i32, i32, i32, i32
  }
  func.func @transform_4(%arg0: i32, %arg1: i32) -> (i32, i32, i32, i32) {
    %c0_i32 = arith.constant 0 : i32
    %c0_i32_0 = arith.constant 0 : i32
    %c0_i32_1 = arith.constant 0 : i32
    return %arg0, %arg1, %c0_i32, %c0_i32_0 : i32, i32, i32, i32
  }
  func.func @transform_5(%arg0: i32, %arg1: i32) -> (i32, i32, i32, i32) {
    %c0_i32 = arith.constant 0 : i32
    %c0_i32_0 = arith.constant 0 : i32
    %c0_i32_1 = arith.constant 0 : i32
    return %arg0, %arg1, %c0_i32, %c0_i32_0 : i32, i32, i32, i32
  }
}

module attributes {stable_mosaic.version = 11 : i64} {
  func.func @_bn_lrelu_kernel(%arg0: i32, %arg1: memref<512x4xf32, #tpu.memory_space<vmem>>, %arg2: memref<2x4xf32, #tpu.memory_space<vmem>>, %arg3: memref<512x4xf32, #tpu.memory_space<vmem>>) attributes {dimension_semantics = [#tpu.dimension_semantics<parallel>], iteration_bounds = array<i64: 1>, scalar_prefetch = 0 : i64, scratch_operands = 0 : i64, tpu.core_type = #tpu.core_type<tc>, window_params = [{transform_indices = @transform_0, window_bounds = array<i64: 512, 4>}, {pipeline_mode = #tpu.pipeline_mode<synchronous>, transform_indices = @transform_1, window_bounds = array<i64: 2, 4>}, {transform_indices = @transform_2, window_bounds = array<i64: 512, 4>}]} {
    %c0 = arith.constant 0 : index
    %c0_0 = arith.constant 0 : index
    %0 = vector.load %arg1[%c0, %c0_0] : memref<512x4xf32, #tpu.memory_space<vmem>>, vector<512x4xf32>
    %c0_1 = arith.constant 0 : index
    %c0_2 = arith.constant 0 : index
    %1 = vector.load %arg2[%c0_1, %c0_2] : memref<2x4xf32, #tpu.memory_space<vmem>>, vector<1x4xf32>
    %2 = vector.broadcast %1 : vector<1x4xf32> to vector<512x4xf32>
    %3 = arith.mulf %0, %2 : vector<512x4xf32>
    %c1 = arith.constant 1 : index
    %c0_3 = arith.constant 0 : index
    %4 = vector.load %arg2[%c1, %c0_3] : memref<2x4xf32, #tpu.memory_space<vmem>>, vector<1x4xf32>
    %5 = vector.broadcast %4 : vector<1x4xf32> to vector<512x4xf32>
    %6 = arith.addf %3, %5 : vector<512x4xf32>
    %cst = arith.constant 0.000000e+00 : f32
    %7 = vector.broadcast %cst : f32 to vector<512x4xf32>
    %8 = arith.cmpf oge, %6, %7 : vector<512x4xf32>
    %cst_4 = arith.constant 0.00999999977 : f32
    %9 = vector.broadcast %cst_4 : f32 to vector<512x4xf32>
    %10 = arith.mulf %9, %6 : vector<512x4xf32>
    %11 = arith.select %8, %6, %10 : vector<512x4xi1>, vector<512x4xf32>
    %c0_5 = arith.constant 0 : index
    %c0_6 = arith.constant 0 : index
    %12 = vector.load %arg3[%c0_5, %c0_6] : memref<512x4xf32, #tpu.memory_space<vmem>>, vector<512x4xf32>
    tpu.vector_store %arg3[%c0_5, %c0_6], %11 {strides = array<i32>} : memref<512x4xf32, #tpu.memory_space<vmem>>, vector<512x4xf32>,
    return
  }
  func.func @transform_0(%arg0: i32) -> (i32, i32) {
    %c0_i32 = arith.constant 0 : i32
    %c0_i32_0 = arith.constant 0 : i32
    return %arg0, %c0_i32 : i32, i32
  }
  func.func @transform_1(%arg0: i32) -> (i32, i32) {
    %c0_i32 = arith.constant 0 : i32
    %c0_i32_0 = arith.constant 0 : i32
    %c0_i32_1 = arith.constant 0 : i32
    return %c0_i32, %c0_i32_0 : i32, i32
  }
  func.func @transform_2(%arg0: i32) -> (i32, i32) {
    %c0_i32 = arith.constant 0 : i32
    %c0_i32_0 = arith.constant 0 : i32
    return %arg0, %c0_i32 : i32, i32
  }
}

</mosaic_0001>

<llo_original>
// kernel: convolution_set.11
$region0: #{convolution_set.11}
  #allocation0 [shape = 'u32[]', space=smem, size = 0x4, offset = 0x4, fixed_abs, tag = 'smem constant byte address 0x4 - core index']
  #allocation1 [shape = 'u32[72,128]{1,0:T(1,128)}', space=vmem, size = 0x9000, scoped, tag = 'internal scratch']
  %s0 = inlined_call_operand.vmem [shape: f32[512,8], index: 0, kind: input, shape index: {}]
  %s1 = inlined_call_operand.vmem [shape: f32[2,8], index: 1, kind: input, shape index: {}]
  %s2 = inlined_call_operand.vmem [shape: f32[512,8], index: 2, kind: output, shape index: {}]
  %s3 = sld [smem:[#allocation0]]
  $region18: #{convolution_set.11} parent=0
    _
  %s5 = ssub.s32 1, %s3
  %s6 = scalar_select 0, %s5, %s3
  // Predicated region
  $region2: #{convolution_set.11} parent=0 // pred_check
    _
  $region3: #{convolution_set.11} parent=0 // pred_check_branch
    %8 = sbr.rel (0) target = $region5
  $region4: #{convolution_set.11} parent=0 // pred_region
    _
  $region5: #{convolution_set.11} parent=0 // pred_fallthru
    _
  // Predicated region
  $region6: #{convolution_set.11} parent=0 // pred_check
    _
  $region7: #{convolution_set.11} parent=0 // pred_check_branch
    %10 = sbr.rel (0) target = $region9
  $region8: #{convolution_set.11} parent=0 // pred_region
    _
  $region9: #{convolution_set.11} parent=0 // pred_fallthru
    _
  %v11 = vld [vmem:[%s0] sm:$0xff]
  %v12 = vld [vmem:[%s0 + $0x8] sm:$0xff]
  %v13 = vld [vmem:[%s0 + $0x10] sm:$0xff]
  %v14 = vld [vmem:[%s0 + $0x18] sm:$0xff]
  %v15 = vld [vmem:[%s0 + $0x20] sm:$0xff]
  %v16 = vld [vmem:[%s0 + $0x28] sm:$0xff]
  %v17 = vld [vmem:[%s0 + $0x30] sm:$0xff]
  %v18 = vld [vmem:[%s0 + $0x38] sm:$0xff]
  %v19 = vld [vmem:[%s0 + $0x40] sm:$0xff]
  %v20 = vld [vmem:[%s0 + $0x48] sm:$0xff]
  %v21 = vld [vmem:[%s0 + $0x50] sm:$0xff]
  %v22 = vld [vmem:[%s0 + $0x58] sm:$0xff]
  %v23 = vld [vmem:[%s0 + $0x60] sm:$0xff]
  %v24 = vld [vmem:[%s0 + $0x68] sm:$0xff]
  %v25 = vld [vmem:[%s0 + $0x70] sm:$0xff]
  %v26 = vld [vmem:[%s0 + $0x78] sm:$0xff]
  %v27 = vld [vmem:[%s0 + $0x80] sm:$0xff]
  %v28 = vld [vmem:[%s0 + $0x88] sm:$0xff]
  %v29 = vld [vmem:[%s0 + $0x90] sm:$0xff]
  %v30 = vld [vmem:[%s0 + $0x98] sm:$0xff]
  %v31 = vld [vmem:[%s0 + $0xa0] sm:$0xff]
  %v32 = vld [vmem:[%s0 + $0xa8] sm:$0xff]
  %v33 = vld [vmem:[%s0 + $0xb0] sm:$0xff]
  %v34 = vld [vmem:[%s0 + $0xb8] sm:$0xff]
  %v35 = vld [vmem:[%s0 + $0xc0] sm:$0xff]
  %v36 = vld [vmem:[%s0 + $0xc8] sm:$0xff]
  %v37 = vld [vmem:[%s0 + $0xd0] sm:$0xff]
  %v38 = vld [vmem:[%s0 + $0xd8] sm:$0xff]
  %v39 = vld [vmem:[%s0 + $0xe0] sm:$0xff]
  %v40 = vld [vmem:[%s0 + $0xe8] sm:$0xff]
  %v41 = vld [vmem:[%s0 + $0xf0] sm:$0xff]
  %v42 = vld [vmem:[%s0 + $0xf8] sm:$0xff]
  %v43 = vld [vmem:[%s0 + $0x100] sm:$0xff]
  %v44 = vld [vmem:[%s0 + $0x108] sm:$0xff]
  %v45 = vld [vmem:[%s0 + $0x110] sm:$0xff]
  %v46 = vld [vmem:[%s0 + $0x118] sm:$0xff]
  %v47 = vld [vmem:[%s0 + $0x120] sm:$0xff]
  %v48 = vld [vmem:[%s0 + $0x128] sm:$0xff]
  %v49 = vld [vmem:[%s0 + $0x130] sm:$0xff]
  %v50 = vld [vmem:[%s0 + $0x138] sm:$0xff]
  %v51 = vld [vmem:[%s0 + $0x140] sm:$0xff]
  %v52 = vld [vmem:[%s0 + $0x148] sm:$0xff]
  %v53 = vld [vmem:[%s0 + $0x150] sm:$0xff]
  %v54 = vld [vmem:[%s0 + $0x158] sm:$0xff]
  %v55 = vld [vmem:[%s0 + $0x160] sm:$0xff]
  %v56 = vld [vmem:[%s0 + $0x168] sm:$0xff]
  %v57 = vld [vmem:[%s0 + $0x170] sm:$0xff]
  %v58 = vld [vmem:[%s0 + $0x178] sm:$0xff]
  %v59 = vld [vmem:[%s0 + $0x180] sm:$0xff]
  %v60 = vld [vmem:[%s0 + $0x188] sm:$0xff]
  %v61 = vld [vmem:[%s0 + $0x190] sm:$0xff]
  %v62 = vld [vmem:[%s0 + $0x198] sm:$0xff]
  %v63 = vld [vmem:[%s0 + $0x1a0] sm:$0xff]
  %v64 = vld [vmem:[%s0 + $0x1a8] sm:$0xff]
  %v65 = vld [vmem:[%s0 + $0x1b0] sm:$0xff]
  %v66 = vld [vmem:[%s0 + $0x1b8] sm:$0xff]
  %v67 = vld [vmem:[%s0 + $0x1c0] sm:$0xff]
  %v68 = vld [vmem:[%s0 + $0x1c8] sm:$0xff]
  %v69 = vld [vmem:[%s0 + $0x1d0] sm:$0xff]
  %v70 = vld [vmem:[%s0 + $0x1d8] sm:$0xff]
  %v71 = vld [vmem:[%s0 + $0x1e0] sm:$0xff]
  %v72 = vld [vmem:[%s0 + $0x1e8] sm:$0xff]
  %v73 = vld [vmem:[%s0 + $0x1f0] sm:$0xff]
  %v74 = vld [vmem:[%s0 + $0x1f8] sm:$0xff]
  %v75 = vld [vmem:[%s1] sm:$0x1]
  %v76 = vperm.slane %v75, 0
  %v77 = vmul.f32 %v11, %v76
  %v78 = vmul.f32 %v12, %v76
  %v79 = vmul.f32 %v13, %v76
  %v80 = vmul.f32 %v14, %v76
  %v81 = vmul.f32 %v15, %v76
  %v82 = vmul.f32 %v16, %v76
  %v83 = vmul.f32 %v17, %v76
  %v84 = vmul.f32 %v18, %v76
  %v85 = vmul.f32 %v19, %v76
  %v86 = vmul.f32 %v20, %v76
  %v87 = vmul.f32 %v21, %v76
  %v88 = vmul.f32 %v22, %v76
  %v89 = vmul.f32 %v23, %v76
  %v90 = vmul.f32 %v24, %v76
  %v91 = vmul.f32 %v25, %v76
  %v92 = vmul.f32 %v26, %v76
  %v93 = vmul.f32 %v27, %v76
  %v94 = vmul.f32 %v28, %v76
  %v95 = vmul.f32 %v29, %v76
  %v96 = vmul.f32 %v30, %v76
  %v97 = vmul.f32 %v31, %v76
  %v98 = vmul.f32 %v32, %v76
  %v99 = vmul.f32 %v33, %v76
  %v100 = vmul.f32 %v34, %v76
  %v101 = vmul.f32 %v35, %v76
  %v102 = vmul.f32 %v36, %v76
  %v103 = vmul.f32 %v37, %v76
  %v104 = vmul.f32 %v38, %v76
  %v105 = vmul.f32 %v39, %v76
  %v106 = vmul.f32 %v40, %v76
  %v107 = vmul.f32 %v41, %v76
  %v108 = vmul.f32 %v42, %v76
  %v109 = vmul.f32 %v43, %v76
  %v110 = vmul.f32 %v44, %v76
  %v111 = vmul.f32 %v45, %v76
  %v112 = vmul.f32 %v46, %v76
  %v113 = vmul.f32 %v47, %v76
  %v114 = vmul.f32 %v48, %v76
  %v115 = vmul.f32 %v49, %v76
  %v116 = vmul.f32 %v50, %v76
  %v117 = vmul.f32 %v51, %v76
  %v118 = vmul.f32 %v52, %v76
  %v119 = vmul.f32 %v53, %v76
  %v120 = vmul.f32 %v54, %v76
  %v121 = vmul.f32 %v55, %v76
  %v122 = vmul.f32 %v56, %v76
  %v123 = vmul.f32 %v57, %v76
  %v124 = vmul.f32 %v58, %v76
  %v125 = vmul.f32 %v59, %v76
  %v126 = vmul.f32 %v60, %v76
  %v127 = vmul.f32 %v61, %v76
  %v128 = vmul.f32 %v62, %v76
  %v129 = vmul.f32 %v63, %v76
  %v130 = vmul.f32 %v64, %v76
  %v131 = vmul.f32 %v65, %v76
  %v132 = vmul.f32 %v66, %v76
  %v133 = vmul.f32 %v67, %v76
  %v134 = vmul.f32 %v68, %v76
  %v135 = vmul.f32 %v69, %v76
  %v136 = vmul.f32 %v70, %v76
  %v137 = vmul.f32 %v71, %v76
  %v138 = vmul.f32 %v72, %v76
  %v139 = vmul.f32 %v73, %v76
  %v140 = vmul.f32 %v74, %v76
  %v141 = vld [vmem:[%s1 + $0x1] sm:$0x1]
  %v142 = vperm.slane %v141, 0
  %v143 = vadd.f32 %v77, %v142
  %v144 = vadd.f32 %v78, %v142
  %v145 = vadd.f32 %v79, %v142
  %v146 = vadd.f32 %v80, %v142
  %v147 = vadd.f32 %v81, %v142
  %v148 = vadd.f32 %v82, %v142
  %v149 = vadd.f32 %v83, %v142
  %v150 = vadd.f32 %v84, %v142
  %v151 = vadd.f32 %v85, %v142
  %v152 = vadd.f32 %v86, %v142
  %v153 = vadd.f32 %v87, %v142
  %v154 = vadd.f32 %v88, %v142
  %v155 = vadd.f32 %v89, %v142
  %v156 = vadd.f32 %v90, %v142
  %v157 = vadd.f32 %v91, %v142
  %v158 = vadd.f32 %v92, %v142
  %v159 = vadd.f32 %v93, %v142
  %v160 = vadd.f32 %v94, %v142
  %v161 = vadd.f32 %v95, %v142
  %v162 = vadd.f32 %v96, %v142
  %v163 = vadd.f32 %v97, %v142
  %v164 = vadd.f32 %v98, %v142
  %v165 = vadd.f32 %v99, %v142
  %v166 = vadd.f32 %v100, %v142
  %v167 = vadd.f32 %v101, %v142
  %v168 = vadd.f32 %v102, %v142
  %v169 = vadd.f32 %v103, %v142
  %v170 = vadd.f32 %v104, %v142
  %v171 = vadd.f32 %v105, %v142
  %v172 = vadd.f32 %v106, %v142
  %v173 = vadd.f32 %v107, %v142
  %v174 = vadd.f32 %v108, %v142
  %v175 = vadd.f32 %v109, %v142
  %v176 = vadd.f32 %v110, %v142
  %v177 = vadd.f32 %v111, %v142
  %v178 = vadd.f32 %v112, %v142
  %v179 = vadd.f32 %v113, %v142
  %v180 = vadd.f32 %v114, %v142
  %v181 = vadd.f32 %v115, %v142
  %v182 = vadd.f32 %v116, %v142
  %v183 = vadd.f32 %v117, %v142
  %v184 = vadd.f32 %v118, %v142
  %v185 = vadd.f32 %v119, %v142
  %v186 = vadd.f32 %v120, %v142
  %v187 = vadd.f32 %v121, %v142
  %v188 = vadd.f32 %v122, %v142
  %v189 = vadd.f32 %v123, %v142
  %v190 = vadd.f32 %v124, %v142
  %v191 = vadd.f32 %v125, %v142
  %v192 = vadd.f32 %v126, %v142
  %v193 = vadd.f32 %v127, %v142
  %v194 = vadd.f32 %v128, %v142
  %v195 = vadd.f32 %v129, %v142
  %v196 = vadd.f32 %v130, %v142
  %v197 = vadd.f32 %v131, %v142
  %v198 = vadd.f32 %v132, %v142
  %v199 = vadd.f32 %v133, %v142
  %v200 = vadd.f32 %v134, %v142
  %v201 = vadd.f32 %v135, %v142
  %v202 = vadd.f32 %v136, %v142
  %v203 = vadd.f32 %v137, %v142
  %v204 = vadd.f32 %v138, %v142
  %v205 = vadd.f32 %v139, %v142
  %v206 = vadd.f32 %v140, %v142
  %vm207 = vcmp.ge.f32.partialorder %v143, 0.0
  %vm208 = vcmp.ge.f32.partialorder %v144, 0.0
  %vm209 = vcmp.ge.f32.partialorder %v145, 0.0
  %vm210 = vcmp.ge.f32.partialorder %v146, 0.0
  %vm211 = vcmp.ge.f32.partialorder %v147, 0.0
  %vm212 = vcmp.ge.f32.partialorder %v148, 0.0
  %vm213 = vcmp.ge.f32.partialorder %v149, 0.0
  %vm214 = vcmp.ge.f32.partialorder %v150, 0.0
  %vm215 = vcmp.ge.f32.partialorder %v151, 0.0
  %vm216 = vcmp.ge.f32.partialorder %v152, 0.0
  %vm217 = vcmp.ge.f32.partialorder %v153, 0.0
  %vm218 = vcmp.ge.f32.partialorder %v154, 0.0
  %vm219 = vcmp.ge.f32.partialorder %v155, 0.0
  %vm220 = vcmp.ge.f32.partialorder %v156, 0.0
  %vm221 = vcmp.ge.f32.partialorder %v157, 0.0
  %vm222 = vcmp.ge.f32.partialorder %v158, 0.0
  %vm223 = vcmp.ge.f32.partialorder %v159, 0.0
  %vm224 = vcmp.ge.f32.partialorder %v160, 0.0
  %vm225 = vcmp.ge.f32.partialorder %v161, 0.0
  %vm226 = vcmp.ge.f32.partialorder %v162, 0.0
  %vm227 = vcmp.ge.f32.partialorder %v163, 0.0
  %vm228 = vcmp.ge.f32.partialorder %v164, 0.0
  %vm229 = vcmp.ge.f32.partialorder %v165, 0.0
  %vm230 = vcmp.ge.f32.partialorder %v166, 0.0
  %vm231 = vcmp.ge.f32.partialorder %v167, 0.0
  %vm232 = vcmp.ge.f32.partialorder %v168, 0.0
  %vm233 = vcmp.ge.f32.partialorder %v169, 0.0
  %vm234 = vcmp.ge.f32.partialorder %v170, 0.0
  %vm235 = vcmp.ge.f32.partialorder %v171, 0.0
  %vm236 = vcmp.ge.f32.partialorder %v172, 0.0
  %vm237 = vcmp.ge.f32.partialorder %v173, 0.0
  %vm238 = vcmp.ge.f32.partialorder %v174, 0.0
  %vm239 = vcmp.ge.f32.partialorder %v175, 0.0
  %vm240 = vcmp.ge.f32.partialorder %v176, 0.0
  %vm241 = vcmp.ge.f32.partialorder %v177, 0.0
  %vm242 = vcmp.ge.f32.partialorder %v178, 0.0
  %vm243 = vcmp.ge.f32.partialorder %v179, 0.0
  %vm244 = vcmp.ge.f32.partialorder %v180, 0.0
  %vm245 = vcmp.ge.f32.partialorder %v181, 0.0
  %vm246 = vcmp.ge.f32.partialorder %v182, 0.0
  %vm247 = vcmp.ge.f32.partialorder %v183, 0.0
  %vm248 = vcmp.ge.f32.partialorder %v184, 0.0
  %vm249 = vcmp.ge.f32.partialorder %v185, 0.0
  %vm250 = vcmp.ge.f32.partialorder %v186, 0.0
  %vm251 = vcmp.ge.f32.partialorder %v187, 0.0
  %vm252 = vcmp.ge.f32.partialorder %v188, 0.0
  %vm253 = vcmp.ge.f32.partialorder %v189, 0.0
  %vm254 = vcmp.ge.f32.partialorder %v190, 0.0
  %vm255 = vcmp.ge.f32.partialorder %v191, 0.0
  %vm256 = vcmp.ge.f32.partialorder %v192, 0.0
  %vm257 = vcmp.ge.f32.partialorder %v193, 0.0
  %vm258 = vcmp.ge.f32.partialorder %v194, 0.0
  %vm259 = vcmp.ge.f32.partialorder %v195, 0.0
  %vm260 = vcmp.ge.f32.partialorder %v196, 0.0
  %vm261 = vcmp.ge.f32.partialorder %v197, 0.0
  %vm262 = vcmp.ge.f32.partialorder %v198, 0.0
  %vm263 = vcmp.ge.f32.partialorder %v199, 0.0
  %vm264 = vcmp.ge.f32.partialorder %v200, 0.0
  %vm265 = vcmp.ge.f32.partialorder %v201, 0.0
  %vm266 = vcmp.ge.f32.partialorder %v202, 0.0
  %vm267 = vcmp.ge.f32.partialorder %v203, 0.0
  %vm268 = vcmp.ge.f32.partialorder %v204, 0.0
  %vm269 = vcmp.ge.f32.partialorder %v205, 0.0
  %vm270 = vcmp.ge.f32.partialorder %v206, 0.0
  %v271 = vmul.f32 %v143, 0.01
  %v272 = vmul.f32 %v144, 0.01
  %v273 = vmul.f32 %v145, 0.01
  %v274 = vmul.f32 %v146, 0.01
  %v275 = vmul.f32 %v147, 0.01
  %v276 = vmul.f32 %v148, 0.01
  %v277 = vmul.f32 %v149, 0.01
  %v278 = vmul.f32 %v150, 0.01
  %v279 = vmul.f32 %v151, 0.01
  %v280 = vmul.f32 %v152, 0.01
  %v281 = vmul.f32 %v153, 0.01
  %v282 = vmul.f32 %v154, 0.01
  %v283 = vmul.f32 %v155, 0.01
  %v284 = vmul.f32 %v156, 0.01
  %v285 = vmul.f32 %v157, 0.01
  %v286 = vmul.f32 %v158, 0.01
  %v287 = vmul.f32 %v159, 0.01
  %v288 = vmul.f32 %v160, 0.01
  %v289 = vmul.f32 %v161, 0.01
  %v290 = vmul.f32 %v162, 0.01
  %v291 = vmul.f32 %v163, 0.01
  %v292 = vmul.f32 %v164, 0.01
  %v293 = vmul.f32 %v165, 0.01
  %v294 = vmul.f32 %v166, 0.01
  %v295 = vmul.f32 %v167, 0.01
  %v296 = vmul.f32 %v168, 0.01
  %v297 = vmul.f32 %v169, 0.01
  %v298 = vmul.f32 %v170, 0.01
  %v299 = vmul.f32 %v171, 0.01
  %v300 = vmul.f32 %v172, 0.01
  %v301 = vmul.f32 %v173, 0.01
  %v302 = vmul.f32 %v174, 0.01
  %v303 = vmul.f32 %v175, 0.01
  %v304 = vmul.f32 %v176, 0.01
  %v305 = vmul.f32 %v177, 0.01
  %v306 = vmul.f32 %v178, 0.01
  %v307 = vmul.f32 %v179, 0.01
  %v308 = vmul.f32 %v180, 0.01
  %v309 = vmul.f32 %v181, 0.01
  %v310 = vmul.f32 %v182, 0.01
  %v311 = vmul.f32 %v183, 0.01
  %v312 = vmul.f32 %v184, 0.01
  %v313 = vmul.f32 %v185, 0.01
  %v314 = vmul.f32 %v186, 0.01
  %v315 = vmul.f32 %v187, 0.01
  %v316 = vmul.f32 %v188, 0.01
  %v317 = vmul.f32 %v189, 0.01
  %v318 = vmul.f32 %v190, 0.01
  %v319 = vmul.f32 %v191, 0.01
  %v320 = vmul.f32 %v192, 0.01
  %v321 = vmul.f32 %v193, 0.01
  %v322 = vmul.f32 %v194, 0.01
  %v323 = vmul.f32 %v195, 0.01
  %v324 = vmul.f32 %v196, 0.01
  %v325 = vmul.f32 %v197, 0.01
  %v326 = vmul.f32 %v198, 0.01
  %v327 = vmul.f32 %v199, 0.01
  %v328 = vmul.f32 %v200, 0.01
  %v329 = vmul.f32 %v201, 0.01
  %v330 = vmul.f32 %v202, 0.01
  %v331 = vmul.f32 %v203, 0.01
  %v332 = vmul.f32 %v204, 0.01
  %v333 = vmul.f32 %v205, 0.01
  %v334 = vmul.f32 %v206, 0.01
  %v335 = vsel %vm207, %v143, %v271
  %v336 = vsel %vm208, %v144, %v272
  %v337 = vsel %vm209, %v145, %v273
  %v338 = vsel %vm210, %v146, %v274
  %v339 = vsel %vm211, %v147, %v275
  %v340 = vsel %vm212, %v148, %v276
  %v341 = vsel %vm213, %v149, %v277
  %v342 = vsel %vm214, %v150, %v278
  %v343 = vsel %vm215, %v151, %v279
  %v344 = vsel %vm216, %v152, %v280
  %v345 = vsel %vm217, %v153, %v281
  %v346 = vsel %vm218, %v154, %v282
  %v347 = vsel %vm219, %v155, %v283
  %v348 = vsel %vm220, %v156, %v284
  %v349 = vsel %vm221, %v157, %v285
  %v350 = vsel %vm222, %v158, %v286
  %v351 = vsel %vm223, %v159, %v287
  %v352 = vsel %vm224, %v160, %v288
  %v353 = vsel %vm225, %v161, %v289
  %v354 = vsel %vm226, %v162, %v290
  %v355 = vsel %vm227, %v163, %v291
  %v356 = vsel %vm228, %v164, %v292
  %v357 = vsel %vm229, %v165, %v293
  %v358 = vsel %vm230, %v166, %v294
  %v359 = vsel %vm231, %v167, %v295
  %v360 = vsel %vm232, %v168, %v296
  %v361 = vsel %vm233, %v169, %v297
  %v362 = vsel %vm234, %v170, %v298
  %v363 = vsel %vm235, %v171, %v299
  %v364 = vsel %vm236, %v172, %v300
  %v365 = vsel %vm237, %v173, %v301
  %v366 = vsel %vm238, %v174, %v302
  %v367 = vsel %vm239, %v175, %v303
  %v368 = vsel %vm240, %v176, %v304
  %v369 = vsel %vm241, %v177, %v305
  %v370 = vsel %vm242, %v178, %v306
  %v371 = vsel %vm243, %v179, %v307
  %v372 = vsel %vm244, %v180, %v308
  %v373 = vsel %vm245, %v181, %v309
  %v374 = vsel %vm246, %v182, %v310
  %v375 = vsel %vm247, %v183, %v311
  %v376 = vsel %vm248, %v184, %v312
  %v377 = vsel %vm249, %v185, %v313
  %v378 = vsel %vm250, %v186, %v314
  %v379 = vsel %vm251, %v187, %v315
  %v380 = vsel %vm252, %v188, %v316
  %v381 = vsel %vm253, %v189, %v317
  %v382 = vsel %vm254, %v190, %v318
  %v383 = vsel %vm255, %v191, %v319
  %v384 = vsel %vm256, %v192, %v320
  %v385 = vsel %vm257, %v193, %v321
  %v386 = vsel %vm258, %v194, %v322
  %v387 = vsel %vm259, %v195, %v323
  %v388 = vsel %vm260, %v196, %v324
  %v389 = vsel %vm261, %v197, %v325
  %v390 = vsel %vm262, %v198, %v326
  %v391 = vsel %vm263, %v199, %v327
  %v392 = vsel %vm264, %v200, %v328
  %v393 = vsel %vm265, %v201, %v329
  %v394 = vsel %vm266, %v202, %v330
  %v395 = vsel %vm267, %v203, %v331
  %v396 = vsel %vm268, %v204, %v332
  %v397 = vsel %vm269, %v205, %v333
  %v398 = vsel %vm270, %v206, %v334
  %vm399 = vcmask 64512
  %400 = vst.msk [vmem:[%s2] sm:$0xff] %vm399, %v335
  %401 = vst.msk [vmem:[%s2 + $0x8] sm:$0xff] %vm399, %v336
  %402 = vst.msk [vmem:[%s2 + $0x10] sm:$0xff] %vm399, %v337
  %403 = vst.msk [vmem:[%s2 + $0x18] sm:$0xff] %vm399, %v338
  %404 = vst.msk [vmem:[%s2 + $0x20] sm:$0xff] %vm399, %v339
  %405 = vst.msk [vmem:[%s2 + $0x28] sm:$0xff] %vm399, %v340
  %406 = vst.msk [vmem:[%s2 + $0x30] sm:$0xff] %vm399, %v341
  %407 = vst.msk [vmem:[%s2 + $0x38] sm:$0xff] %vm399, %v342
  %408 = vst.msk [vmem:[%s2 + $0x40] sm:$0xff] %vm399, %v343
  %409 = vst.msk [vmem:[%s2 + $0x48] sm:$0xff] %vm399, %v344
  %410 = vst.msk [vmem:[%s2 + $0x50] sm:$0xff] %vm399, %v345
  %411 = vst.msk [vmem:[%s2 + $0x58] sm:$0xff] %vm399, %v346
  %412 = vst.msk [vmem:[%s2 + $0x60] sm:$0xff] %vm399, %v347
  %413 = vst.msk [vmem:[%s2 + $0x68] sm:$0xff] %vm399, %v348
  %414 = vst.msk [vmem:[%s2 + $0x70] sm:$0xff] %vm399, %v349
  %415 = vst.msk [vmem:[%s2 + $0x78] sm:$0xff] %vm399, %v350
  %416 = vst.msk [vmem:[%s2 + $0x80] sm:$0xff] %vm399, %v351
  %417 = vst.msk [vmem:[%s2 + $0x88] sm:$0xff] %vm399, %v352
  %418 = vst.msk [vmem:[%s2 + $0x90] sm:$0xff] %vm399, %v353
  %419 = vst.msk [vmem:[%s2 + $0x98] sm:$0xff] %vm399, %v354
  %420 = vst.msk [vmem:[%s2 + $0xa0] sm:$0xff] %vm399, %v355
  %421 = vst.msk [vmem:[%s2 + $0xa8] sm:$0xff] %vm399, %v356
  %422 = vst.msk [vmem:[%s2 + $0xb0] sm:$0xff] %vm399, %v357
  %423 = vst.msk [vmem:[%s2 + $0xb8] sm:$0xff] %vm399, %v358
  %424 = vst.msk [vmem:[%s2 + $0xc0] sm:$0xff] %vm399, %v359
  %425 = vst.msk [vmem:[%s2 + $0xc8] sm:$0xff] %vm399, %v360
  %426 = vst.msk [vmem:[%s2 + $0xd0] sm:$0xff] %vm399, %v361
  %427 = vst.msk [vmem:[%s2 + $0xd8] sm:$0xff] %vm399, %v362
  %428 = vst.msk [vmem:[%s2 + $0xe0] sm:$0xff] %vm399, %v363
  %429 = vst.msk [vmem:[%s2 + $0xe8] sm:$0xff] %vm399, %v364
  %430 = vst.msk [vmem:[%s2 + $0xf0] sm:$0xff] %vm399, %v365
  %431 = vst.msk [vmem:[%s2 + $0xf8] sm:$0xff] %vm399, %v366
  %432 = vst.msk [vmem:[%s2 + $0x100] sm:$0xff] %vm399, %v367
  %433 = vst.msk [vmem:[%s2 + $0x108] sm:$0xff] %vm399, %v368
  %434 = vst.msk [vmem:[%s2 + $0x110] sm:$0xff] %vm399, %v369
  %435 = vst.msk [vmem:[%s2 + $0x118] sm:$0xff] %vm399, %v370
  %436 = vst.msk [vmem:[%s2 + $0x120] sm:$0xff] %vm399, %v371
  %437 = vst.msk [vmem:[%s2 + $0x128] sm:$0xff] %vm399, %v372
  %438 = vst.msk [vmem:[%s2 + $0x130] sm:$0xff] %vm399, %v373
  %439 = vst.msk [vmem:[%s2 + $0x138] sm:$0xff] %vm399, %v374
  %440 = vst.msk [vmem:[%s2 + $0x140] sm:$0xff] %vm399, %v375
  %441 = vst.msk [vmem:[%s2 + $0x148] sm:$0xff] %vm399, %v376
  %442 = vst.msk [vmem:[%s2 + $0x150] sm:$0xff] %vm399, %v377
  %443 = vst.msk [vmem:[%s2 + $0x158] sm:$0xff] %vm399, %v378
  %444 = vst.msk [vmem:[%s2 + $0x160] sm:$0xff] %vm399, %v379
  %445 = vst.msk [vmem:[%s2 + $0x168] sm:$0xff] %vm399, %v380
  %446 = vst.msk [vmem:[%s2 + $0x170] sm:$0xff] %vm399, %v381
  %447 = vst.msk [vmem:[%s2 + $0x178] sm:$0xff] %vm399, %v382
  %448 = vst.msk [vmem:[%s2 + $0x180] sm:$0xff] %vm399, %v383
  %449 = vst.msk [vmem:[%s2 + $0x188] sm:$0xff] %vm399, %v384
  %450 = vst.msk [vmem:[%s2 + $0x190] sm:$0xff] %vm399, %v385
  %451 = vst.msk [vmem:[%s2 + $0x198] sm:$0xff] %vm399, %v386
  %452 = vst.msk [vmem:[%s2 + $0x1a0] sm:$0xff] %vm399, %v387
  %453 = vst.msk [vmem:[%s2 + $0x1a8] sm:$0xff] %vm399, %v388
  %454 = vst.msk [vmem:[%s2 + $0x1b0] sm:$0xff] %vm399, %v389
  %455 = vst.msk [vmem:[%s2 + $0x1b8] sm:$0xff] %vm399, %v390
  %456 = vst.msk [vmem:[%s2 + $0x1c0] sm:$0xff] %vm399, %v391
  %457 = vst.msk [vmem:[%s2 + $0x1c8] sm:$0xff] %vm399, %v392
  %458 = vst.msk [vmem:[%s2 + $0x1d0] sm:$0xff] %vm399, %v393
  %459 = vst.msk [vmem:[%s2 + $0x1d8] sm:$0xff] %vm399, %v394
  %460 = vst.msk [vmem:[%s2 + $0x1e0] sm:$0xff] %vm399, %v395
  %461 = vst.msk [vmem:[%s2 + $0x1e8] sm:$0xff] %vm399, %v396
  %462 = vst.msk [vmem:[%s2 + $0x1f0] sm:$0xff] %vm399, %v397
  %463 = vst.msk [vmem:[%s2 + $0x1f8] sm:$0xff] %vm399, %v398
  // Predicated region
  $region10: #{convolution_set.11} parent=0 // pred_check
    _
  $region11: #{convolution_set.11} parent=0 // pred_check_branch
    %465 = sbr.rel (0) target = $region13
  $region12: #{convolution_set.11} parent=0 // pred_region
    _
  $region13: #{convolution_set.11} parent=0 // pred_fallthru
    _
  // Predicated region
  $region14: #{convolution_set.11} parent=0 // pred_check
    _
  $region15: #{convolution_set.11} parent=0 // pred_check_branch
    %467 = sbr.rel (0) target = $region17
  $region16: #{convolution_set.11} parent=0 // pred_region
    _
  $region17: #{convolution_set.11} parent=0 // pred_fallthru
    _

// kernel: convolution_set.12
$region0: #{convolution_set.12}
  #allocation0 [shape = 'u32[]', space=smem, size = 0x4, offset = 0x4, fixed_abs, tag = 'smem constant byte address 0x4 - core index']
  #allocation1 [shape = 'u32[72,128]{1,0:T(1,128)}', space=vmem, size = 0x9000, scoped, tag = 'internal scratch']
  %s0 = inlined_call_operand.vmem [shape: f32[2,18,18,8], index: 0, kind: input, shape index: {}, may-alias: {0,1,2}]
  %s1 = inlined_call_operand.vmem [shape: f32[2,18,18,8], index: 1, kind: input, shape index: {}, may-alias: {0,1,2}]
  %s2 = inlined_call_operand.vmem [shape: f32[2,18,18,8], index: 2, kind: input, shape index: {}, may-alias: {0,1,2}]
  %s3 = inlined_call_operand.vmem [shape: f32[3,3,8,4], index: 3, kind: input, shape index: {}]
  %s4 = inlined_call_operand.vmem [shape: f32[2,16,16,4], index: 4, kind: output, shape index: {0}]
  %s5 = inlined_call_operand.vmem [shape: f32[2,16,2,4], index: 5, kind: output, shape index: {1}]
  %6 = xla_tuple %s4, %s5
  %s7 = sld [smem:[#allocation0]]
  $region57: #{convolution_set.12} parent=0
    _
  %s9 = ssub.s32 1, %s7
  %s10 = scalar_select 0, %s9, %s7
  loop: start=0, step=1, limit=34
  $region2: #{convolution_set.12} parent=0 // loop_pre_header
    _
  $region3: #{convolution_set.12} parent=0 // loop_header
    %s12 = sphi 0, %s16
    %p13 = scmp.ge.s32.totalorder %s12, 34
    %s19 = sphi 0, %s31
    %s20 = sphi 0, %s27
    %s21 = sphi 0, %s19
    %s22 = sphi 0, %s20
    %s23 = sphi 0, %s21
    %s24 = sphi 0, %s22
    %s36 = sphi 0, %s38
    %s39 = sphi 0, %s36
    %s40 = sphi 0, %s39
    %s56 = sphi 0, %s40
    %s66 = sphi 0, %s68
    %s69 = sphi 0, %s66
    %s70 = sphi 0, %s69
    %s86 = sphi 0, %s70
    %s96 = sphi 0, %s98
    %s99 = sphi 0, %s96
    %s100 = sphi 0, %s99
    %s116 = sphi 0, %s100
    %s120 = sphi 0, %s120
    %s122 = sphi 0, %s120
    %s123 = sphi 0, %s122
    %s137 = sphi 0, %s123
    %s145 = sphi 0, %s147
    %s148 = sphi 0, %s145
    %s149 = sphi 0, %s148
    %s165 = sphi 0, %s149
    %s173 = sphi 0, %s175
    %s176 = sphi 0, %s173
    %s177 = sphi 0, %s176
    %s193 = sphi 0, %s177
  $region4: #{convolution_set.12} parent=0 // loop_header_branch
    %15 = sbr.rel (%p13) target = $region8
  $region5: #{convolution_set.12} parent=0 // loop_body
    %s17 = ssub.s32 %s12, 1
    %s18 = ssub.s32 %s12, 2
    %s25 = sadd.s32 1, %s20
    %p26 = scmp.ge.s32.totalorder %s25, 16
    %s27 = scalar_select %p26, 0, %s25
    %s28 = sadd.s32 1, %s19
    %s29 = scalar_select %p26, %s28, %s19
    %p30 = scmp.ge.s32.totalorder %s29, 2
    %s31 = scalar_select %p30, 0, %s29
    %s32 = ssub.s32 %s19, %s31
    %s33 = ssub.s32 %s20, %s27
    %s34 = sor.u32 %s32, %s33
    %p35 = scmp.eq.s32.totalorder %s34, 0
    %s37 = sadd.s32 %s36, 1
    %s38 = scalar_select %p35, %s36, %s37
    %p41 = pneg %p35
    %p42 = scmp.eq.s32.totalorder %s12, 31
    %p43 = por %p41, %p42
    %p44 = scmp.ne.s32.totalorder %s36, %s39
    %p45 = scmp.eq.s32.totalorder %s12, 0
    %p46 = por %p44, %p45
    %p47 = scmp.ne.s32.totalorder %s36, %s39
    %p48 = scmp.eq.s32.totalorder %s17, 31
    %p49 = por %p47, %p48
    %p50 = scmp.ne.s32.totalorder %s39, %s40
    %p51 = scmp.eq.s32.totalorder %s17, 0
    %p52 = por %p50, %p51
    %p53 = scmp.ne.s32.totalorder %s39, %s40
    %p54 = scmp.eq.s32.totalorder %s18, 31
    %p55 = por %p53, %p54
    %p57 = scmp.ne.s32.totalorder %s40, %s56
    %p58 = scmp.eq.s32.totalorder %s18, 0
    %p59 = por %p57, %p58
    %s60 = sadd.s32 %s20, 1
    %s61 = sadd.s32 %s27, 1
    %s62 = ssub.s32 %s19, %s31
    %s63 = ssub.s32 %s60, %s61
    %s64 = sor.u32 %s62, %s63
    %p65 = scmp.eq.s32.totalorder %s64, 0
    %s67 = sadd.s32 %s66, 1
    %s68 = scalar_select %p65, %s66, %s67
    %p71 = pneg %p65
    %p72 = scmp.eq.s32.totalorder %s12, 31
    %p73 = por %p71, %p72
    %p74 = scmp.ne.s32.totalorder %s66, %s69
    %p75 = scmp.eq.s32.totalorder %s12, 0
    %p76 = por %p74, %p75
    %p77 = scmp.ne.s32.totalorder %s66, %s69
    %p78 = scmp.eq.s32.totalorder %s17, 31
    %p79 = por %p77, %p78
    %p80 = scmp.ne.s32.totalorder %s69, %s70
    %p81 = scmp.eq.s32.totalorder %s17, 0
    %p82 = por %p80, %p81
    %p83 = scmp.ne.s32.totalorder %s69, %s70
    %p84 = scmp.eq.s32.totalorder %s18, 31
    %p85 = por %p83, %p84
    %p87 = scmp.ne.s32.totalorder %s70, %s86
    %p88 = scmp.eq.s32.totalorder %s18, 0
    %p89 = por %p87, %p88
    %s90 = sadd.s32 %s20, 2
    %s91 = sadd.s32 %s27, 2
    %s92 = ssub.s32 %s19, %s31
    %s93 = ssub.s32 %s90, %s91
    %s94 = sor.u32 %s92, %s93
    %p95 = scmp.eq.s32.totalorder %s94, 0
    %s97 = sadd.s32 %s96, 1
    %s98 = scalar_select %p95, %s96, %s97
    %p101 = pneg %p95
    %p102 = scmp.eq.s32.totalorder %s12, 31
    %p103 = por %p101, %p102
    %p104 = scmp.ne.s32.totalorder %s96, %s99
    %p105 = scmp.eq.s32.totalorder %s12, 0
    %p106 = por %p104, %p105
    %p107 = scmp.ne.s32.totalorder %s96, %s99
    %p108 = scmp.eq.s32.totalorder %s17, 31
    %p109 = por %p107, %p108
    %p110 = scmp.ne.s32.totalorder %s99, %s100
    %p111 = scmp.eq.s32.totalorder %s17, 0
    %p112 = por %p110, %p111
    %p113 = scmp.ne.s32.totalorder %s99, %s100
    %p114 = scmp.eq.s32.totalorder %s18, 31
    %p115 = por %p113, %p114
    %p117 = scmp.ne.s32.totalorder %s100, %s116
    %p118 = scmp.eq.s32.totalorder %s18, 0
    %p119 = por %p117, %p118
    %s121 = sadd.s32 %s120, 1
    %p124 = scmp.eq.s32.totalorder %s12, 31
    %p125 = scmp.ne.s32.totalorder %s120, %s122
    %p126 = scmp.eq.s32.totalorder %s12, 0
    %p127 = por %p125, %p126
    %p128 = scmp.ne.s32.totalorder %s120, %s122
    %p129 = scmp.eq.s32.totalorder %s17, 31
    %p130 = por %p128, %p129
    %p131 = scmp.ne.s32.totalorder %s122, %s123
    %p132 = scmp.eq.s32.totalorder %s17, 0
    %p133 = por %p131, %p132
    %p134 = scmp.ne.s32.totalorder %s122, %s123
    %p135 = scmp.eq.s32.totalorder %s18, 31
    %p136 = por %p134, %p135
    %p138 = scmp.ne.s32.totalorder %s123, %s137
    %p139 = scmp.eq.s32.totalorder %s18, 0
    %p140 = por %p138, %p139
    %s141 = ssub.s32 %s19, %s31
    %s142 = ssub.s32 %s20, %s27
    %s143 = sor.u32 %s141, %s142
    %p144 = scmp.eq.s32.totalorder %s143, 0
    %s146 = sadd.s32 %s145, 1
    %s147 = scalar_select %p144, %s145, %s146
    %p150 = pneg %p144
    %p151 = scmp.eq.s32.totalorder %s12, 31
    %p152 = por %p150, %p151
    %p153 = scmp.ne.s32.totalorder %s145, %s148
    %p154 = scmp.eq.s32.totalorder %s12, 0
    %p155 = por %p153, %p154
    %p156 = scmp.ne.s32.totalorder %s145, %s148
    %p157 = scmp.eq.s32.totalorder %s17, 31
    %p158 = por %p156, %p157
    %p159 = scmp.ne.s32.totalorder %s148, %s149
    %p160 = scmp.eq.s32.totalorder %s17, 0
    %p161 = por %p159, %p160
    %p162 = scmp.ne.s32.totalorder %s148, %s149
    %p163 = scmp.eq.s32.totalorder %s18, 31
    %p164 = por %p162, %p163
    %p166 = scmp.ne.s32.totalorder %s149, %s165
    %p167 = scmp.eq.s32.totalorder %s18, 0
    %p168 = por %p166, %p167
    %s169 = ssub.s32 %s19, %s31
    %s170 = ssub.s32 %s20, %s27
    %s171 = sor.u32 %s169, %s170
    %p172 = scmp.eq.s32.totalorder %s171, 0
    %s174 = sadd.s32 %s173, 1
    %s175 = scalar_select %p172, %s173, %s174
    %p178 = pneg %p172
    %p179 = scmp.eq.s32.totalorder %s12, 31
    %p180 = por %p178, %p179
    %p181 = scmp.ne.s32.totalorder %s173, %s176
    %p182 = scmp.eq.s32.totalorder %s12, 0
    %p183 = por %p181, %p182
    %p184 = scmp.ne.s32.totalorder %s173, %s176
    %p185 = scmp.eq.s32.totalorder %s17, 31
    %p186 = por %p184, %p185
    %p187 = scmp.ne.s32.totalorder %s176, %s177
    %p188 = scmp.eq.s32.totalorder %s17, 0
    %p189 = por %p187, %p188
    %p190 = scmp.ne.s32.totalorder %s176, %s177
    %p191 = scmp.eq.s32.totalorder %s18, 31
    %p192 = por %p190, %p191
    %p194 = scmp.ne.s32.totalorder %s177, %s193
    %p195 = scmp.eq.s32.totalorder %s18, 0
    %p196 = por %p194, %p195
    %p197 = scmp.le.s32.totalorder 1, %s12
    %p198 = scmp.lt.s32.totalorder %s12, 33
    %p199 = pnand %p197, %p198
    %p200 = pneg %p199
    // Predicated region
    $region9: #{convolution_set.12} parent=5 // pred_check
      _
    $region10: #{convolution_set.12} parent=5 // pred_check_branch
      %202 = sbr.rel (%p199) target = $region12
    $region11: #{convolution_set.12} parent=5 // pred_region
      %s203 = ssub.s32 %s12, 1
      // Predicated region
      $region13: #{convolution_set.12} parent=11 // pred_check
        %p204 = pneg %p133
      $region14: #{convolution_set.12} parent=11 // pred_check_branch
        %206 = sbr.rel (%p204) target = $region16
      $region15: #{convolution_set.12} parent=11 // pred_region
        _
      $region16: #{convolution_set.12} parent=11 // pred_fallthru
        _
    $region12: #{convolution_set.12} parent=5 // pred_fallthru
      _
    %p207 = scmp.lt.s32.totalorder %s12, 32
    // Predicated region
    $region17: #{convolution_set.12} parent=5 // pred_check
      %p208 = pneg %p207
    $region18: #{convolution_set.12} parent=5 // pred_check_branch
      %210 = sbr.rel (%p208) target = $region20
    $region19: #{convolution_set.12} parent=5 // pred_region
      // Predicated region
      $region21: #{convolution_set.12} parent=19 // pred_check
        %p211 = pneg %p46
      $region22: #{convolution_set.12} parent=19 // pred_check_branch
        %213 = sbr.rel (%p211) target = $region24
      $region23: #{convolution_set.12} parent=19 // pred_region
        %p214 = scmp.lt.s32.totalorder %s19, 1
        %s215 = scalar_select %p214, %s19, 1
        %p216 = scmp.lt.s32.totalorder %s20, 17
        %s217 = scalar_select %p216, %s20, 17
        %s218 = smul.addr %s217, 3
        %s219 = smul.addr %s215, 54
        %s220 = sadd.s32 %s218, %s219
        %s221 = smul.addr %s220, 8
        %s222 = scalar_lea.vmem %s0, %s221
      $region24: #{convolution_set.12} parent=19 // pred_fallthru
        _
      // Predicated region
      $region25: #{convolution_set.12} parent=19 // pred_check
        %p223 = pneg %p76
      $region26: #{convolution_set.12} parent=19 // pred_check_branch
        %225 = sbr.rel (%p223) target = $region28
      $region27: #{convolution_set.12} parent=19 // pred_region
        %s226 = sadd.s32 %s20, 1
        %p227 = scmp.lt.s32.totalorder %s19, 1
        %s228 = scalar_select %p227, %s19, 1
        %p229 = scmp.lt.s32.totalorder %s226, 17
        %s230 = scalar_select %p229, %s226, 17
        %s231 = smul.addr %s230, 3
        %s232 = smul.addr %s228, 54
        %s233 = sadd.s32 %s231, %s232
        %s234 = smul.addr %s233, 8
        %s235 = scalar_lea.vmem %s1, %s234
        %s236 = sadd.s32 %s20, 1
      $region28: #{convolution_set.12} parent=19 // pred_fallthru
        _
      // Predicated region
      $region29: #{convolution_set.12} parent=19 // pred_check
        %p237 = pneg %p106
      $region30: #{convolution_set.12} parent=19 // pred_check_branch
        %239 = sbr.rel (%p237) target = $region32
      $region31: #{convolution_set.12} parent=19 // pred_region
        %s240 = sadd.s32 %s20, 2
        %p241 = scmp.lt.s32.totalorder %s19, 1
        %s242 = scalar_select %p241, %s19, 1
        %p243 = scmp.lt.s32.totalorder %s240, 17
        %s244 = scalar_select %p243, %s240, 17
        %s245 = smul.addr %s244, 3
        %s246 = smul.addr %s242, 54
        %s247 = sadd.s32 %s245, %s246
        %s248 = smul.addr %s247, 8
        %s249 = scalar_lea.vmem %s2, %s248
        %s250 = sadd.s32 %s20, 2
      $region32: #{convolution_set.12} parent=19 // pred_fallthru
        _
    $region20: #{convolution_set.12} parent=5 // pred_fallthru
      _
    %p251 = scmp.le.s32.totalorder 1, %s12
    %p252 = scmp.lt.s32.totalorder %s12, 33
    %p253 = pnand %p251, %p252
    %p254 = pneg %p253
    // Predicated region
    $region33: #{convolution_set.12} parent=5 // pred_check
      _
    $region34: #{convolution_set.12} parent=5 // pred_check_branch
      %256 = sbr.rel (%p253) target = $region36
    $region35: #{convolution_set.12} parent=5 // pred_region
      %s257 = ssub.s32 %s12, 1
      %p258 = scmp.lt.s32.totalorder %s21, 1
      %s259 = scalar_select %p258, %s21, 1
      %p260 = scmp.lt.s32.totalorder %s22, 17
      %s261 = scalar_select %p260, %s22, 17
      %s262 = smul.addr %s261, 3
      %s263 = smul.addr %s259, 54
      %s264 = sadd.s32 %s262, %s263
      %s265 = smul.addr %s264, 8
      %s266 = scalar_lea.vmem %s0, %s265
      %p267 = pneg %p52
      %p268 = pneg %p49
      %s269 = sadd.s32 %s22, 1
      %p270 = scmp.lt.s32.totalorder %s21, 1
      %s271 = scalar_select %p270, %s21, 1
      %p272 = scmp.lt.s32.totalorder %s269, 17
      %s273 = scalar_select %p272, %s269, 17
      %s274 = smul.addr %s273, 3
      %s275 = smul.addr %s271, 54
      %s276 = sadd.s32 %s274, %s275
      %s277 = smul.addr %s276, 8
      %s278 = scalar_lea.vmem %s1, %s277
      %p279 = pneg %p82
      %p280 = pneg %p79
      %s281 = sadd.s32 %s22, 2
      %p282 = scmp.lt.s32.totalorder %s21, 1
      %s283 = scalar_select %p282, %s21, 1
      %p284 = scmp.lt.s32.totalorder %s281, 17
      %s285 = scalar_select %p284, %s281, 17
      %s286 = smul.addr %s285, 3
      %s287 = smul.addr %s283, 54
      %s288 = sadd.s32 %s286, %s287
      %s289 = smul.addr %s288, 8
      %s290 = scalar_lea.vmem %s2, %s289
      %p291 = pneg %p112
      %p292 = pneg %p109
      %p293 = pneg %p133
      %p294 = pneg %p130
      %p295 = pneg %p161
      %p296 = pneg %p158
      %p297 = scmp.lt.s32.totalorder %s21, 1
      %s298 = scalar_select %p297, %s21, 1
      %p299 = scmp.lt.s32.totalorder %s22, 15
      %s300 = scalar_select %p299, %s22, 15
      %s301 = smul.addr %s300, 2
      %s302 = smul.addr %s298, 32
      %s303 = sadd.s32 %s301, %s302
      %s304 = smul.addr %s303, 8
      %s305 = scalar_lea.vmem %s4, %s304
      %p306 = pneg %p189
      %p307 = pneg %p186
      %p308 = scmp.lt.s32.totalorder %s21, 1
      %s309 = scalar_select %p308, %s21, 1
      %p310 = scmp.lt.s32.totalorder %s22, 15
      %s311 = scalar_select %p310, %s22, 15
      %s312 = smul.addr %s309, 16
      %s313 = sadd.s32 %s311, %s312
      %s314 = smul.addr %s313, 2
      %s315 = scalar_lea.vmem %s5, %s314
      %p316 = scmp.lt.s32.totalorder %s21, 1
      %s317 = scalar_select %p316, %s21, 1
      %p318 = scmp.lt.s32.totalorder %s22, 17
      %s319 = scalar_select %p318, %s22, 17
      %s320 = smul.addr %s319, 3
      %s321 = smul.addr %s317, 54
      %s322 = sadd.s32 %s320, %s321
      %s323 = smul.addr %s322, 8
      %s324 = scalar_lea.vmem %s0, %s323
      %s325 = sadd.s32 %s22, 1
      %p326 = scmp.lt.s32.totalorder %s21, 1
      %s327 = scalar_select %p326, %s21, 1
      %p328 = scmp.lt.s32.totalorder %s325, 17
      %s329 = scalar_select %p328, %s325, 17
      %s330 = smul.addr %s329, 3
      %s331 = smul.addr %s327, 54
      %s332 = sadd.s32 %s330, %s331
      %s333 = smul.addr %s332, 8
      %s334 = scalar_lea.vmem %s1, %s333
      %s335 = sadd.s32 %s22, 1
      %s336 = sadd.s32 %s22, 2
      %p337 = scmp.lt.s32.totalorder %s21, 1
      %s338 = scalar_select %p337, %s21, 1
      %p339 = scmp.lt.s32.totalorder %s336, 17
      %s340 = scalar_select %p339, %s336, 17
      %s341 = smul.addr %s340, 3
      %s342 = smul.addr %s338, 54
      %s343 = sadd.s32 %s341, %s342
      %s344 = smul.addr %s343, 8
      %s345 = scalar_lea.vmem %s2, %s344
      %s346 = sadd.s32 %s22, 2
      %p347 = scmp.lt.s32.totalorder %s21, 1
      %s348 = scalar_select %p347, %s21, 1
      %p349 = scmp.lt.s32.totalorder %s22, 15
      %s350 = scalar_select %p349, %s22, 15
      %s351 = smul.addr %s350, 2
      %s352 = smul.addr %s348, 32
      %s353 = sadd.s32 %s351, %s352
      %s354 = smul.addr %s353, 8
      %s355 = scalar_lea.vmem %s4, %s354
      %p356 = scmp.lt.s32.totalorder %s21, 1
      %s357 = scalar_select %p356, %s21, 1
      %p358 = scmp.lt.s32.totalorder %s22, 15
      %s359 = scalar_select %p358, %s22, 15
      %s360 = smul.addr %s357, 16
      %s361 = sadd.s32 %s359, %s360
      %s362 = smul.addr %s361, 2
      %s363 = scalar_lea.vmem %s5, %s362
      %v364 = vld [vmem:[%s324] sm:$0xff]
      %v365 = vld [vmem:[%s324 + $0x8] sm:$0xff]
      %v366 = vld [vmem:[%s324 + $0x10] sm:$0x3]
      %v367 = vld [vmem:[%s3] sm:$0xff]
      %s368 = scalar_lea.vmem %s3, 8
      %v369 = vld [vmem:[%s368] sm:$0xff]
      %vm373 = vcmask 1046528
      %v374 = vrot.slane %v364, 1
      %v375 = vrot.slane %v365, 1
      %v376 = vsel %vm373, %v374, %v375
      %v377 = vrot.slane %v366, 1
      %v378 = vsel %vm373, %v375, %v377
      %vm379 = vcmask 64512
      %v380 = vsel %vm379, %v376, 0
      %v382 = vsel %vm379, %v378, 0
      %384 = vmatpush.msra.mxu0 0.0
      %385 = vmatpush.msra.mxu0 0.0
      %386 = vmatpush.msra.mxu0 0.0
      %387 = vmatpush.msra.mxu0 0.0
      %388 = vmatpush.msra.mxu0 0.0
      %389 = vmatpush.msra.mxu0 0.0
      %390 = vmatpush.msra.mxu0 0.0
      %391 = vmatpush.msra.mxu0 0.0
      %392 = vmatpush.msra.mxu0 0.0
      %393 = vmatpush.msra.mxu0 0.0
      %394 = vmatpush.msra.mxu0 0.0
      %395 = vmatpush.msra.mxu0 0.0
      %396 = vmatpush.msra.mxu0 0.0
      %397 = vmatpush.msra.mxu0 0.0
      %398 = vmatpush.msra.mxu0 0.0
      %399 = vmatpush.msra.mxu0 %v369
      %400 = vmatmul.f32.gmra.mxu0 %v380
      %v401 = vpop.f32.mrf.mxu0
      %v402 = vadd.f32 0.0, %v401
      %403 = vmatmul.f32.gmra.mxu0 %v382
      %v404 = vpop.f32.mrf.mxu0
      %v405 = vadd.f32 0.0, %v404
      %406 = vdwg.mxu0
      %v407 = vsel %vm379, %v364, 0
      %v409 = vsel %vm379, %v365, 0
      %411 = vmatpush.msra.mxu0 0.0
      %412 = vmatpush.msra.mxu0 0.0
      %413 = vmatpush.msra.mxu0 0.0
      %414 = vmatpush.msra.mxu0 0.0
      %415 = vmatpush.msra.mxu0 0.0
      %416 = vmatpush.msra.mxu0 0.0
      %417 = vmatpush.msra.mxu0 0.0
      %418 = vmatpush.msra.mxu0 0.0
      %419 = vmatpush.msra.mxu0 0.0
      %420 = vmatpush.msra.mxu0 0.0
      %421 = vmatpush.msra.mxu0 0.0
      %422 = vmatpush.msra.mxu0 0.0
      %423 = vmatpush.msra.mxu0 0.0
      %424 = vmatpush.msra.mxu0 0.0
      %425 = vmatpush.msra.mxu0 0.0
      %426 = vmatpush.msra.mxu0 %v367
      %427 = vmatmul.f32.gmra.mxu0 %v407
      %v428 = vpop.f32.mrf.mxu0
      %v429 = vadd.f32 %v402, %v428
      %430 = vmatmul.f32.gmra.mxu0 %v409
      %v431 = vpop.f32.mrf.mxu0
      %v432 = vadd.f32 %v405, %v431
      %433 = vdwg.mxu0
      %s434 = scalar_lea.vmem %s3, 16
      %v435 = vld [vmem:[%s434] sm:$0xff]
      %vm436 = vcmask 1045504
      %v437 = vrot.slane %v364, 2
      %v438 = vrot.slane %v365, 2
      %v439 = vsel %vm436, %v437, %v438
      %v440 = vrot.slane %v366, 2
      %v441 = vsel %vm436, %v438, %v440
      %v442 = vsel %vm379, %v439, 0
      %v444 = vsel %vm379, %v441, 0
      %446 = vmatpush.msra.mxu0 0.0
      %447 = vmatpush.msra.mxu0 0.0
      %448 = vmatpush.msra.mxu0 0.0
      %449 = vmatpush.msra.mxu0 0.0
      %450 = vmatpush.msra.mxu0 0.0
      %451 = vmatpush.msra.mxu0 0.0
      %452 = vmatpush.msra.mxu0 0.0
      %453 = vmatpush.msra.mxu0 0.0
      %454 = vmatpush.msra.mxu0 0.0
      %455 = vmatpush.msra.mxu0 0.0
      %456 = vmatpush.msra.mxu0 0.0
      %457 = vmatpush.msra.mxu0 0.0
      %458 = vmatpush.msra.mxu0 0.0
      %459 = vmatpush.msra.mxu0 0.0
      %460 = vmatpush.msra.mxu0 0.0
      %461 = vmatpush.msra.mxu0 %v435
      %462 = vmatmul.f32.gmra.mxu0 %v442
      %v463 = vpop.f32.mrf.mxu0
      %v464 = vadd.f32 0.0, %v463
      %465 = vmatmul.f32.gmra.mxu0 %v444
      %v466 = vpop.f32.mrf.mxu0
      %v467 = vadd.f32 0.0, %v466
      %468 = vdwg.mxu0
      %v469 = vadd.f32 %v429, %v464
      %v470 = vadd.f32 %v432, %v467
      %v471 = vld [vmem:[%s334] sm:$0xff]
      %v472 = vld [vmem:[%s334 + $0x8] sm:$0xff]
      %v473 = vld [vmem:[%s334 + $0x10] sm:$0x3]
      %s474 = scalar_lea.vmem %s3, 24
      %v475 = vld [vmem:[%s474] sm:$0xff]
      %v477 = vsel %vm379, %v471, 0
      %v480 = vsel %vm379, %v472, 0
      %482 = vmatpush.msra.mxu0 0.0
      %483 = vmatpush.msra.mxu0 0.0
      %484 = vmatpush.msra.mxu0 0.0
      %485 = vmatpush.msra.mxu0 0.0
      %486 = vmatpush.msra.mxu0 0.0
      %487 = vmatpush.msra.mxu0 0.0
      %488 = vmatpush.msra.mxu0 0.0
      %489 = vmatpush.msra.mxu0 0.0
      %490 = vmatpush.msra.mxu0 0.0
      %491 = vmatpush.msra.mxu0 0.0
      %492 = vmatpush.msra.mxu0 0.0
      %493 = vmatpush.msra.mxu0 0.0
      %494 = vmatpush.msra.mxu0 0.0
      %495 = vmatpush.msra.mxu0 0.0
      %496 = vmatpush.msra.mxu0 0.0
      %497 = vmatpush.msra.mxu0 %v475
      %498 = vmatmul.f32.gmra.mxu0 %v477
      %v499 = vpop.f32.mrf.mxu0
      %v500 = vadd.f32 0.0, %v499
      %501 = vmatmul.f32.gmra.mxu0 %v480
      %v502 = vpop.f32.mrf.mxu0
      %v503 = vadd.f32 0.0, %v502
      %504 = vdwg.mxu0
      %v505 = vadd.f32 %v469, %v500
      %v506 = vadd.f32 %v470, %v503
      %s507 = scalar_lea.vmem %s3, 32
      %v508 = vld [vmem:[%s507] sm:$0xff]
      %v510 = vrot.slane %v471, 1
      %v511 = vrot.slane %v472, 1
      %v512 = vsel %vm373, %v510, %v511
      %v513 = vrot.slane %v473, 1
      %v514 = vsel %vm373, %v511, %v513
      %v515 = vsel %vm379, %v512, 0
      %v517 = vsel %vm379, %v514, 0
      %519 = vmatpush.msra.mxu0 0.0
      %520 = vmatpush.msra.mxu0 0.0
      %521 = vmatpush.msra.mxu0 0.0
      %522 = vmatpush.msra.mxu0 0.0
      %523 = vmatpush.msra.mxu0 0.0
      %524 = vmatpush.msra.mxu0 0.0
      %525 = vmatpush.msra.mxu0 0.0
      %526 = vmatpush.msra.mxu0 0.0
      %527 = vmatpush.msra.mxu0 0.0
      %528 = vmatpush.msra.mxu0 0.0
      %529 = vmatpush.msra.mxu0 0.0
      %530 = vmatpush.msra.mxu0 0.0
      %531 = vmatpush.msra.mxu0 0.0
      %532 = vmatpush.msra.mxu0 0.0
      %533 = vmatpush.msra.mxu0 0.0
      %534 = vmatpush.msra.mxu0 %v508
      %535 = vmatmul.f32.gmra.mxu0 %v515
      %v536 = vpop.f32.mrf.mxu0
      %v537 = vadd.f32 0.0, %v536
      %538 = vmatmul.f32.gmra.mxu0 %v517
      %v539 = vpop.f32.mrf.mxu0
      %v540 = vadd.f32 0.0, %v539
      %541 = vdwg.mxu0
      %v542 = vadd.f32 %v505, %v537
      %v543 = vadd.f32 %v506, %v540
      %s544 = scalar_lea.vmem %s3, 40
      %v545 = vld [vmem:[%s544] sm:$0xff]
      %v546 = vrot.slane %v471, 2
      %v547 = vrot.slane %v472, 2
      %v548 = vsel %vm436, %v546, %v547
      %v549 = vrot.slane %v473, 2
      %v550 = vsel %vm436, %v547, %v549
      %v551 = vsel %vm379, %v548, 0
      %v553 = vsel %vm379, %v550, 0
      %555 = vmatpush.msra.mxu0 0.0
      %556 = vmatpush.msra.mxu0 0.0
      %557 = vmatpush.msra.mxu0 0.0
      %558 = vmatpush.msra.mxu0 0.0
      %559 = vmatpush.msra.mxu0 0.0
      %560 = vmatpush.msra.mxu0 0.0
      %561 = vmatpush.msra.mxu0 0.0
      %562 = vmatpush.msra.mxu0 0.0
      %563 = vmatpush.msra.mxu0 0.0
      %564 = vmatpush.msra.mxu0 0.0
      %565 = vmatpush.msra.mxu0 0.0
      %566 = vmatpush.msra.mxu0 0.0
      %567 = vmatpush.msra.mxu0 0.0
      %568 = vmatpush.msra.mxu0 0.0
      %569 = vmatpush.msra.mxu0 0.0
      %570 = vmatpush.msra.mxu0 %v545
      %571 = vmatmul.f32.gmra.mxu0 %v551
      %v572 = vpop.f32.mrf.mxu0
      %v573 = vadd.f32 0.0, %v572
      %574 = vmatmul.f32.gmra.mxu0 %v553
      %v575 = vpop.f32.mrf.mxu0
      %v576 = vadd.f32 0.0, %v575
      %577 = vdwg.mxu0
      %v578 = vadd.f32 %v542, %v573
      %v579 = vadd.f32 %v543, %v576
      %v580 = vld [vmem:[%s345] sm:$0xff]
      %v581 = vld [vmem:[%s345 + $0x8] sm:$0xff]
      %v582 = vld [vmem:[%s345 + $0x10] sm:$0x3]
      %s583 = scalar_lea.vmem %s3, 48
      %v584 = vld [vmem:[%s583] sm:$0xff]
      %v586 = vsel %vm379, %v580, 0
      %v589 = vsel %vm379, %v581, 0
      %591 = vmatpush.msra.mxu0 0.0
      %592 = vmatpush.msra.mxu0 0.0
      %593 = vmatpush.msra.mxu0 0.0
      %594 = vmatpush.msra.mxu0 0.0
      %595 = vmatpush.msra.mxu0 0.0
      %596 = vmatpush.msra.mxu0 0.0
      %597 = vmatpush.msra.mxu0 0.0
      %598 = vmatpush.msra.mxu0 0.0
      %599 = vmatpush.msra.mxu0 0.0
      %600 = vmatpush.msra.mxu0 0.0
      %601 = vmatpush.msra.mxu0 0.0
      %602 = vmatpush.msra.mxu0 0.0
      %603 = vmatpush.msra.mxu0 0.0
      %604 = vmatpush.msra.mxu0 0.0
      %605 = vmatpush.msra.mxu0 0.0
      %606 = vmatpush.msra.mxu0 %v584
      %607 = vmatmul.f32.gmra.mxu0 %v586
      %v608 = vpop.f32.mrf.mxu0
      %v609 = vadd.f32 0.0, %v608
      %610 = vmatmul.f32.gmra.mxu0 %v589
      %v611 = vpop.f32.mrf.mxu0
      %v612 = vadd.f32 0.0, %v611
      %613 = vdwg.mxu0
      %v614 = vadd.f32 %v578, %v609
      %v615 = vadd.f32 %v579, %v612
      %s616 = scalar_lea.vmem %s3, 56
      %v617 = vld [vmem:[%s616] sm:$0xff]
      %v619 = vrot.slane %v580, 1
      %v620 = vrot.slane %v581, 1
      %v621 = vsel %vm373, %v619, %v620
      %v622 = vrot.slane %v582, 1
      %v623 = vsel %vm373, %v620, %v622
      %v624 = vsel %vm379, %v621, 0
      %v626 = vsel %vm379, %v623, 0
      %628 = vmatpush.msra.mxu0 0.0
      %629 = vmatpush.msra.mxu0 0.0
      %630 = vmatpush.msra.mxu0 0.0
      %631 = vmatpush.msra.mxu0 0.0
      %632 = vmatpush.msra.mxu0 0.0
      %633 = vmatpush.msra.mxu0 0.0
      %634 = vmatpush.msra.mxu0 0.0
      %635 = vmatpush.msra.mxu0 0.0
      %636 = vmatpush.msra.mxu0 0.0
      %637 = vmatpush.msra.mxu0 0.0
      %638 = vmatpush.msra.mxu0 0.0
      %639 = vmatpush.msra.mxu0 0.0
      %640 = vmatpush.msra.mxu0 0.0
      %641 = vmatpush.msra.mxu0 0.0
      %642 = vmatpush.msra.mxu0 0.0
      %643 = vmatpush.msra.mxu0 %v617
      %644 = vmatmul.f32.gmra.mxu0 %v624
      %v645 = vpop.f32.mrf.mxu0
      %v646 = vadd.f32 0.0, %v645
      %647 = vmatmul.f32.gmra.mxu0 %v626
      %v648 = vpop.f32.mrf.mxu0
      %v649 = vadd.f32 0.0, %v648
      %650 = vdwg.mxu0
      %v651 = vadd.f32 %v614, %v646
      %v652 = vadd.f32 %v615, %v649
      %s653 = scalar_lea.vmem %s3, 64
      %v654 = vld [vmem:[%s653] sm:$0xff]
      %v655 = vrot.slane %v580, 2
      %v656 = vrot.slane %v581, 2
      %v657 = vsel %vm436, %v655, %v656
      %v658 = vrot.slane %v582, 2
      %v659 = vsel %vm436, %v656, %v658
      %v660 = vsel %vm379, %v657, 0
      %v662 = vsel %vm379, %v659, 0
      %664 = vmatpush.msra.mxu0 0.0
      %665 = vmatpush.msra.mxu0 0.0
      %666 = vmatpush.msra.mxu0 0.0
      %667 = vmatpush.msra.mxu0 0.0
      %668 = vmatpush.msra.mxu0 0.0
      %669 = vmatpush.msra.mxu0 0.0
      %670 = vmatpush.msra.mxu0 0.0
      %671 = vmatpush.msra.mxu0 0.0
      %672 = vmatpush.msra.mxu0 0.0
      %673 = vmatpush.msra.mxu0 0.0
      %674 = vmatpush.msra.mxu0 0.0
      %675 = vmatpush.msra.mxu0 0.0
      %676 = vmatpush.msra.mxu0 0.0
      %677 = vmatpush.msra.mxu0 0.0
      %678 = vmatpush.msra.mxu0 0.0
      %679 = vmatpush.msra.mxu0 %v654
      %680 = vmatmul.f32.gmra.mxu0 %v660
      %v681 = vpop.f32.mrf.mxu0
      %v682 = vadd.f32 0.0, %v681
      %683 = vmatmul.f32.gmra.mxu0 %v662
      %v684 = vpop.f32.mrf.mxu0
      %v685 = vadd.f32 0.0, %v684
      %686 = vdwg.mxu0
      %v687 = vadd.f32 %v651, %v682
      %v688 = vadd.f32 %v652, %v685
      %vm689 = vcmask 31744
      %690 = vst.msk [vmem:[%s355] sm:$0xff] %vm689, %v687
      %691 = vst.msk [vmem:[%s355 + $0x8] sm:$0xff] %vm689, %v688
      %v692 = vsel %vm689, %v687, 0.0
      %v693 = vsel %vm689, %v688, 0.0
      %v694 = vadd.f32 %v692, %v693
      %v695 = vrot.slane %v694, 4
      %v696 = vadd.f32 %v694, %v695
      %v697 = vrot.slane %v696, 2
      %v698 = vadd.f32 %v696, %v697
      %v699 = vrot.slane %v698, 1
      %v700 = vadd.f32 %v698, %v699
      %v701 = vmul.f32 %v687, %v687
      %v702 = vmul.f32 %v688, %v688
      %v703 = vsel %vm689, %v701, 0.0
      %v704 = vsel %vm689, %v702, 0.0
      %v705 = vadd.f32 %v703, %v704
      %v706 = vrot.slane %v705, 4
      %v707 = vadd.f32 %v705, %v706
      %v708 = vrot.slane %v707, 2
      %v709 = vadd.f32 %v707, %v708
      %v710 = vrot.slane %v709, 1
      %v711 = vadd.f32 %v709, %v710
      %vm712 = vcmask 1040384
      %v713 = vsel %vm712, %v700, %v711
      %vm714 = vcmask 25600
      %715 = vst.msk [vmem:[%s363] sm:$0x3] %vm714, %v713
      %p716 = scmp.lt.s32.totalorder %s21, 1
      %s717 = scalar_select %p716, %s21, 1
      %p718 = scmp.lt.s32.totalorder %s22, 15
      %s719 = scalar_select %p718, %s22, 15
      %s720 = smul.addr %s719, 2
      %s721 = smul.addr %s717, 32
      %s722 = sadd.s32 %s720, %s721
      %s723 = smul.addr %s722, 8
      %s724 = scalar_lea.vmem %s4, %s723
      %p725 = scmp.lt.s32.totalorder %s21, 1
      %s726 = scalar_select %p725, %s21, 1
      %p727 = scmp.lt.s32.totalorder %s22, 15
      %s728 = scalar_select %p727, %s22, 15
      %s729 = smul.addr %s726, 16
      %s730 = sadd.s32 %s728, %s729
      %s731 = smul.addr %s730, 2
      %s732 = scalar_lea.vmem %s5, %s731
      // Predicated region
      $region37: #{convolution_set.12} parent=35 // pred_check
        %p733 = pneg %p158
      $region38: #{convolution_set.12} parent=35 // pred_check_branch
        %735 = sbr.rel (%p733) target = $region40
      $region39: #{convolution_set.12} parent=35 // pred_region
        _
      $region40: #{convolution_set.12} parent=35 // pred_fallthru
        _
      // Predicated region
      $region41: #{convolution_set.12} parent=35 // pred_check
        %p736 = pneg %p186
      $region42: #{convolution_set.12} parent=35 // pred_check_branch
        %738 = sbr.rel (%p736) target = $region44
      $region43: #{convolution_set.12} parent=35 // pred_region
        _
      $region44: #{convolution_set.12} parent=35 // pred_fallthru
        _
    $region36: #{convolution_set.12} parent=5 // pred_fallthru
      _
    %p739 = scmp.le.s32.totalorder 2, %s12
    // Predicated region
    $region45: #{convolution_set.12} parent=5 // pred_check
      %p740 = pneg %p739
    $region46: #{convolution_set.12} parent=5 // pred_check_branch
      %742 = sbr.rel (%p740) target = $region48
    $region47: #{convolution_set.12} parent=5 // pred_region
      %s743 = ssub.s32 %s12, 2
      // Predicated region
      $region49: #{convolution_set.12} parent=47 // pred_check
        %p744 = pneg %p164
      $region50: #{convolution_set.12} parent=47 // pred_check_branch
        %746 = sbr.rel (%p744) target = $region52
      $region51: #{convolution_set.12} parent=47 // pred_region
        %p747 = scmp.lt.s32.totalorder %s23, 1
        %s748 = scalar_select %p747, %s23, 1
        %p749 = scmp.lt.s32.totalorder %s24, 15
        %s750 = scalar_select %p749, %s24, 15
        %s751 = smul.addr %s750, 2
        %s752 = smul.addr %s748, 32
        %s753 = sadd.s32 %s751, %s752
        %s754 = smul.addr %s753, 8
        %s755 = scalar_lea.vmem %s4, %s754
      $region52: #{convolution_set.12} parent=47 // pred_fallthru
        _
      // Predicated region
      $region53: #{convolution_set.12} parent=47 // pred_check
        %p756 = pneg %p192
      $region54: #{convolution_set.12} parent=47 // pred_check_branch
        %758 = sbr.rel (%p756) target = $region56
      $region55: #{convolution_set.12} parent=47 // pred_region
        %p759 = scmp.lt.s32.totalorder %s23, 1
        %s760 = scalar_select %p759, %s23, 1
        %p761 = scmp.lt.s32.totalorder %s24, 15
        %s762 = scalar_select %p761, %s24, 15
        %s763 = smul.addr %s760, 16
        %s764 = sadd.s32 %s762, %s763
        %s765 = smul.addr %s764, 2
        %s766 = scalar_lea.vmem %s5, %s765
      $region56: #{convolution_set.12} parent=47 // pred_fallthru
        _
    $region48: #{convolution_set.12} parent=5 // pred_fallthru
      _
  $region6: #{convolution_set.12} parent=0 // loop_footer
    %s16 = sadd.s32 1, %s12
  $region7: #{convolution_set.12} parent=0 // loop_footer_branch
    %11 = sbr.rel target = $region3
  $region8: #{convolution_set.12} parent=0 // loop_exit
    _

// kernel: convolution_set.10
$region0: #{convolution_set.10}
  #allocation0 [shape = 'u32[]', space=smem, size = 0x4, offset = 0x4, fixed_abs, tag = 'smem constant byte address 0x4 - core index']
  #allocation1 [shape = 'u32[72,128]{1,0:T(1,128)}', space=vmem, size = 0x9000, scoped, tag = 'internal scratch']
  #allocation2 [shape = 'f32[512,8]{1,0:T(8,128)}', space=vmem, size = 0x40000, scoped, tag = 'scratch operand']
  %s0 = inlined_call_operand.vmem [shape: f32[512,4], index: 0, kind: input, shape index: {}]
  %s1 = inlined_call_operand.vmem [shape: f32[4,8], index: 1, kind: input, shape index: {}]
  %s2 = inlined_call_operand.vmem [shape: f32[512,8], index: 2, kind: output, shape index: {0}]
  %s3 = inlined_call_operand.vmem [shape: f32[1,2,8], index: 3, kind: output, shape index: {1}]
  %4 = xla_tuple %s2, %s3
  %s5 = sld [smem:[#allocation0]]
  $region34: #{convolution_set.10} parent=0
    _
  %s7 = ssub.s32 1, %s5
  %s8 = scalar_select 0, %s7, %s5
  // Predicated region
  $region2: #{convolution_set.10} parent=0 // pred_check
    _
  $region3: #{convolution_set.10} parent=0 // pred_check_branch
    %10 = sbr.rel (0) target = $region5
  $region4: #{convolution_set.10} parent=0 // pred_region
    _
  $region5: #{convolution_set.10} parent=0 // pred_fallthru
    _
  // Predicated region
  $region6: #{convolution_set.10} parent=0 // pred_check
    _
  $region7: #{convolution_set.10} parent=0 // pred_check_branch
    %12 = sbr.rel (0) target = $region9
  $region8: #{convolution_set.10} parent=0 // pred_region
    _
  $region9: #{convolution_set.10} parent=0 // pred_fallthru
    _
  %p13 = scmp.eq.s32.totalorder 0, 0
  // Predicated region
  $region10: #{convolution_set.10} parent=0 // pred_check
    %p14 = pneg %p13
  $region11: #{convolution_set.10} parent=0 // pred_check_branch
    %16 = sbr.rel (%p14) target = $region13
  $region12: #{convolution_set.10} parent=0 // pred_region
    %vm17 = vcmask 64512
    %18 = vst.msk [vmem:[#allocation2] sm:$0xff] %vm17, 0.0
    %19 = vst.msk [vmem:[#allocation2 + $0x8] sm:$0xff] %vm17, 0.0
    %20 = vst.msk [vmem:[#allocation2 + $0x10] sm:$0xff] %vm17, 0.0
    %21 = vst.msk [vmem:[#allocation2 + $0x18] sm:$0xff] %vm17, 0.0
    %22 = vst.msk [vmem:[#allocation2 + $0x20] sm:$0xff] %vm17, 0.0
    %23 = vst.msk [vmem:[#allocation2 + $0x28] sm:$0xff] %vm17, 0.0
    %24 = vst.msk [vmem:[#allocation2 + $0x30] sm:$0xff] %vm17, 0.0
    %25 = vst.msk [vmem:[#allocation2 + $0x38] sm:$0xff] %vm17, 0.0
    %26 = vst.msk [vmem:[#allocation2 + $0x40] sm:$0xff] %vm17, 0.0
    %27 = vst.msk [vmem:[#allocation2 + $0x48] sm:$0xff] %vm17, 0.0
    %28 = vst.msk [vmem:[#allocation2 + $0x50] sm:$0xff] %vm17, 0.0
    %29 = vst.msk [vmem:[#allocation2 + $0x58] sm:$0xff] %vm17, 0.0
    %30 = vst.msk [vmem:[#allocation2 + $0x60] sm:$0xff] %vm17, 0.0
    %31 = vst.msk [vmem:[#allocation2 + $0x68] sm:$0xff] %vm17, 0.0
    %32 = vst.msk [vmem:[#allocation2 + $0x70] sm:$0xff] %vm17, 0.0
    %33 = vst.msk [vmem:[#allocation2 + $0x78] sm:$0xff] %vm17, 0.0
    %34 = vst.msk [vmem:[#allocation2 + $0x80] sm:$0xff] %vm17, 0.0
    %35 = vst.msk [vmem:[#allocation2 + $0x88] sm:$0xff] %vm17, 0.0
    %36 = vst.msk [vmem:[#allocation2 + $0x90] sm:$0xff] %vm17, 0.0
    %37 = vst.msk [vmem:[#allocation2 + $0x98] sm:$0xff] %vm17, 0.0
    %38 = vst.msk [vmem:[#allocation2 + $0xa0] sm:$0xff] %vm17, 0.0
    %39 = vst.msk [vmem:[#allocation2 + $0xa8] sm:$0xff] %vm17, 0.0
    %40 = vst.msk [vmem:[#allocation2 + $0xb0] sm:$0xff] %vm17, 0.0
    %41 = vst.msk [vmem:[#allocation2 + $0xb8] sm:$0xff] %vm17, 0.0
    %42 = vst.msk [vmem:[#allocation2 + $0xc0] sm:$0xff] %vm17, 0.0
    %43 = vst.msk [vmem:[#allocation2 + $0xc8] sm:$0xff] %vm17, 0.0
    %44 = vst.msk [vmem:[#allocation2 + $0xd0] sm:$0xff] %vm17, 0.0
    %45 = vst.msk [vmem:[#allocation2 + $0xd8] sm:$0xff] %vm17, 0.0
    %46 = vst.msk [vmem:[#allocation2 + $0xe0] sm:$0xff] %vm17, 0.0
    %47 = vst.msk [vmem:[#allocation2 + $0xe8] sm:$0xff] %vm17, 0.0
    %48 = vst.msk [vmem:[#allocation2 + $0xf0] sm:$0xff] %vm17, 0.0
    %49 = vst.msk [vmem:[#allocation2 + $0xf8] sm:$0xff] %vm17, 0.0
    %50 = vst.msk [vmem:[#allocation2 + $0x100] sm:$0xff] %vm17, 0.0
    %51 = vst.msk [vmem:[#allocation2 + $0x108] sm:$0xff] %vm17, 0.0
    %52 = vst.msk [vmem:[#allocation2 + $0x110] sm:$0xff] %vm17, 0.0
    %53 = vst.msk [vmem:[#allocation2 + $0x118] sm:$0xff] %vm17, 0.0
    %54 = vst.msk [vmem:[#allocation2 + $0x120] sm:$0xff] %vm17, 0.0
    %55 = vst.msk [vmem:[#allocation2 + $0x128] sm:$0xff] %vm17, 0.0
    %56 = vst.msk [vmem:[#allocation2 + $0x130] sm:$0xff] %vm17, 0.0
    %57 = vst.msk [vmem:[#allocation2 + $0x138] sm:$0xff] %vm17, 0.0
    %58 = vst.msk [vmem:[#allocation2 + $0x140] sm:$0xff] %vm17, 0.0
    %59 = vst.msk [vmem:[#allocation2 + $0x148] sm:$0xff] %vm17, 0.0
    %60 = vst.msk [vmem:[#allocation2 + $0x150] sm:$0xff] %vm17, 0.0
    %61 = vst.msk [vmem:[#allocation2 + $0x158] sm:$0xff] %vm17, 0.0
    %62 = vst.msk [vmem:[#allocation2 + $0x160] sm:$0xff] %vm17, 0.0
    %63 = vst.msk [vmem:[#allocation2 + $0x168] sm:$0xff] %vm17, 0.0
    %64 = vst.msk [vmem:[#allocation2 + $0x170] sm:$0xff] %vm17, 0.0
    %65 = vst.msk [vmem:[#allocation2 + $0x178] sm:$0xff] %vm17, 0.0
    %66 = vst.msk [vmem:[#allocation2 + $0x180] sm:$0xff] %vm17, 0.0
    %67 = vst.msk [vmem:[#allocation2 + $0x188] sm:$0xff] %vm17, 0.0
    %68 = vst.msk [vmem:[#allocation2 + $0x190] sm:$0xff] %vm17, 0.0
    %69 = vst.msk [vmem:[#allocation2 + $0x198] sm:$0xff] %vm17, 0.0
    %70 = vst.msk [vmem:[#allocation2 + $0x1a0] sm:$0xff] %vm17, 0.0
    %71 = vst.msk [vmem:[#allocation2 + $0x1a8] sm:$0xff] %vm17, 0.0
    %72 = vst.msk [vmem:[#allocation2 + $0x1b0] sm:$0xff] %vm17, 0.0
    %73 = vst.msk [vmem:[#allocation2 + $0x1b8] sm:$0xff] %vm17, 0.0
    %74 = vst.msk [vmem:[#allocation2 + $0x1c0] sm:$0xff] %vm17, 0.0
    %75 = vst.msk [vmem:[#allocation2 + $0x1c8] sm:$0xff] %vm17, 0.0
    %76 = vst.msk [vmem:[#allocation2 + $0x1d0] sm:$0xff] %vm17, 0.0
    %77 = vst.msk [vmem:[#allocation2 + $0x1d8] sm:$0xff] %vm17, 0.0
    %78 = vst.msk [vmem:[#allocation2 + $0x1e0] sm:$0xff] %vm17, 0.0
    %79 = vst.msk [vmem:[#allocation2 + $0x1e8] sm:$0xff] %vm17, 0.0
    %80 = vst.msk [vmem:[#allocation2 + $0x1f0] sm:$0xff] %vm17, 0.0
    %81 = vst.msk [vmem:[#allocation2 + $0x1f8] sm:$0xff] %vm17, 0.0
  $region13: #{convolution_set.10} parent=0 // pred_fallthru
    _
  %v82 = vld [vmem:[#allocation2] sm:$0xff]
  %v83 = vld [vmem:[#allocation2 + $0x8] sm:$0xff]
  %v84 = vld [vmem:[#allocation2 + $0x10] sm:$0xff]
  %v85 = vld [vmem:[#allocation2 + $0x18] sm:$0xff]
  %v86 = vld [vmem:[#allocation2 + $0x20] sm:$0xff]
  %v87 = vld [vmem:[#allocation2 + $0x28] sm:$0xff]
  %v88 = vld [vmem:[#allocation2 + $0x30] sm:$0xff]
  %v89 = vld [vmem:[#allocation2 + $0x38] sm:$0xff]
  %v90 = vld [vmem:[#allocation2 + $0x40] sm:$0xff]
  %v91 = vld [vmem:[#allocation2 + $0x48] sm:$0xff]
  %v92 = vld [vmem:[#allocation2 + $0x50] sm:$0xff]
  %v93 = vld [vmem:[#allocation2 + $0x58] sm:$0xff]
  %v94 = vld [vmem:[#allocation2 + $0x60] sm:$0xff]
  %v95 = vld [vmem:[#allocation2 + $0x68] sm:$0xff]
  %v96 = vld [vmem:[#allocation2 + $0x70] sm:$0xff]
  %v97 = vld [vmem:[#allocation2 + $0x78] sm:$0xff]
  %v98 = vld [vmem:[#allocation2 + $0x80] sm:$0xff]
  %v99 = vld [vmem:[#allocation2 + $0x88] sm:$0xff]
  %v100 = vld [vmem:[#allocation2 + $0x90] sm:$0xff]
  %v101 = vld [vmem:[#allocation2 + $0x98] sm:$0xff]
  %v102 = vld [vmem:[#allocation2 + $0xa0] sm:$0xff]
  %v103 = vld [vmem:[#allocation2 + $0xa8] sm:$0xff]
  %v104 = vld [vmem:[#allocation2 + $0xb0] sm:$0xff]
  %v105 = vld [vmem:[#allocation2 + $0xb8] sm:$0xff]
  %v106 = vld [vmem:[#allocation2 + $0xc0] sm:$0xff]
  %v107 = vld [vmem:[#allocation2 + $0xc8] sm:$0xff]
  %v108 = vld [vmem:[#allocation2 + $0xd0] sm:$0xff]
  %v109 = vld [vmem:[#allocation2 + $0xd8] sm:$0xff]
  %v110 = vld [vmem:[#allocation2 + $0xe0] sm:$0xff]
  %v111 = vld [vmem:[#allocation2 + $0xe8] sm:$0xff]
  %v112 = vld [vmem:[#allocation2 + $0xf0] sm:$0xff]
  %v113 = vld [vmem:[#allocation2 + $0xf8] sm:$0xff]
  %v114 = vld [vmem:[#allocation2 + $0x100] sm:$0xff]
  %v115 = vld [vmem:[#allocation2 + $0x108] sm:$0xff]
  %v116 = vld [vmem:[#allocation2 + $0x110] sm:$0xff]
  %v117 = vld [vmem:[#allocation2 + $0x118] sm:$0xff]
  %v118 = vld [vmem:[#allocation2 + $0x120] sm:$0xff]
  %v119 = vld [vmem:[#allocation2 + $0x128] sm:$0xff]
  %v120 = vld [vmem:[#allocation2 + $0x130] sm:$0xff]
  %v121 = vld [vmem:[#allocation2 + $0x138] sm:$0xff]
  %v122 = vld [vmem:[#allocation2 + $0x140] sm:$0xff]
  %v123 = vld [vmem:[#allocation2 + $0x148] sm:$0xff]
  %v124 = vld [vmem:[#allocation2 + $0x150] sm:$0xff]
  %v125 = vld [vmem:[#allocation2 + $0x158] sm:$0xff]
  %v126 = vld [vmem:[#allocation2 + $0x160] sm:$0xff]
  %v127 = vld [vmem:[#allocation2 + $0x168] sm:$0xff]
  %v128 = vld [vmem:[#allocation2 + $0x170] sm:$0xff]
  %v129 = vld [vmem:[#allocation2 + $0x178] sm:$0xff]
  %v130 = vld [vmem:[#allocation2 + $0x180] sm:$0xff]
  %v131 = vld [vmem:[#allocation2 + $0x188] sm:$0xff]
  %v132 = vld [vmem:[#allocation2 + $0x190] sm:$0xff]
  %v133 = vld [vmem:[#allocation2 + $0x198] sm:$0xff]
  %v134 = vld [vmem:[#allocation2 + $0x1a0] sm:$0xff]
  %v135 = vld [vmem:[#allocation2 + $0x1a8] sm:$0xff]
  %v136 = vld [vmem:[#allocation2 + $0x1b0] sm:$0xff]
  %v137 = vld [vmem:[#allocation2 + $0x1b8] sm:$0xff]
  %v138 = vld [vmem:[#allocation2 + $0x1c0] sm:$0xff]
  %v139 = vld [vmem:[#allocation2 + $0x1c8] sm:$0xff]
  %v140 = vld [vmem:[#allocation2 + $0x1d0] sm:$0xff]
  %v141 = vld [vmem:[#allocation2 + $0x1d8] sm:$0xff]
  %v142 = vld [vmem:[#allocation2 + $0x1e0] sm:$0xff]
  %v143 = vld [vmem:[#allocation2 + $0x1e8] sm:$0xff]
  %v144 = vld [vmem:[#allocation2 + $0x1f0] sm:$0xff]
  %v145 = vld [vmem:[#allocation2 + $0x1f8] sm:$0xff]
  %v146 = vld [vmem:[%s0] sm:$0xff]
  %v147 = vld [vmem:[%s0 + $0x8] sm:$0xff]
  %v148 = vld [vmem:[%s0 + $0x10] sm:$0xff]
  %v149 = vld [vmem:[%s0 + $0x18] sm:$0xff]
  %v150 = vld [vmem:[%s0 + $0x20] sm:$0xff]
  %v151 = vld [vmem:[%s0 + $0x28] sm:$0xff]
  %v152 = vld [vmem:[%s0 + $0x30] sm:$0xff]
  %v153 = vld [vmem:[%s0 + $0x38] sm:$0xff]
  %v154 = vld [vmem:[%s0 + $0x40] sm:$0xff]
  %v155 = vld [vmem:[%s0 + $0x48] sm:$0xff]
  %v156 = vld [vmem:[%s0 + $0x50] sm:$0xff]
  %v157 = vld [vmem:[%s0 + $0x58] sm:$0xff]
  %v158 = vld [vmem:[%s0 + $0x60] sm:$0xff]
  %v159 = vld [vmem:[%s0 + $0x68] sm:$0xff]
  %v160 = vld [vmem:[%s0 + $0x70] sm:$0xff]
  %v161 = vld [vmem:[%s0 + $0x78] sm:$0xff]
  %v162 = vld [vmem:[%s0 + $0x80] sm:$0xff]
  %v163 = vld [vmem:[%s0 + $0x88] sm:$0xff]
  %v164 = vld [vmem:[%s0 + $0x90] sm:$0xff]
  %v165 = vld [vmem:[%s0 + $0x98] sm:$0xff]
  %v166 = vld [vmem:[%s0 + $0xa0] sm:$0xff]
  %v167 = vld [vmem:[%s0 + $0xa8] sm:$0xff]
  %v168 = vld [vmem:[%s0 + $0xb0] sm:$0xff]
  %v169 = vld [vmem:[%s0 + $0xb8] sm:$0xff]
  %v170 = vld [vmem:[%s0 + $0xc0] sm:$0xff]
  %v171 = vld [vmem:[%s0 + $0xc8] sm:$0xff]
  %v172 = vld [vmem:[%s0 + $0xd0] sm:$0xff]
  %v173 = vld [vmem:[%s0 + $0xd8] sm:$0xff]
  %v174 = vld [vmem:[%s0 + $0xe0] sm:$0xff]
  %v175 = vld [vmem:[%s0 + $0xe8] sm:$0xff]
  %v176 = vld [vmem:[%s0 + $0xf0] sm:$0xff]
  %v177 = vld [vmem:[%s0 + $0xf8] sm:$0xff]
  %v178 = vld [vmem:[%s0 + $0x100] sm:$0xff]
  %v179 = vld [vmem:[%s0 + $0x108] sm:$0xff]
  %v180 = vld [vmem:[%s0 + $0x110] sm:$0xff]
  %v181 = vld [vmem:[%s0 + $0x118] sm:$0xff]
  %v182 = vld [vmem:[%s0 + $0x120] sm:$0xff]
  %v183 = vld [vmem:[%s0 + $0x128] sm:$0xff]
  %v184 = vld [vmem:[%s0 + $0x130] sm:$0xff]
  %v185 = vld [vmem:[%s0 + $0x138] sm:$0xff]
  %v186 = vld [vmem:[%s0 + $0x140] sm:$0xff]
  %v187 = vld [vmem:[%s0 + $0x148] sm:$0xff]
  %v188 = vld [vmem:[%s0 + $0x150] sm:$0xff]
  %v189 = vld [vmem:[%s0 + $0x158] sm:$0xff]
  %v190 = vld [vmem:[%s0 + $0x160] sm:$0xff]
  %v191 = vld [vmem:[%s0 + $0x168] sm:$0xff]
  %v192 = vld [vmem:[%s0 + $0x170] sm:$0xff]
  %v193 = vld [vmem:[%s0 + $0x178] sm:$0xff]
  %v194 = vld [vmem:[%s0 + $0x180] sm:$0xff]
  %v195 = vld [vmem:[%s0 + $0x188] sm:$0xff]
  %v196 = vld [vmem:[%s0 + $0x190] sm:$0xff]
  %v197 = vld [vmem:[%s0 + $0x198] sm:$0xff]
  %v198 = vld [vmem:[%s0 + $0x1a0] sm:$0xff]
  %v199 = vld [vmem:[%s0 + $0x1a8] sm:$0xff]
  %v200 = vld [vmem:[%s0 + $0x1b0] sm:$0xff]
  %v201 = vld [vmem:[%s0 + $0x1b8] sm:$0xff]
  %v202 = vld [vmem:[%s0 + $0x1c0] sm:$0xff]
  %v203 = vld [vmem:[%s0 + $0x1c8] sm:$0xff]
  %v204 = vld [vmem:[%s0 + $0x1d0] sm:$0xff]
  %v205 = vld [vmem:[%s0 + $0x1d8] sm:$0xff]
  %v206 = vld [vmem:[%s0 + $0x1e0] sm:$0xff]
  %v207 = vld [vmem:[%s0 + $0x1e8] sm:$0xff]
  %v208 = vld [vmem:[%s0 + $0x1f0] sm:$0xff]
  %v209 = vld [vmem:[%s0 + $0x1f8] sm:$0xff]
  %v210 = vld [vmem:[%s1] sm:$0xf]
  %vm211 = vcmask 31744
  %v213 = vsel %vm211, %v146, 0
  %v216 = vsel %vm211, %v147, 0
  %v219 = vsel %vm211, %v148, 0
  %v222 = vsel %vm211, %v149, 0
  %v225 = vsel %vm211, %v150, 0
  %v228 = vsel %vm211, %v151, 0
  %v231 = vsel %vm211, %v152, 0
  %v234 = vsel %vm211, %v153, 0
  %v237 = vsel %vm211, %v154, 0
  %v240 = vsel %vm211, %v155, 0
  %v243 = vsel %vm211, %v156, 0
  %v246 = vsel %vm211, %v157, 0
  %v249 = vsel %vm211, %v158, 0
  %v252 = vsel %vm211, %v159, 0
  %v255 = vsel %vm211, %v160, 0
  %v258 = vsel %vm211, %v161, 0
  %v261 = vsel %vm211, %v162, 0
  %v264 = vsel %vm211, %v163, 0
  %v267 = vsel %vm211, %v164, 0
  %v270 = vsel %vm211, %v165, 0
  %v273 = vsel %vm211, %v166, 0
  %v276 = vsel %vm211, %v167, 0
  %v279 = vsel %vm211, %v168, 0
  %v282 = vsel %vm211, %v169, 0
  %v285 = vsel %vm211, %v170, 0
  %v288 = vsel %vm211, %v171, 0
  %v291 = vsel %vm211, %v172, 0
  %v294 = vsel %vm211, %v173, 0
  %v297 = vsel %vm211, %v174, 0
  %v300 = vsel %vm211, %v175, 0
  %v303 = vsel %vm211, %v176, 0
  %v306 = vsel %vm211, %v177, 0
  %v309 = vsel %vm211, %v178, 0
  %v312 = vsel %vm211, %v179, 0
  %v315 = vsel %vm211, %v180, 0
  %v318 = vsel %vm211, %v181, 0
  %v321 = vsel %vm211, %v182, 0
  %v324 = vsel %vm211, %v183, 0
  %v327 = vsel %vm211, %v184, 0
  %v330 = vsel %vm211, %v185, 0
  %v333 = vsel %vm211, %v186, 0
  %v336 = vsel %vm211, %v187, 0
  %v339 = vsel %vm211, %v188, 0
  %v342 = vsel %vm211, %v189, 0
  %v345 = vsel %vm211, %v190, 0
  %v348 = vsel %vm211, %v191, 0
  %v351 = vsel %vm211, %v192, 0
  %v354 = vsel %vm211, %v193, 0
  %v357 = vsel %vm211, %v194, 0
  %v360 = vsel %vm211, %v195, 0
  %v363 = vsel %vm211, %v196, 0
  %v366 = vsel %vm211, %v197, 0
  %v369 = vsel %vm211, %v198, 0
  %v372 = vsel %vm211, %v199, 0
  %v375 = vsel %vm211, %v200, 0
  %v378 = vsel %vm211, %v201, 0
  %v381 = vsel %vm211, %v202, 0
  %v384 = vsel %vm211, %v203, 0
  %v387 = vsel %vm211, %v204, 0
  %v390 = vsel %vm211, %v205, 0
  %v393 = vsel %vm211, %v206, 0
  %v396 = vsel %vm211, %v207, 0
  %v399 = vsel %vm211, %v208, 0
  %v402 = vsel %vm211, %v209, 0
  %vm404 = vcmask 1043456
  %v406 = vsel %vm404, %v210, 0
  %408 = vmatpush.msra.mxu0 0.0
  %409 = vmatpush.msra.mxu0 0.0
  %410 = vmatpush.msra.mxu0 0.0
  %411 = vmatpush.msra.mxu0 0.0
  %412 = vmatpush.msra.mxu0 0.0
  %413 = vmatpush.msra.mxu0 0.0
  %414 = vmatpush.msra.mxu0 0.0
  %415 = vmatpush.msra.mxu0 0.0
  %416 = vmatpush.msra.mxu0 0.0
  %417 = vmatpush.msra.mxu0 0.0
  %418 = vmatpush.msra.mxu0 0.0
  %419 = vmatpush.msra.mxu0 0.0
  %420 = vmatpush.msra.mxu0 0.0
  %421 = vmatpush.msra.mxu0 0.0
  %422 = vmatpush.msra.mxu0 0.0
  %423 = vmatpush.msra.mxu0 %v406
  %424 = vmatmul.f32.gmra.mxu0 %v213
  %v425 = vpop.f32.mrf.mxu0
  %v426 = vadd.f32 0.0, %v425
  %427 = vmatmul.f32.gmra.mxu0 %v216
  %v428 = vpop.f32.mrf.mxu0
  %v429 = vadd.f32 0.0, %v428
  %430 = vmatmul.f32.gmra.mxu0 %v219
  %v431 = vpop.f32.mrf.mxu0
  %v432 = vadd.f32 0.0, %v431
  %433 = vmatmul.f32.gmra.mxu0 %v222
  %v434 = vpop.f32.mrf.mxu0
  %v435 = vadd.f32 0.0, %v434
  %436 = vmatmul.f32.gmra.mxu0 %v225
  %v437 = vpop.f32.mrf.mxu0
  %v438 = vadd.f32 0.0, %v437
  %439 = vmatmul.f32.gmra.mxu0 %v228
  %v440 = vpop.f32.mrf.mxu0
  %v441 = vadd.f32 0.0, %v440
  %442 = vmatmul.f32.gmra.mxu0 %v231
  %v443 = vpop.f32.mrf.mxu0
  %v444 = vadd.f32 0.0, %v443
  %445 = vmatmul.f32.gmra.mxu0 %v234
  %v446 = vpop.f32.mrf.mxu0
  %v447 = vadd.f32 0.0, %v446
  %448 = vmatmul.f32.gmra.mxu0 %v237
  %v449 = vpop.f32.mrf.mxu0
  %v450 = vadd.f32 0.0, %v449
  %451 = vmatmul.f32.gmra.mxu0 %v240
  %v452 = vpop.f32.mrf.mxu0
  %v453 = vadd.f32 0.0, %v452
  %454 = vmatmul.f32.gmra.mxu0 %v243
  %v455 = vpop.f32.mrf.mxu0
  %v456 = vadd.f32 0.0, %v455
  %457 = vmatmul.f32.gmra.mxu0 %v246
  %v458 = vpop.f32.mrf.mxu0
  %v459 = vadd.f32 0.0, %v458
  %460 = vmatmul.f32.gmra.mxu0 %v249
  %v461 = vpop.f32.mrf.mxu0
  %v462 = vadd.f32 0.0, %v461
  %463 = vmatmul.f32.gmra.mxu0 %v252
  %v464 = vpop.f32.mrf.mxu0
  %v465 = vadd.f32 0.0, %v464
  %466 = vmatmul.f32.gmra.mxu0 %v255
  %v467 = vpop.f32.mrf.mxu0
  %v468 = vadd.f32 0.0, %v467
  %469 = vmatmul.f32.gmra.mxu0 %v258
  %v470 = vpop.f32.mrf.mxu0
  %v471 = vadd.f32 0.0, %v470
  %472 = vmatmul.f32.gmra.mxu0 %v261
  %v473 = vpop.f32.mrf.mxu0
  %v474 = vadd.f32 0.0, %v473
  %475 = vmatmul.f32.gmra.mxu0 %v264
  %v476 = vpop.f32.mrf.mxu0
  %v477 = vadd.f32 0.0, %v476
  %478 = vmatmul.f32.gmra.mxu0 %v267
  %v479 = vpop.f32.mrf.mxu0
  %v480 = vadd.f32 0.0, %v479
  %481 = vmatmul.f32.gmra.mxu0 %v270
  %v482 = vpop.f32.mrf.mxu0
  %v483 = vadd.f32 0.0, %v482
  %484 = vmatmul.f32.gmra.mxu0 %v273
  %v485 = vpop.f32.mrf.mxu0
  %v486 = vadd.f32 0.0, %v485
  %487 = vmatmul.f32.gmra.mxu0 %v276
  %v488 = vpop.f32.mrf.mxu0
  %v489 = vadd.f32 0.0, %v488
  %490 = vmatmul.f32.gmra.mxu0 %v279
  %v491 = vpop.f32.mrf.mxu0
  %v492 = vadd.f32 0.0, %v491
  %493 = vmatmul.f32.gmra.mxu0 %v282
  %v494 = vpop.f32.mrf.mxu0
  %v495 = vadd.f32 0.0, %v494
  %496 = vmatmul.f32.gmra.mxu0 %v285
  %v497 = vpop.f32.mrf.mxu0
  %v498 = vadd.f32 0.0, %v497
  %499 = vmatmul.f32.gmra.mxu0 %v288
  %v500 = vpop.f32.mrf.mxu0
  %v501 = vadd.f32 0.0, %v500
  %502 = vmatmul.f32.gmra.mxu0 %v291
  %v503 = vpop.f32.mrf.mxu0
  %v504 = vadd.f32 0.0, %v503
  %505 = vmatmul.f32.gmra.mxu0 %v294
  %v506 = vpop.f32.mrf.mxu0
  %v507 = vadd.f32 0.0, %v506
  %508 = vmatmul.f32.gmra.mxu0 %v297
  %v509 = vpop.f32.mrf.mxu0
  %v510 = vadd.f32 0.0, %v509
  %511 = vmatmul.f32.gmra.mxu0 %v300
  %v512 = vpop.f32.mrf.mxu0
  %v513 = vadd.f32 0.0, %v512
  %514 = vmatmul.f32.gmra.mxu0 %v303
  %v515 = vpop.f32.mrf.mxu0
  %v516 = vadd.f32 0.0, %v515
  %517 = vmatmul.f32.gmra.mxu0 %v306
  %v518 = vpop.f32.mrf.mxu0
  %v519 = vadd.f32 0.0, %v518
  %520 = vmatmul.f32.gmra.mxu0 %v309
  %v521 = vpop.f32.mrf.mxu0
  %v522 = vadd.f32 0.0, %v521
  %523 = vmatmul.f32.gmra.mxu0 %v312
  %v524 = vpop.f32.mrf.mxu0
  %v525 = vadd.f32 0.0, %v524
  %526 = vmatmul.f32.gmra.mxu0 %v315
  %v527 = vpop.f32.mrf.mxu0
  %v528 = vadd.f32 0.0, %v527
  %529 = vmatmul.f32.gmra.mxu0 %v318
  %v530 = vpop.f32.mrf.mxu0
  %v531 = vadd.f32 0.0, %v530
  %532 = vmatmul.f32.gmra.mxu0 %v321
  %v533 = vpop.f32.mrf.mxu0
  %v534 = vadd.f32 0.0, %v533
  %535 = vmatmul.f32.gmra.mxu0 %v324
  %v536 = vpop.f32.mrf.mxu0
  %v537 = vadd.f32 0.0, %v536
  %538 = vmatmul.f32.gmra.mxu0 %v327
  %v539 = vpop.f32.mrf.mxu0
  %v540 = vadd.f32 0.0, %v539
  %541 = vmatmul.f32.gmra.mxu0 %v330
  %v542 = vpop.f32.mrf.mxu0
  %v543 = vadd.f32 0.0, %v542
  %544 = vmatmul.f32.gmra.mxu0 %v333
  %v545 = vpop.f32.mrf.mxu0
  %v546 = vadd.f32 0.0, %v545
  %547 = vmatmul.f32.gmra.mxu0 %v336
  %v548 = vpop.f32.mrf.mxu0
  %v549 = vadd.f32 0.0, %v548
  %550 = vmatmul.f32.gmra.mxu0 %v339
  %v551 = vpop.f32.mrf.mxu0
  %v552 = vadd.f32 0.0, %v551
  %553 = vmatmul.f32.gmra.mxu0 %v342
  %v554 = vpop.f32.mrf.mxu0
  %v555 = vadd.f32 0.0, %v554
  %556 = vmatmul.f32.gmra.mxu0 %v345
  %v557 = vpop.f32.mrf.mxu0
  %v558 = vadd.f32 0.0, %v557
  %559 = vmatmul.f32.gmra.mxu0 %v348
  %v560 = vpop.f32.mrf.mxu0
  %v561 = vadd.f32 0.0, %v560
  %562 = vmatmul.f32.gmra.mxu0 %v351
  %v563 = vpop.f32.mrf.mxu0
  %v564 = vadd.f32 0.0, %v563
  %565 = vmatmul.f32.gmra.mxu0 %v354
  %v566 = vpop.f32.mrf.mxu0
  %v567 = vadd.f32 0.0, %v566
  %568 = vmatmul.f32.gmra.mxu0 %v357
  %v569 = vpop.f32.mrf.mxu0
  %v570 = vadd.f32 0.0, %v569
  %571 = vmatmul.f32.gmra.mxu0 %v360
  %v572 = vpop.f32.mrf.mxu0
  %v573 = vadd.f32 0.0, %v572
  %574 = vmatmul.f32.gmra.mxu0 %v363
  %v575 = vpop.f32.mrf.mxu0
  %v576 = vadd.f32 0.0, %v575
  %577 = vmatmul.f32.gmra.mxu0 %v366
  %v578 = vpop.f32.mrf.mxu0
  %v579 = vadd.f32 0.0, %v578
  %580 = vmatmul.f32.gmra.mxu0 %v369
  %v581 = vpop.f32.mrf.mxu0
  %v582 = vadd.f32 0.0, %v581
  %583 = vmatmul.f32.gmra.mxu0 %v372
  %v584 = vpop.f32.mrf.mxu0
  %v585 = vadd.f32 0.0, %v584
  %586 = vmatmul.f32.gmra.mxu0 %v375
  %v587 = vpop.f32.mrf.mxu0
  %v588 = vadd.f32 0.0, %v587
  %589 = vmatmul.f32.gmra.mxu0 %v378
  %v590 = vpop.f32.mrf.mxu0
  %v591 = vadd.f32 0.0, %v590
  %592 = vmatmul.f32.gmra.mxu0 %v381
  %v593 = vpop.f32.mrf.mxu0
  %v594 = vadd.f32 0.0, %v593
  %595 = vmatmul.f32.gmra.mxu0 %v384
  %v596 = vpop.f32.mrf.mxu0
  %v597 = vadd.f32 0.0, %v596
  %598 = vmatmul.f32.gmra.mxu0 %v387
  %v599 = vpop.f32.mrf.mxu0
  %v600 = vadd.f32 0.0, %v599
  %601 = vmatmul.f32.gmra.mxu0 %v390
  %v602 = vpop.f32.mrf.mxu0
  %v603 = vadd.f32 0.0, %v602
  %604 = vmatmul.f32.gmra.mxu0 %v393
  %v605 = vpop.f32.mrf.mxu0
  %v606 = vadd.f32 0.0, %v605
  %607 = vmatmul.f32.gmra.mxu0 %v396
  %v608 = vpop.f32.mrf.mxu0
  %v609 = vadd.f32 0.0, %v608
  %610 = vmatmul.f32.gmra.mxu0 %v399
  %v611 = vpop.f32.mrf.mxu0
  %v612 = vadd.f32 0.0, %v611
  %613 = vmatmul.f32.gmra.mxu0 %v402
  %v614 = vpop.f32.mrf.mxu0
  %v615 = vadd.f32 0.0, %v614
  %616 = vdwg.mxu0
  %v617 = vadd.f32 %v82, %v426
  %v618 = vadd.f32 %v83, %v429
  %v619 = vadd.f32 %v84, %v432
  %v620 = vadd.f32 %v85, %v435
  %v621 = vadd.f32 %v86, %v438
  %v622 = vadd.f32 %v87, %v441
  %v623 = vadd.f32 %v88, %v444
  %v624 = vadd.f32 %v89, %v447
  %v625 = vadd.f32 %v90, %v450
  %v626 = vadd.f32 %v91, %v453
  %v627 = vadd.f32 %v92, %v456
  %v628 = vadd.f32 %v93, %v459
  %v629 = vadd.f32 %v94, %v462
  %v630 = vadd.f32 %v95, %v465
  %v631 = vadd.f32 %v96, %v468
  %v632 = vadd.f32 %v97, %v471
  %v633 = vadd.f32 %v98, %v474
  %v634 = vadd.f32 %v99, %v477
  %v635 = vadd.f32 %v100, %v480
  %v636 = vadd.f32 %v101, %v483
  %v637 = vadd.f32 %v102, %v486
  %v638 = vadd.f32 %v103, %v489
  %v639 = vadd.f32 %v104, %v492
  %v640 = vadd.f32 %v105, %v495
  %v641 = vadd.f32 %v106, %v498
  %v642 = vadd.f32 %v107, %v501
  %v643 = vadd.f32 %v108, %v504
  %v644 = vadd.f32 %v109, %v507
  %v645 = vadd.f32 %v110, %v510
  %v646 = vadd.f32 %v111, %v513
  %v647 = vadd.f32 %v112, %v516
  %v648 = vadd.f32 %v113, %v519
  %v649 = vadd.f32 %v114, %v522
  %v650 = vadd.f32 %v115, %v525
  %v651 = vadd.f32 %v116, %v528
  %v652 = vadd.f32 %v117, %v531
  %v653 = vadd.f32 %v118, %v534
  %v654 = vadd.f32 %v119, %v537
  %v655 = vadd.f32 %v120, %v540
  %v656 = vadd.f32 %v121, %v543
  %v657 = vadd.f32 %v122, %v546
  %v658 = vadd.f32 %v123, %v549
  %v659 = vadd.f32 %v124, %v552
  %v660 = vadd.f32 %v125, %v555
  %v661 = vadd.f32 %v126, %v558
  %v662 = vadd.f32 %v127, %v561
  %v663 = vadd.f32 %v128, %v564
  %v664 = vadd.f32 %v129, %v567
  %v665 = vadd.f32 %v130, %v570
  %v666 = vadd.f32 %v131, %v573
  %v667 = vadd.f32 %v132, %v576
  %v668 = vadd.f32 %v133, %v579
  %v669 = vadd.f32 %v134, %v582
  %v670 = vadd.f32 %v135, %v585
  %v671 = vadd.f32 %v136, %v588
  %v672 = vadd.f32 %v137, %v591
  %v673 = vadd.f32 %v138, %v594
  %v674 = vadd.f32 %v139, %v597
  %v675 = vadd.f32 %v140, %v600
  %v676 = vadd.f32 %v141, %v603
  %v677 = vadd.f32 %v142, %v606
  %v678 = vadd.f32 %v143, %v609
  %v679 = vadd.f32 %v144, %v612
  %v680 = vadd.f32 %v145, %v615
  %vm681 = vcmask 64512
  %682 = vst.msk [vmem:[#allocation2] sm:$0xff] %vm681, %v617
  %683 = vst.msk [vmem:[#allocation2 + $0x8] sm:$0xff] %vm681, %v618
  %684 = vst.msk [vmem:[#allocation2 + $0x10] sm:$0xff] %vm681, %v619
  %685 = vst.msk [vmem:[#allocation2 + $0x18] sm:$0xff] %vm681, %v620
  %686 = vst.msk [vmem:[#allocation2 + $0x20] sm:$0xff] %vm681, %v621
  %687 = vst.msk [vmem:[#allocation2 + $0x28] sm:$0xff] %vm681, %v622
  %688 = vst.msk [vmem:[#allocation2 + $0x30] sm:$0xff] %vm681, %v623
  %689 = vst.msk [vmem:[#allocation2 + $0x38] sm:$0xff] %vm681, %v624
  %690 = vst.msk [vmem:[#allocation2 + $0x40] sm:$0xff] %vm681, %v625
  %691 = vst.msk [vmem:[#allocation2 + $0x48] sm:$0xff] %vm681, %v626
  %692 = vst.msk [vmem:[#allocation2 + $0x50] sm:$0xff] %vm681, %v627
  %693 = vst.msk [vmem:[#allocation2 + $0x58] sm:$0xff] %vm681, %v628
  %694 = vst.msk [vmem:[#allocation2 + $0x60] sm:$0xff] %vm681, %v629
  %695 = vst.msk [vmem:[#allocation2 + $0x68] sm:$0xff] %vm681, %v630
  %696 = vst.msk [vmem:[#allocation2 + $0x70] sm:$0xff] %vm681, %v631
  %697 = vst.msk [vmem:[#allocation2 + $0x78] sm:$0xff] %vm681, %v632
  %698 = vst.msk [vmem:[#allocation2 + $0x80] sm:$0xff] %vm681, %v633
  %699 = vst.msk [vmem:[#allocation2 + $0x88] sm:$0xff] %vm681, %v634
  %700 = vst.msk [vmem:[#allocation2 + $0x90] sm:$0xff] %vm681, %v635
  %701 = vst.msk [vmem:[#allocation2 + $0x98] sm:$0xff] %vm681, %v636
  %702 = vst.msk [vmem:[#allocation2 + $0xa0] sm:$0xff] %vm681, %v637
  %703 = vst.msk [vmem:[#allocation2 + $0xa8] sm:$0xff] %vm681, %v638
  %704 = vst.msk [vmem:[#allocation2 + $0xb0] sm:$0xff] %vm681, %v639
  %705 = vst.msk [vmem:[#allocation2 + $0xb8] sm:$0xff] %vm681, %v640
  %706 = vst.msk [vmem:[#allocation2 + $0xc0] sm:$0xff] %vm681, %v641
  %707 = vst.msk [vmem:[#allocation2 + $0xc8] sm:$0xff] %vm681, %v642
  %708 = vst.msk [vmem:[#allocation2 + $0xd0] sm:$0xff] %vm681, %v643
  %709 = vst.msk [vmem:[#allocation2 + $0xd8] sm:$0xff] %vm681, %v644
  %710 = vst.msk [vmem:[#allocation2 + $0xe0] sm:$0xff] %vm681, %v645
  %711 = vst.msk [vmem:[#allocation2 + $0xe8] sm:$0xff] %vm681, %v646
  %712 = vst.msk [vmem:[#allocation2 + $0xf0] sm:$0xff] %vm681, %v647
  %713 = vst.msk [vmem:[#allocation2 + $0xf8] sm:$0xff] %vm681, %v648
  %714 = vst.msk [vmem:[#allocation2 + $0x100] sm:$0xff] %vm681, %v649
  %715 = vst.msk [vmem:[#allocation2 + $0x108] sm:$0xff] %vm681, %v650
  %716 = vst.msk [vmem:[#allocation2 + $0x110] sm:$0xff] %vm681, %v651
  %717 = vst.msk [vmem:[#allocation2 + $0x118] sm:$0xff] %vm681, %v652
  %718 = vst.msk [vmem:[#allocation2 + $0x120] sm:$0xff] %vm681, %v653
  %719 = vst.msk [vmem:[#allocation2 + $0x128] sm:$0xff] %vm681, %v654
  %720 = vst.msk [vmem:[#allocation2 + $0x130] sm:$0xff] %vm681, %v655
  %721 = vst.msk [vmem:[#allocation2 + $0x138] sm:$0xff] %vm681, %v656
  %722 = vst.msk [vmem:[#allocation2 + $0x140] sm:$0xff] %vm681, %v657
  %723 = vst.msk [vmem:[#allocation2 + $0x148] sm:$0xff] %vm681, %v658
  %724 = vst.msk [vmem:[#allocation2 + $0x150] sm:$0xff] %vm681, %v659
  %725 = vst.msk [vmem:[#allocation2 + $0x158] sm:$0xff] %vm681, %v660
  %726 = vst.msk [vmem:[#allocation2 + $0x160] sm:$0xff] %vm681, %v661
  %727 = vst.msk [vmem:[#allocation2 + $0x168] sm:$0xff] %vm681, %v662
  %728 = vst.msk [vmem:[#allocation2 + $0x170] sm:$0xff] %vm681, %v663
  %729 = vst.msk [vmem:[#allocation2 + $0x178] sm:$0xff] %vm681, %v664
  %730 = vst.msk [vmem:[#allocation2 + $0x180] sm:$0xff] %vm681, %v665
  %731 = vst.msk [vmem:[#allocation2 + $0x188] sm:$0xff] %vm681, %v666
  %732 = vst.msk [vmem:[#allocation2 + $0x190] sm:$0xff] %vm681, %v667
  %733 = vst.msk [vmem:[#allocation2 + $0x198] sm:$0xff] %vm681, %v668
  %734 = vst.msk [vmem:[#allocation2 + $0x1a0] sm:$0xff] %vm681, %v669
  %735 = vst.msk [vmem:[#allocation2 + $0x1a8] sm:$0xff] %vm681, %v670
  %736 = vst.msk [vmem:[#allocation2 + $0x1b0] sm:$0xff] %vm681, %v671
  %737 = vst.msk [vmem:[#allocation2 + $0x1b8] sm:$0xff] %vm681, %v672
  %738 = vst.msk [vmem:[#allocation2 + $0x1c0] sm:$0xff] %vm681, %v673
  %739 = vst.msk [vmem:[#allocation2 + $0x1c8] sm:$0xff] %vm681, %v674
  %740 = vst.msk [vmem:[#allocation2 + $0x1d0] sm:$0xff] %vm681, %v675
  %741 = vst.msk [vmem:[#allocation2 + $0x1d8] sm:$0xff] %vm681, %v676
  %742 = vst.msk [vmem:[#allocation2 + $0x1e0] sm:$0xff] %vm681, %v677
  %743 = vst.msk [vmem:[#allocation2 + $0x1e8] sm:$0xff] %vm681, %v678
  %744 = vst.msk [vmem:[#allocation2 + $0x1f0] sm:$0xff] %vm681, %v679
  %745 = vst.msk [vmem:[#allocation2 + $0x1f8] sm:$0xff] %vm681, %v680
  // Predicated region
  $region14: #{convolution_set.10} parent=0 // pred_check
    %p746 = pneg %p13
  $region15: #{convolution_set.10} parent=0 // pred_check_branch
    %748 = sbr.rel (%p746) target = $region17
  $region16: #{convolution_set.10} parent=0 // pred_region
    %v749 = vld [vmem:[#allocation2] sm:$0xff]
    %v750 = vld [vmem:[#allocation2 + $0x8] sm:$0xff]
    %v751 = vld [vmem:[#allocation2 + $0x10] sm:$0xff]
    %v752 = vld [vmem:[#allocation2 + $0x18] sm:$0xff]
    %v753 = vld [vmem:[#allocation2 + $0x20] sm:$0xff]
    %v754 = vld [vmem:[#allocation2 + $0x28] sm:$0xff]
    %v755 = vld [vmem:[#allocation2 + $0x30] sm:$0xff]
    %v756 = vld [vmem:[#allocation2 + $0x38] sm:$0xff]
    %v757 = vld [vmem:[#allocation2 + $0x40] sm:$0xff]
    %v758 = vld [vmem:[#allocation2 + $0x48] sm:$0xff]
    %v759 = vld [vmem:[#allocation2 + $0x50] sm:$0xff]
    %v760 = vld [vmem:[#allocation2 + $0x58] sm:$0xff]
    %v761 = vld [vmem:[#allocation2 + $0x60] sm:$0xff]
    %v762 = vld [vmem:[#allocation2 + $0x68] sm:$0xff]
    %v763 = vld [vmem:[#allocation2 + $0x70] sm:$0xff]
    %v764 = vld [vmem:[#allocation2 + $0x78] sm:$0xff]
    %v765 = vld [vmem:[#allocation2 + $0x80] sm:$0xff]
    %v766 = vld [vmem:[#allocation2 + $0x88] sm:$0xff]
    %v767 = vld [vmem:[#allocation2 + $0x90] sm:$0xff]
    %v768 = vld [vmem:[#allocation2 + $0x98] sm:$0xff]
    %v769 = vld [vmem:[#allocation2 + $0xa0] sm:$0xff]
    %v770 = vld [vmem:[#allocation2 + $0xa8] sm:$0xff]
    %v771 = vld [vmem:[#allocation2 + $0xb0] sm:$0xff]
    %v772 = vld [vmem:[#allocation2 + $0xb8] sm:$0xff]
    %v773 = vld [vmem:[#allocation2 + $0xc0] sm:$0xff]
    %v774 = vld [vmem:[#allocation2 + $0xc8] sm:$0xff]
    %v775 = vld [vmem:[#allocation2 + $0xd0] sm:$0xff]
    %v776 = vld [vmem:[#allocation2 + $0xd8] sm:$0xff]
    %v777 = vld [vmem:[#allocation2 + $0xe0] sm:$0xff]
    %v778 = vld [vmem:[#allocation2 + $0xe8] sm:$0xff]
    %v779 = vld [vmem:[#allocation2 + $0xf0] sm:$0xff]
    %v780 = vld [vmem:[#allocation2 + $0xf8] sm:$0xff]
    %v781 = vld [vmem:[#allocation2 + $0x100] sm:$0xff]
    %v782 = vld [vmem:[#allocation2 + $0x108] sm:$0xff]
    %v783 = vld [vmem:[#allocation2 + $0x110] sm:$0xff]
    %v784 = vld [vmem:[#allocation2 + $0x118] sm:$0xff]
    %v785 = vld [vmem:[#allocation2 + $0x120] sm:$0xff]
    %v786 = vld [vmem:[#allocation2 + $0x128] sm:$0xff]
    %v787 = vld [vmem:[#allocation2 + $0x130] sm:$0xff]
    %v788 = vld [vmem:[#allocation2 + $0x138] sm:$0xff]
    %v789 = vld [vmem:[#allocation2 + $0x140] sm:$0xff]
    %v790 = vld [vmem:[#allocation2 + $0x148] sm:$0xff]
    %v791 = vld [vmem:[#allocation2 + $0x150] sm:$0xff]
    %v792 = vld [vmem:[#allocation2 + $0x158] sm:$0xff]
    %v793 = vld [vmem:[#allocation2 + $0x160] sm:$0xff]
    %v794 = vld [vmem:[#allocation2 + $0x168] sm:$0xff]
    %v795 = vld [vmem:[#allocation2 + $0x170] sm:$0xff]
    %v796 = vld [vmem:[#allocation2 + $0x178] sm:$0xff]
    %v797 = vld [vmem:[#allocation2 + $0x180] sm:$0xff]
    %v798 = vld [vmem:[#allocation2 + $0x188] sm:$0xff]
    %v799 = vld [vmem:[#allocation2 + $0x190] sm:$0xff]
    %v800 = vld [vmem:[#allocation2 + $0x198] sm:$0xff]
    %v801 = vld [vmem:[#allocation2 + $0x1a0] sm:$0xff]
    %v802 = vld [vmem:[#allocation2 + $0x1a8] sm:$0xff]
    %v803 = vld [vmem:[#allocation2 + $0x1b0] sm:$0xff]
    %v804 = vld [vmem:[#allocation2 + $0x1b8] sm:$0xff]
    %v805 = vld [vmem:[#allocation2 + $0x1c0] sm:$0xff]
    %v806 = vld [vmem:[#allocation2 + $0x1c8] sm:$0xff]
    %v807 = vld [vmem:[#allocation2 + $0x1d0] sm:$0xff]
    %v808 = vld [vmem:[#allocation2 + $0x1d8] sm:$0xff]
    %v809 = vld [vmem:[#allocation2 + $0x1e0] sm:$0xff]
    %v810 = vld [vmem:[#allocation2 + $0x1e8] sm:$0xff]
    %v811 = vld [vmem:[#allocation2 + $0x1f0] sm:$0xff]
    %v812 = vld [vmem:[#allocation2 + $0x1f8] sm:$0xff]
    %813 = vst.msk [vmem:[%s2] sm:$0xff] %vm681, %v749
    %814 = vst.msk [vmem:[%s2 + $0x8] sm:$0xff] %vm681, %v750
    %815 = vst.msk [vmem:[%s2 + $0x10] sm:$0xff] %vm681, %v751
    %816 = vst.msk [vmem:[%s2 + $0x18] sm:$0xff] %vm681, %v752
    %817 = vst.msk [vmem:[%s2 + $0x20] sm:$0xff] %vm681, %v753
    %818 = vst.msk [vmem:[%s2 + $0x28] sm:$0xff] %vm681, %v754
    %819 = vst.msk [vmem:[%s2 + $0x30] sm:$0xff] %vm681, %v755
    %820 = vst.msk [vmem:[%s2 + $0x38] sm:$0xff] %vm681, %v756
    %821 = vst.msk [vmem:[%s2 + $0x40] sm:$0xff] %vm681, %v757
    %822 = vst.msk [vmem:[%s2 + $0x48] sm:$0xff] %vm681, %v758
    %823 = vst.msk [vmem:[%s2 + $0x50] sm:$0xff] %vm681, %v759
    %824 = vst.msk [vmem:[%s2 + $0x58] sm:$0xff] %vm681, %v760
    %825 = vst.msk [vmem:[%s2 + $0x60] sm:$0xff] %vm681, %v761
    %826 = vst.msk [vmem:[%s2 + $0x68] sm:$0xff] %vm681, %v762
    %827 = vst.msk [vmem:[%s2 + $0x70] sm:$0xff] %vm681, %v763
    %828 = vst.msk [vmem:[%s2 + $0x78] sm:$0xff] %vm681, %v764
    %829 = vst.msk [vmem:[%s2 + $0x80] sm:$0xff] %vm681, %v765
    %830 = vst.msk [vmem:[%s2 + $0x88] sm:$0xff] %vm681, %v766
    %831 = vst.msk [vmem:[%s2 + $0x90] sm:$0xff] %vm681, %v767
    %832 = vst.msk [vmem:[%s2 + $0x98] sm:$0xff] %vm681, %v768
    %833 = vst.msk [vmem:[%s2 + $0xa0] sm:$0xff] %vm681, %v769
    %834 = vst.msk [vmem:[%s2 + $0xa8] sm:$0xff] %vm681, %v770
    %835 = vst.msk [vmem:[%s2 + $0xb0] sm:$0xff] %vm681, %v771
    %836 = vst.msk [vmem:[%s2 + $0xb8] sm:$0xff] %vm681, %v772
    %837 = vst.msk [vmem:[%s2 + $0xc0] sm:$0xff] %vm681, %v773
    %838 = vst.msk [vmem:[%s2 + $0xc8] sm:$0xff] %vm681, %v774
    %839 = vst.msk [vmem:[%s2 + $0xd0] sm:$0xff] %vm681, %v775
    %840 = vst.msk [vmem:[%s2 + $0xd8] sm:$0xff] %vm681, %v776
    %841 = vst.msk [vmem:[%s2 + $0xe0] sm:$0xff] %vm681, %v777
    %842 = vst.msk [vmem:[%s2 + $0xe8] sm:$0xff] %vm681, %v778
    %843 = vst.msk [vmem:[%s2 + $0xf0] sm:$0xff] %vm681, %v779
    %844 = vst.msk [vmem:[%s2 + $0xf8] sm:$0xff] %vm681, %v780
    %845 = vst.msk [vmem:[%s2 + $0x100] sm:$0xff] %vm681, %v781
    %846 = vst.msk [vmem:[%s2 + $0x108] sm:$0xff] %vm681, %v782
    %847 = vst.msk [vmem:[%s2 + $0x110] sm:$0xff] %vm681, %v783
    %848 = vst.msk [vmem:[%s2 + $0x118] sm:$0xff] %vm681, %v784
    %849 = vst.msk [vmem:[%s2 + $0x120] sm:$0xff] %vm681, %v785
    %850 = vst.msk [vmem:[%s2 + $0x128] sm:$0xff] %vm681, %v786
    %851 = vst.msk [vmem:[%s2 + $0x130] sm:$0xff] %vm681, %v787
    %852 = vst.msk [vmem:[%s2 + $0x138] sm:$0xff] %vm681, %v788
    %853 = vst.msk [vmem:[%s2 + $0x140] sm:$0xff] %vm681, %v789
    %854 = vst.msk [vmem:[%s2 + $0x148] sm:$0xff] %vm681, %v790
    %855 = vst.msk [vmem:[%s2 + $0x150] sm:$0xff] %vm681, %v791
    %856 = vst.msk [vmem:[%s2 + $0x158] sm:$0xff] %vm681, %v792
    %857 = vst.msk [vmem:[%s2 + $0x160] sm:$0xff] %vm681, %v793
    %858 = vst.msk [vmem:[%s2 + $0x168] sm:$0xff] %vm681, %v794
    %859 = vst.msk [vmem:[%s2 + $0x170] sm:$0xff] %vm681, %v795
    %860 = vst.msk [vmem:[%s2 + $0x178] sm:$0xff] %vm681, %v796
    %861 = vst.msk [vmem:[%s2 + $0x180] sm:$0xff] %vm681, %v797
    %862 = vst.msk [vmem:[%s2 + $0x188] sm:$0xff] %vm681, %v798
    %863 = vst.msk [vmem:[%s2 + $0x190] sm:$0xff] %vm681, %v799
    %864 = vst.msk [vmem:[%s2 + $0x198] sm:$0xff] %vm681, %v800
    %865 = vst.msk [vmem:[%s2 + $0x1a0] sm:$0xff] %vm681, %v801
    %866 = vst.msk [vmem:[%s2 + $0x1a8] sm:$0xff] %vm681, %v802
    %867 = vst.msk [vmem:[%s2 + $0x1b0] sm:$0xff] %vm681, %v803
    %868 = vst.msk [vmem:[%s2 + $0x1b8] sm:$0xff] %vm681, %v804
    %869 = vst.msk [vmem:[%s2 + $0x1c0] sm:$0xff] %vm681, %v805
    %870 = vst.msk [vmem:[%s2 + $0x1c8] sm:$0xff] %vm681, %v806
    %871 = vst.msk [vmem:[%s2 + $0x1d0] sm:$0xff] %vm681, %v807
    %872 = vst.msk [vmem:[%s2 + $0x1d8] sm:$0xff] %vm681, %v808
    %873 = vst.msk [vmem:[%s2 + $0x1e0] sm:$0xff] %vm681, %v809
    %874 = vst.msk [vmem:[%s2 + $0x1e8] sm:$0xff] %vm681, %v810
    %875 = vst.msk [vmem:[%s2 + $0x1f0] sm:$0xff] %vm681, %v811
    %876 = vst.msk [vmem:[%s2 + $0x1f8] sm:$0xff] %vm681, %v812
    %v877 = vsel %vm681, %v749, 0.0
    %v878 = vsel %vm681, %v750, 0.0
    %v879 = vadd.f32 %v877, %v878
    %v880 = vsel %vm681, %v751, 0.0
    %v881 = vadd.f32 %v879, %v880
    %v882 = vsel %vm681, %v752, 0.0
    %v883 = vadd.f32 %v881, %v882
    %v884 = vsel %vm681, %v753, 0.0
    %v885 = vadd.f32 %v883, %v884
    %v886 = vsel %vm681, %v754, 0.0
    %v887 = vadd.f32 %v885, %v886
    %v888 = vsel %vm681, %v755, 0.0
    %v889 = vadd.f32 %v887, %v888
    %v890 = vsel %vm681, %v756, 0.0
    %v891 = vadd.f32 %v889, %v890
    %v892 = vsel %vm681, %v757, 0.0
    %v893 = vadd.f32 %v891, %v892
    %v894 = vsel %vm681, %v758, 0.0
    %v895 = vadd.f32 %v893, %v894
    %v896 = vsel %vm681, %v759, 0.0
    %v897 = vadd.f32 %v895, %v896
    %v898 = vsel %vm681, %v760, 0.0
    %v899 = vadd.f32 %v897, %v898
    %v900 = vsel %vm681, %v761, 0.0
    %v901 = vadd.f32 %v899, %v900
    %v902 = vsel %vm681, %v762, 0.0
    %v903 = vadd.f32 %v901, %v902
    %v904 = vsel %vm681, %v763, 0.0
    %v905 = vadd.f32 %v903, %v904
    %v906 = vsel %vm681, %v764, 0.0
    %v907 = vadd.f32 %v905, %v906
    %v908 = vsel %vm681, %v765, 0.0
    %v909 = vadd.f32 %v907, %v908
    %v910 = vsel %vm681, %v766, 0.0
    %v911 = vadd.f32 %v909, %v910
    %v912 = vsel %vm681, %v767, 0.0
    %v913 = vadd.f32 %v911, %v912
    %v914 = vsel %vm681, %v768, 0.0
    %v915 = vadd.f32 %v913, %v914
    %v916 = vsel %vm681, %v769, 0.0
    %v917 = vadd.f32 %v915, %v916
    %v918 = vsel %vm681, %v770, 0.0
    %v919 = vadd.f32 %v917, %v918
    %v920 = vsel %vm681, %v771, 0.0
    %v921 = vadd.f32 %v919, %v920
    %v922 = vsel %vm681, %v772, 0.0
    %v923 = vadd.f32 %v921, %v922
    %v924 = vsel %vm681, %v773, 0.0
    %v925 = vadd.f32 %v923, %v924
    %v926 = vsel %vm681, %v774, 0.0
    %v927 = vadd.f32 %v925, %v926
    %v928 = vsel %vm681, %v775, 0.0
    %v929 = vadd.f32 %v927, %v928
    %v930 = vsel %vm681, %v776, 0.0
    %v931 = vadd.f32 %v929, %v930
    %v932 = vsel %vm681, %v777, 0.0
    %v933 = vadd.f32 %v931, %v932
    %v934 = vsel %vm681, %v778, 0.0
    %v935 = vadd.f32 %v933, %v934
    %v936 = vsel %vm681, %v779, 0.0
    %v937 = vadd.f32 %v935, %v936
    %v938 = vsel %vm681, %v780, 0.0
    %v939 = vadd.f32 %v937, %v938
    %v940 = vsel %vm681, %v781, 0.0
    %v941 = vadd.f32 %v939, %v940
    %v942 = vsel %vm681, %v782, 0.0
    %v943 = vadd.f32 %v941, %v942
    %v944 = vsel %vm681, %v783, 0.0
    %v945 = vadd.f32 %v943, %v944
    %v946 = vsel %vm681, %v784, 0.0
    %v947 = vadd.f32 %v945, %v946
    %v948 = vsel %vm681, %v785, 0.0
    %v949 = vadd.f32 %v947, %v948
    %v950 = vsel %vm681, %v786, 0.0
    %v951 = vadd.f32 %v949, %v950
    %v952 = vsel %vm681, %v787, 0.0
    %v953 = vadd.f32 %v951, %v952
    %v954 = vsel %vm681, %v788, 0.0
    %v955 = vadd.f32 %v953, %v954
    %v956 = vsel %vm681, %v789, 0.0
    %v957 = vadd.f32 %v955, %v956
    %v958 = vsel %vm681, %v790, 0.0
    %v959 = vadd.f32 %v957, %v958
    %v960 = vsel %vm681, %v791, 0.0
    %v961 = vadd.f32 %v959, %v960
    %v962 = vsel %vm681, %v792, 0.0
    %v963 = vadd.f32 %v961, %v962
    %v964 = vsel %vm681, %v793, 0.0
    %v965 = vadd.f32 %v963, %v964
    %v966 = vsel %vm681, %v794, 0.0
    %v967 = vadd.f32 %v965, %v966
    %v968 = vsel %vm681, %v795, 0.0
    %v969 = vadd.f32 %v967, %v968
    %v970 = vsel %vm681, %v796, 0.0
    %v971 = vadd.f32 %v969, %v970
    %v972 = vsel %vm681, %v797, 0.0
    %v973 = vadd.f32 %v971, %v972
    %v974 = vsel %vm681, %v798, 0.0
    %v975 = vadd.f32 %v973, %v974
    %v976 = vsel %vm681, %v799, 0.0
    %v977 = vadd.f32 %v975, %v976
    %v978 = vsel %vm681, %v800, 0.0
    %v979 = vadd.f32 %v977, %v978
    %v980 = vsel %vm681, %v801, 0.0
    %v981 = vadd.f32 %v979, %v980
    %v982 = vsel %vm681, %v802, 0.0
    %v983 = vadd.f32 %v981, %v982
    %v984 = vsel %vm681, %v803, 0.0
    %v985 = vadd.f32 %v983, %v984
    %v986 = vsel %vm681, %v804, 0.0
    %v987 = vadd.f32 %v985, %v986
    %v988 = vsel %vm681, %v805, 0.0
    %v989 = vadd.f32 %v987, %v988
    %v990 = vsel %vm681, %v806, 0.0
    %v991 = vadd.f32 %v989, %v990
    %v992 = vsel %vm681, %v807, 0.0
    %v993 = vadd.f32 %v991, %v992
    %v994 = vsel %vm681, %v808, 0.0
    %v995 = vadd.f32 %v993, %v994
    %v996 = vsel %vm681, %v809, 0.0
    %v997 = vadd.f32 %v995, %v996
    %v998 = vsel %vm681, %v810, 0.0
    %v999 = vadd.f32 %v997, %v998
    %v1000 = vsel %vm681, %v811, 0.0
    %v1001 = vadd.f32 %v999, %v1000
    %v1002 = vsel %vm681, %v812, 0.0
    %v1003 = vadd.f32 %v1001, %v1002
    %v1004 = vrot.slane %v1003, 4
    %v1005 = vadd.f32 %v1003, %v1004
    %v1006 = vrot.slane %v1005, 2
    %v1007 = vadd.f32 %v1005, %v1006
    %v1008 = vrot.slane %v1007, 1
    %v1009 = vadd.f32 %v1007, %v1008
    %v1010 = vmul.f32 %v749, %v749
    %v1011 = vmul.f32 %v750, %v750
    %v1012 = vmul.f32 %v751, %v751
    %v1013 = vmul.f32 %v752, %v752
    %v1014 = vmul.f32 %v753, %v753
    %v1015 = vmul.f32 %v754, %v754
    %v1016 = vmul.f32 %v755, %v755
    %v1017 = vmul.f32 %v756, %v756
    %v1018 = vmul.f32 %v757, %v757
    %v1019 = vmul.f32 %v758, %v758
    %v1020 = vmul.f32 %v759, %v759
    %v1021 = vmul.f32 %v760, %v760
    %v1022 = vmul.f32 %v761, %v761
    %v1023 = vmul.f32 %v762, %v762
    %v1024 = vmul.f32 %v763, %v763
    %v1025 = vmul.f32 %v764, %v764
    %v1026 = vmul.f32 %v765, %v765
    %v1027 = vmul.f32 %v766, %v766
    %v1028 = vmul.f32 %v767, %v767
    %v1029 = vmul.f32 %v768, %v768
    %v1030 = vmul.f32 %v769, %v769
    %v1031 = vmul.f32 %v770, %v770
    %v1032 = vmul.f32 %v771, %v771
    %v1033 = vmul.f32 %v772, %v772
    %v1034 = vmul.f32 %v773, %v773
    %v1035 = vmul.f32 %v774, %v774
    %v1036 = vmul.f32 %v775, %v775
    %v1037 = vmul.f32 %v776, %v776
    %v1038 = vmul.f32 %v777, %v777
    %v1039 = vmul.f32 %v778, %v778
    %v1040 = vmul.f32 %v779, %v779
    %v1041 = vmul.f32 %v780, %v780
    %v1042 = vmul.f32 %v781, %v781
    %v1043 = vmul.f32 %v782, %v782
    %v1044 = vmul.f32 %v783, %v783
    %v1045 = vmul.f32 %v784, %v784
    %v1046 = vmul.f32 %v785, %v785
    %v1047 = vmul.f32 %v786, %v786
    %v1048 = vmul.f32 %v787, %v787
    %v1049 = vmul.f32 %v788, %v788
    %v1050 = vmul.f32 %v789, %v789
    %v1051 = vmul.f32 %v790, %v790
    %v1052 = vmul.f32 %v791, %v791
    %v1053 = vmul.f32 %v792, %v792
    %v1054 = vmul.f32 %v793, %v793
    %v1055 = vmul.f32 %v794, %v794
    %v1056 = vmul.f32 %v795, %v795
    %v1057 = vmul.f32 %v796, %v796
    %v1058 = vmul.f32 %v797, %v797
    %v1059 = vmul.f32 %v798, %v798
    %v1060 = vmul.f32 %v799, %v799
    %v1061 = vmul.f32 %v800, %v800
    %v1062 = vmul.f32 %v801, %v801
    %v1063 = vmul.f32 %v802, %v802
    %v1064 = vmul.f32 %v803, %v803
    %v1065 = vmul.f32 %v804, %v804
    %v1066 = vmul.f32 %v805, %v805
    %v1067 = vmul.f32 %v806, %v806
    %v1068 = vmul.f32 %v807, %v807
    %v1069 = vmul.f32 %v808, %v808
    %v1070 = vmul.f32 %v809, %v809
    %v1071 = vmul.f32 %v810, %v810
    %v1072 = vmul.f32 %v811, %v811
    %v1073 = vmul.f32 %v812, %v812
    %v1074 = vsel %vm681, %v1010, 0.0
    %v1075 = vsel %vm681, %v1011, 0.0
    %v1076 = vadd.f32 %v1074, %v1075
    %v1077 = vsel %vm681, %v1012, 0.0
    %v1078 = vadd.f32 %v1076, %v1077
    %v1079 = vsel %vm681, %v1013, 0.0
    %v1080 = vadd.f32 %v1078, %v1079
    %v1081 = vsel %vm681, %v1014, 0.0
    %v1082 = vadd.f32 %v1080, %v1081
    %v1083 = vsel %vm681, %v1015, 0.0
    %v1084 = vadd.f32 %v1082, %v1083
    %v1085 = vsel %vm681, %v1016, 0.0
    %v1086 = vadd.f32 %v1084, %v1085
    %v1087 = vsel %vm681, %v1017, 0.0
    %v1088 = vadd.f32 %v1086, %v1087
    %v1089 = vsel %vm681, %v1018, 0.0
    %v1090 = vadd.f32 %v1088, %v1089
    %v1091 = vsel %vm681, %v1019, 0.0
    %v1092 = vadd.f32 %v1090, %v1091
    %v1093 = vsel %vm681, %v1020, 0.0
    %v1094 = vadd.f32 %v1092, %v1093
    %v1095 = vsel %vm681, %v1021, 0.0
    %v1096 = vadd.f32 %v1094, %v1095
    %v1097 = vsel %vm681, %v1022, 0.0
    %v1098 = vadd.f32 %v1096, %v1097
    %v1099 = vsel %vm681, %v1023, 0.0
    %v1100 = vadd.f32 %v1098, %v1099
    %v1101 = vsel %vm681, %v1024, 0.0
    %v1102 = vadd.f32 %v1100, %v1101
    %v1103 = vsel %vm681, %v1025, 0.0
    %v1104 = vadd.f32 %v1102, %v1103
    %v1105 = vsel %vm681, %v1026, 0.0
    %v1106 = vadd.f32 %v1104, %v1105
    %v1107 = vsel %vm681, %v1027, 0.0
    %v1108 = vadd.f32 %v1106, %v1107
    %v1109 = vsel %vm681, %v1028, 0.0
    %v1110 = vadd.f32 %v1108, %v1109
    %v1111 = vsel %vm681, %v1029, 0.0
    %v1112 = vadd.f32 %v1110, %v1111
    %v1113 = vsel %vm681, %v1030, 0.0
    %v1114 = vadd.f32 %v1112, %v1113
    %v1115 = vsel %vm681, %v1031, 0.0
    %v1116 = vadd.f32 %v1114, %v1115
    %v1117 = vsel %vm681, %v1032, 0.0
    %v1118 = vadd.f32 %v1116, %v1117
    %v1119 = vsel %vm681, %v1033, 0.0
    %v1120 = vadd.f32 %v1118, %v1119
    %v1121 = vsel %vm681, %v1034, 0.0
    %v1122 = vadd.f32 %v1120, %v1121
    %v1123 = vsel %vm681, %v1035, 0.0
    %v1124 = vadd.f32 %v1122, %v1123
    %v1125 = vsel %vm681, %v1036, 0.0
    %v1126 = vadd.f32 %v1124, %v1125
    %v1127 = vsel %vm681, %v1037, 0.0
    %v1128 = vadd.f32 %v1126, %v1127
    %v1129 = vsel %vm681, %v1038, 0.0
    %v1130 = vadd.f32 %v1128, %v1129
    %v1131 = vsel %vm681, %v1039, 0.0
    %v1132 = vadd.f32 %v1130, %v1131
    %v1133 = vsel %vm681, %v1040, 0.0
    %v1134 = vadd.f32 %v1132, %v1133
    %v1135 = vsel %vm681, %v1041, 0.0
    %v1136 = vadd.f32 %v1134, %v1135
    %v1137 = vsel %vm681, %v1042, 0.0
    %v1138 = vadd.f32 %v1136, %v1137
    %v1139 = vsel %vm681, %v1043, 0.0
    %v1140 = vadd.f32 %v1138, %v1139
    %v1141 = vsel %vm681, %v1044, 0.0
    %v1142 = vadd.f32 %v1140, %v1141
    %v1143 = vsel %vm681, %v1045, 0.0
    %v1144 = vadd.f32 %v1142, %v1143
    %v1145 = vsel %vm681, %v1046, 0.0
    %v1146 = vadd.f32 %v1144, %v1145
    %v1147 = vsel %vm681, %v1047, 0.0
    %v1148 = vadd.f32 %v1146, %v1147
    %v1149 = vsel %vm681, %v1048, 0.0
    %v1150 = vadd.f32 %v1148, %v1149
    %v1151 = vsel %vm681, %v1049, 0.0
    %v1152 = vadd.f32 %v1150, %v1151
    %v1153 = vsel %vm681, %v1050, 0.0
    %v1154 = vadd.f32 %v1152, %v1153
    %v1155 = vsel %vm681, %v1051, 0.0
    %v1156 = vadd.f32 %v1154, %v1155
    %v1157 = vsel %vm681, %v1052, 0.0
    %v1158 = vadd.f32 %v1156, %v1157
    %v1159 = vsel %vm681, %v1053, 0.0
    %v1160 = vadd.f32 %v1158, %v1159
    %v1161 = vsel %vm681, %v1054, 0.0
    %v1162 = vadd.f32 %v1160, %v1161
    %v1163 = vsel %vm681, %v1055, 0.0
    %v1164 = vadd.f32 %v1162, %v1163
    %v1165 = vsel %vm681, %v1056, 0.0
    %v1166 = vadd.f32 %v1164, %v1165
    %v1167 = vsel %vm681, %v1057, 0.0
    %v1168 = vadd.f32 %v1166, %v1167
    %v1169 = vsel %vm681, %v1058, 0.0
    %v1170 = vadd.f32 %v1168, %v1169
    %v1171 = vsel %vm681, %v1059, 0.0
    %v1172 = vadd.f32 %v1170, %v1171
    %v1173 = vsel %vm681, %v1060, 0.0
    %v1174 = vadd.f32 %v1172, %v1173
    %v1175 = vsel %vm681, %v1061, 0.0
    %v1176 = vadd.f32 %v1174, %v1175
    %v1177 = vsel %vm681, %v1062, 0.0
    %v1178 = vadd.f32 %v1176, %v1177
    %v1179 = vsel %vm681, %v1063, 0.0
    %v1180 = vadd.f32 %v1178, %v1179
    %v1181 = vsel %vm681, %v1064, 0.0
    %v1182 = vadd.f32 %v1180, %v1181
    %v1183 = vsel %vm681, %v1065, 0.0
    %v1184 = vadd.f32 %v1182, %v1183
    %v1185 = vsel %vm681, %v1066, 0.0
    %v1186 = vadd.f32 %v1184, %v1185
    %v1187 = vsel %vm681, %v1067, 0.0
    %v1188 = vadd.f32 %v1186, %v1187
    %v1189 = vsel %vm681, %v1068, 0.0
    %v1190 = vadd.f32 %v1188, %v1189
    %v1191 = vsel %vm681, %v1069, 0.0
    %v1192 = vadd.f32 %v1190, %v1191
    %v1193 = vsel %vm681, %v1070, 0.0
    %v1194 = vadd.f32 %v1192, %v1193
    %v1195 = vsel %vm681, %v1071, 0.0
    %v1196 = vadd.f32 %v1194, %v1195
    %v1197 = vsel %vm681, %v1072, 0.0
    %v1198 = vadd.f32 %v1196, %v1197
    %v1199 = vsel %vm681, %v1073, 0.0
    %v1200 = vadd.f32 %v1198, %v1199
    %v1201 = vrot.slane %v1200, 4
    %v1202 = vadd.f32 %v1200, %v1201
    %v1203 = vrot.slane %v1202, 2
    %v1204 = vadd.f32 %v1202, %v1203
    %v1205 = vrot.slane %v1204, 1
    %v1206 = vadd.f32 %v1204, %v1205
    %vm1207 = vcmask 1040384
    %v1208 = vsel %vm1207, %v1009, %v1206
    %vm1209 = vcmask 58368
    %1210 = vst.msk [vmem:[%s3] sm:$0x3] %vm1209, %v1208
  $region17: #{convolution_set.10} parent=0 // pred_fallthru
    _
  // Predicated region
  $region18: #{convolution_set.10} parent=0 // pred_check
    _
  $region19: #{convolution_set.10} parent=0 // pred_check_branch
    %1212 = sbr.rel (0) target = $region21
  $region20: #{convolution_set.10} parent=0 // pred_region
    _
  $region21: #{convolution_set.10} parent=0 // pred_fallthru
    _
  // Predicated region
  $region22: #{convolution_set.10} parent=0 // pred_check
    _
  $region23: #{convolution_set.10} parent=0 // pred_check_branch
    %1214 = sbr.rel (0) target = $region25
  $region24: #{convolution_set.10} parent=0 // pred_region
    _
  $region25: #{convolution_set.10} parent=0 // pred_fallthru
    _
  // Predicated region
  $region26: #{convolution_set.10} parent=0 // pred_check
    _
  $region27: #{convolution_set.10} parent=0 // pred_check_branch
    %1216 = sbr.rel (0) target = $region29
  $region28: #{convolution_set.10} parent=0 // pred_region
    _
  $region29: #{convolution_set.10} parent=0 // pred_fallthru
    _
  // Predicated region
  $region30: #{convolution_set.10} parent=0 // pred_check
    _
  $region31: #{convolution_set.10} parent=0 // pred_check_branch
    %1218 = sbr.rel (0) target = $region33
  $region32: #{convolution_set.10} parent=0 // pred_region
    _
  $region33: #{convolution_set.10} parent=0 // pred_fallthru
    _

// kernel: convolution_set.13
$region0: #{convolution_set.13}
  #allocation0 [shape = 'u32[]', space=smem, size = 0x4, offset = 0x4, fixed_abs, tag = 'smem constant byte address 0x4 - core index']
  #allocation1 [shape = 'u32[72,128]{1,0:T(1,128)}', space=vmem, size = 0x9000, scoped, tag = 'internal scratch']
  %s0 = inlined_call_operand.vmem [shape: f32[512,4], index: 0, kind: input, shape index: {}]
  %s1 = inlined_call_operand.vmem [shape: f32[2,4], index: 1, kind: input, shape index: {}]
  %s2 = inlined_call_operand.vmem [shape: f32[512,4], index: 2, kind: output, shape index: {}]
  %s3 = sld [smem:[#allocation0]]
  $region18: #{convolution_set.13} parent=0
    _
  %s5 = ssub.s32 1, %s3
  %s6 = scalar_select 0, %s5, %s3
  // Predicated region
  $region2: #{convolution_set.13} parent=0 // pred_check
    _
  $region3: #{convolution_set.13} parent=0 // pred_check_branch
    %8 = sbr.rel (0) target = $region5
  $region4: #{convolution_set.13} parent=0 // pred_region
    _
  $region5: #{convolution_set.13} parent=0 // pred_fallthru
    _
  // Predicated region
  $region6: #{convolution_set.13} parent=0 // pred_check
    _
  $region7: #{convolution_set.13} parent=0 // pred_check_branch
    %10 = sbr.rel (0) target = $region9
  $region8: #{convolution_set.13} parent=0 // pred_region
    _
  $region9: #{convolution_set.13} parent=0 // pred_fallthru
    _
  %v11 = vld [vmem:[%s0] sm:$0xff]
  %v12 = vld [vmem:[%s0 + $0x8] sm:$0xff]
  %v13 = vld [vmem:[%s0 + $0x10] sm:$0xff]
  %v14 = vld [vmem:[%s0 + $0x18] sm:$0xff]
  %v15 = vld [vmem:[%s0 + $0x20] sm:$0xff]
  %v16 = vld [vmem:[%s0 + $0x28] sm:$0xff]
  %v17 = vld [vmem:[%s0 + $0x30] sm:$0xff]
  %v18 = vld [vmem:[%s0 + $0x38] sm:$0xff]
  %v19 = vld [vmem:[%s0 + $0x40] sm:$0xff]
  %v20 = vld [vmem:[%s0 + $0x48] sm:$0xff]
  %v21 = vld [vmem:[%s0 + $0x50] sm:$0xff]
  %v22 = vld [vmem:[%s0 + $0x58] sm:$0xff]
  %v23 = vld [vmem:[%s0 + $0x60] sm:$0xff]
  %v24 = vld [vmem:[%s0 + $0x68] sm:$0xff]
  %v25 = vld [vmem:[%s0 + $0x70] sm:$0xff]
  %v26 = vld [vmem:[%s0 + $0x78] sm:$0xff]
  %v27 = vld [vmem:[%s0 + $0x80] sm:$0xff]
  %v28 = vld [vmem:[%s0 + $0x88] sm:$0xff]
  %v29 = vld [vmem:[%s0 + $0x90] sm:$0xff]
  %v30 = vld [vmem:[%s0 + $0x98] sm:$0xff]
  %v31 = vld [vmem:[%s0 + $0xa0] sm:$0xff]
  %v32 = vld [vmem:[%s0 + $0xa8] sm:$0xff]
  %v33 = vld [vmem:[%s0 + $0xb0] sm:$0xff]
  %v34 = vld [vmem:[%s0 + $0xb8] sm:$0xff]
  %v35 = vld [vmem:[%s0 + $0xc0] sm:$0xff]
  %v36 = vld [vmem:[%s0 + $0xc8] sm:$0xff]
  %v37 = vld [vmem:[%s0 + $0xd0] sm:$0xff]
  %v38 = vld [vmem:[%s0 + $0xd8] sm:$0xff]
  %v39 = vld [vmem:[%s0 + $0xe0] sm:$0xff]
  %v40 = vld [vmem:[%s0 + $0xe8] sm:$0xff]
  %v41 = vld [vmem:[%s0 + $0xf0] sm:$0xff]
  %v42 = vld [vmem:[%s0 + $0xf8] sm:$0xff]
  %v43 = vld [vmem:[%s0 + $0x100] sm:$0xff]
  %v44 = vld [vmem:[%s0 + $0x108] sm:$0xff]
  %v45 = vld [vmem:[%s0 + $0x110] sm:$0xff]
  %v46 = vld [vmem:[%s0 + $0x118] sm:$0xff]
  %v47 = vld [vmem:[%s0 + $0x120] sm:$0xff]
  %v48 = vld [vmem:[%s0 + $0x128] sm:$0xff]
  %v49 = vld [vmem:[%s0 + $0x130] sm:$0xff]
  %v50 = vld [vmem:[%s0 + $0x138] sm:$0xff]
  %v51 = vld [vmem:[%s0 + $0x140] sm:$0xff]
  %v52 = vld [vmem:[%s0 + $0x148] sm:$0xff]
  %v53 = vld [vmem:[%s0 + $0x150] sm:$0xff]
  %v54 = vld [vmem:[%s0 + $0x158] sm:$0xff]
  %v55 = vld [vmem:[%s0 + $0x160] sm:$0xff]
  %v56 = vld [vmem:[%s0 + $0x168] sm:$0xff]
  %v57 = vld [vmem:[%s0 + $0x170] sm:$0xff]
  %v58 = vld [vmem:[%s0 + $0x178] sm:$0xff]
  %v59 = vld [vmem:[%s0 + $0x180] sm:$0xff]
  %v60 = vld [vmem:[%s0 + $0x188] sm:$0xff]
  %v61 = vld [vmem:[%s0 + $0x190] sm:$0xff]
  %v62 = vld [vmem:[%s0 + $0x198] sm:$0xff]
  %v63 = vld [vmem:[%s0 + $0x1a0] sm:$0xff]
  %v64 = vld [vmem:[%s0 + $0x1a8] sm:$0xff]
  %v65 = vld [vmem:[%s0 + $0x1b0] sm:$0xff]
  %v66 = vld [vmem:[%s0 + $0x1b8] sm:$0xff]
  %v67 = vld [vmem:[%s0 + $0x1c0] sm:$0xff]
  %v68 = vld [vmem:[%s0 + $0x1c8] sm:$0xff]
  %v69 = vld [vmem:[%s0 + $0x1d0] sm:$0xff]
  %v70 = vld [vmem:[%s0 + $0x1d8] sm:$0xff]
  %v71 = vld [vmem:[%s0 + $0x1e0] sm:$0xff]
  %v72 = vld [vmem:[%s0 + $0x1e8] sm:$0xff]
  %v73 = vld [vmem:[%s0 + $0x1f0] sm:$0xff]
  %v74 = vld [vmem:[%s0 + $0x1f8] sm:$0xff]
  %v75 = vld [vmem:[%s1] sm:$0x1]
  %v76 = vperm.slane %v75, 0
  %v77 = vmul.f32 %v11, %v76
  %v78 = vmul.f32 %v12, %v76
  %v79 = vmul.f32 %v13, %v76
  %v80 = vmul.f32 %v14, %v76
  %v81 = vmul.f32 %v15, %v76
  %v82 = vmul.f32 %v16, %v76
  %v83 = vmul.f32 %v17, %v76
  %v84 = vmul.f32 %v18, %v76
  %v85 = vmul.f32 %v19, %v76
  %v86 = vmul.f32 %v20, %v76
  %v87 = vmul.f32 %v21, %v76
  %v88 = vmul.f32 %v22, %v76
  %v89 = vmul.f32 %v23, %v76
  %v90 = vmul.f32 %v24, %v76
  %v91 = vmul.f32 %v25, %v76
  %v92 = vmul.f32 %v26, %v76
  %v93 = vmul.f32 %v27, %v76
  %v94 = vmul.f32 %v28, %v76
  %v95 = vmul.f32 %v29, %v76
  %v96 = vmul.f32 %v30, %v76
  %v97 = vmul.f32 %v31, %v76
  %v98 = vmul.f32 %v32, %v76
  %v99 = vmul.f32 %v33, %v76
  %v100 = vmul.f32 %v34, %v76
  %v101 = vmul.f32 %v35, %v76
  %v102 = vmul.f32 %v36, %v76
  %v103 = vmul.f32 %v37, %v76
  %v104 = vmul.f32 %v38, %v76
  %v105 = vmul.f32 %v39, %v76
  %v106 = vmul.f32 %v40, %v76
  %v107 = vmul.f32 %v41, %v76
  %v108 = vmul.f32 %v42, %v76
  %v109 = vmul.f32 %v43, %v76
  %v110 = vmul.f32 %v44, %v76
  %v111 = vmul.f32 %v45, %v76
  %v112 = vmul.f32 %v46, %v76
  %v113 = vmul.f32 %v47, %v76
  %v114 = vmul.f32 %v48, %v76
  %v115 = vmul.f32 %v49, %v76
  %v116 = vmul.f32 %v50, %v76
  %v117 = vmul.f32 %v51, %v76
  %v118 = vmul.f32 %v52, %v76
  %v119 = vmul.f32 %v53, %v76
  %v120 = vmul.f32 %v54, %v76
  %v121 = vmul.f32 %v55, %v76
  %v122 = vmul.f32 %v56, %v76
  %v123 = vmul.f32 %v57, %v76
  %v124 = vmul.f32 %v58, %v76
  %v125 = vmul.f32 %v59, %v76
  %v126 = vmul.f32 %v60, %v76
  %v127 = vmul.f32 %v61, %v76
  %v128 = vmul.f32 %v62, %v76
  %v129 = vmul.f32 %v63, %v76
  %v130 = vmul.f32 %v64, %v76
  %v131 = vmul.f32 %v65, %v76
  %v132 = vmul.f32 %v66, %v76
  %v133 = vmul.f32 %v67, %v76
  %v134 = vmul.f32 %v68, %v76
  %v135 = vmul.f32 %v69, %v76
  %v136 = vmul.f32 %v70, %v76
  %v137 = vmul.f32 %v71, %v76
  %v138 = vmul.f32 %v72, %v76
  %v139 = vmul.f32 %v73, %v76
  %v140 = vmul.f32 %v74, %v76
  %v141 = vld [vmem:[%s1 + $0x1] sm:$0x1]
  %v142 = vperm.slane %v141, 0
  %v143 = vadd.f32 %v77, %v142
  %v144 = vadd.f32 %v78, %v142
  %v145 = vadd.f32 %v79, %v142
  %v146 = vadd.f32 %v80, %v142
  %v147 = vadd.f32 %v81, %v142
  %v148 = vadd.f32 %v82, %v142
  %v149 = vadd.f32 %v83, %v142
  %v150 = vadd.f32 %v84, %v142
  %v151 = vadd.f32 %v85, %v142
  %v152 = vadd.f32 %v86, %v142
  %v153 = vadd.f32 %v87, %v142
  %v154 = vadd.f32 %v88, %v142
  %v155 = vadd.f32 %v89, %v142
  %v156 = vadd.f32 %v90, %v142
  %v157 = vadd.f32 %v91, %v142
  %v158 = vadd.f32 %v92, %v142
  %v159 = vadd.f32 %v93, %v142
  %v160 = vadd.f32 %v94, %v142
  %v161 = vadd.f32 %v95, %v142
  %v162 = vadd.f32 %v96, %v142
  %v163 = vadd.f32 %v97, %v142
  %v164 = vadd.f32 %v98, %v142
  %v165 = vadd.f32 %v99, %v142
  %v166 = vadd.f32 %v100, %v142
  %v167 = vadd.f32 %v101, %v142
  %v168 = vadd.f32 %v102, %v142
  %v169 = vadd.f32 %v103, %v142
  %v170 = vadd.f32 %v104, %v142
  %v171 = vadd.f32 %v105, %v142
  %v172 = vadd.f32 %v106, %v142
  %v173 = vadd.f32 %v107, %v142
  %v174 = vadd.f32 %v108, %v142
  %v175 = vadd.f32 %v109, %v142
  %v176 = vadd.f32 %v110, %v142
  %v177 = vadd.f32 %v111, %v142
  %v178 = vadd.f32 %v112, %v142
  %v179 = vadd.f32 %v113, %v142
  %v180 = vadd.f32 %v114, %v142
  %v181 = vadd.f32 %v115, %v142
  %v182 = vadd.f32 %v116, %v142
  %v183 = vadd.f32 %v117, %v142
  %v184 = vadd.f32 %v118, %v142
  %v185 = vadd.f32 %v119, %v142
  %v186 = vadd.f32 %v120, %v142
  %v187 = vadd.f32 %v121, %v142
  %v188 = vadd.f32 %v122, %v142
  %v189 = vadd.f32 %v123, %v142
  %v190 = vadd.f32 %v124, %v142
  %v191 = vadd.f32 %v125, %v142
  %v192 = vadd.f32 %v126, %v142
  %v193 = vadd.f32 %v127, %v142
  %v194 = vadd.f32 %v128, %v142
  %v195 = vadd.f32 %v129, %v142
  %v196 = vadd.f32 %v130, %v142
  %v197 = vadd.f32 %v131, %v142
  %v198 = vadd.f32 %v132, %v142
  %v199 = vadd.f32 %v133, %v142
  %v200 = vadd.f32 %v134, %v142
  %v201 = vadd.f32 %v135, %v142
  %v202 = vadd.f32 %v136, %v142
  %v203 = vadd.f32 %v137, %v142
  %v204 = vadd.f32 %v138, %v142
  %v205 = vadd.f32 %v139, %v142
  %v206 = vadd.f32 %v140, %v142
  %vm207 = vcmp.ge.f32.partialorder %v143, 0.0
  %vm208 = vcmp.ge.f32.partialorder %v144, 0.0
  %vm209 = vcmp.ge.f32.partialorder %v145, 0.0
  %vm210 = vcmp.ge.f32.partialorder %v146, 0.0
  %vm211 = vcmp.ge.f32.partialorder %v147, 0.0
  %vm212 = vcmp.ge.f32.partialorder %v148, 0.0
  %vm213 = vcmp.ge.f32.partialorder %v149, 0.0
  %vm214 = vcmp.ge.f32.partialorder %v150, 0.0
  %vm215 = vcmp.ge.f32.partialorder %v151, 0.0
  %vm216 = vcmp.ge.f32.partialorder %v152, 0.0
  %vm217 = vcmp.ge.f32.partialorder %v153, 0.0
  %vm218 = vcmp.ge.f32.partialorder %v154, 0.0
  %vm219 = vcmp.ge.f32.partialorder %v155, 0.0
  %vm220 = vcmp.ge.f32.partialorder %v156, 0.0
  %vm221 = vcmp.ge.f32.partialorder %v157, 0.0
  %vm222 = vcmp.ge.f32.partialorder %v158, 0.0
  %vm223 = vcmp.ge.f32.partialorder %v159, 0.0
  %vm224 = vcmp.ge.f32.partialorder %v160, 0.0
  %vm225 = vcmp.ge.f32.partialorder %v161, 0.0
  %vm226 = vcmp.ge.f32.partialorder %v162, 0.0
  %vm227 = vcmp.ge.f32.partialorder %v163, 0.0
  %vm228 = vcmp.ge.f32.partialorder %v164, 0.0
  %vm229 = vcmp.ge.f32.partialorder %v165, 0.0
  %vm230 = vcmp.ge.f32.partialorder %v166, 0.0
  %vm231 = vcmp.ge.f32.partialorder %v167, 0.0
  %vm232 = vcmp.ge.f32.partialorder %v168, 0.0
  %vm233 = vcmp.ge.f32.partialorder %v169, 0.0
  %vm234 = vcmp.ge.f32.partialorder %v170, 0.0
  %vm235 = vcmp.ge.f32.partialorder %v171, 0.0
  %vm236 = vcmp.ge.f32.partialorder %v172, 0.0
  %vm237 = vcmp.ge.f32.partialorder %v173, 0.0
  %vm238 = vcmp.ge.f32.partialorder %v174, 0.0
  %vm239 = vcmp.ge.f32.partialorder %v175, 0.0
  %vm240 = vcmp.ge.f32.partialorder %v176, 0.0
  %vm241 = vcmp.ge.f32.partialorder %v177, 0.0
  %vm242 = vcmp.ge.f32.partialorder %v178, 0.0
  %vm243 = vcmp.ge.f32.partialorder %v179, 0.0
  %vm244 = vcmp.ge.f32.partialorder %v180, 0.0
  %vm245 = vcmp.ge.f32.partialorder %v181, 0.0
  %vm246 = vcmp.ge.f32.partialorder %v182, 0.0
  %vm247 = vcmp.ge.f32.partialorder %v183, 0.0
  %vm248 = vcmp.ge.f32.partialorder %v184, 0.0
  %vm249 = vcmp.ge.f32.partialorder %v185, 0.0
  %vm250 = vcmp.ge.f32.partialorder %v186, 0.0
  %vm251 = vcmp.ge.f32.partialorder %v187, 0.0
  %vm252 = vcmp.ge.f32.partialorder %v188, 0.0
  %vm253 = vcmp.ge.f32.partialorder %v189, 0.0
  %vm254 = vcmp.ge.f32.partialorder %v190, 0.0
  %vm255 = vcmp.ge.f32.partialorder %v191, 0.0
  %vm256 = vcmp.ge.f32.partialorder %v192, 0.0
  %vm257 = vcmp.ge.f32.partialorder %v193, 0.0
  %vm258 = vcmp.ge.f32.partialorder %v194, 0.0
  %vm259 = vcmp.ge.f32.partialorder %v195, 0.0
  %vm260 = vcmp.ge.f32.partialorder %v196, 0.0
  %vm261 = vcmp.ge.f32.partialorder %v197, 0.0
  %vm262 = vcmp.ge.f32.partialorder %v198, 0.0
  %vm263 = vcmp.ge.f32.partialorder %v199, 0.0
  %vm264 = vcmp.ge.f32.partialorder %v200, 0.0
  %vm265 = vcmp.ge.f32.partialorder %v201, 0.0
  %vm266 = vcmp.ge.f32.partialorder %v202, 0.0
  %vm267 = vcmp.ge.f32.partialorder %v203, 0.0
  %vm268 = vcmp.ge.f32.partialorder %v204, 0.0
  %vm269 = vcmp.ge.f32.partialorder %v205, 0.0
  %vm270 = vcmp.ge.f32.partialorder %v206, 0.0
  %v271 = vmul.f32 %v143, 0.01
  %v272 = vmul.f32 %v144, 0.01
  %v273 = vmul.f32 %v145, 0.01
  %v274 = vmul.f32 %v146, 0.01
  %v275 = vmul.f32 %v147, 0.01
  %v276 = vmul.f32 %v148, 0.01
  %v277 = vmul.f32 %v149, 0.01
  %v278 = vmul.f32 %v150, 0.01
  %v279 = vmul.f32 %v151, 0.01
  %v280 = vmul.f32 %v152, 0.01
  %v281 = vmul.f32 %v153, 0.01
  %v282 = vmul.f32 %v154, 0.01
  %v283 = vmul.f32 %v155, 0.01
  %v284 = vmul.f32 %v156, 0.01
  %v285 = vmul.f32 %v157, 0.01
  %v286 = vmul.f32 %v158, 0.01
  %v287 = vmul.f32 %v159, 0.01
  %v288 = vmul.f32 %v160, 0.01
  %v289 = vmul.f32 %v161, 0.01
  %v290 = vmul.f32 %v162, 0.01
  %v291 = vmul.f32 %v163, 0.01
  %v292 = vmul.f32 %v164, 0.01
  %v293 = vmul.f32 %v165, 0.01
  %v294 = vmul.f32 %v166, 0.01
  %v295 = vmul.f32 %v167, 0.01
  %v296 = vmul.f32 %v168, 0.01
  %v297 = vmul.f32 %v169, 0.01
  %v298 = vmul.f32 %v170, 0.01
  %v299 = vmul.f32 %v171, 0.01
  %v300 = vmul.f32 %v172, 0.01
  %v301 = vmul.f32 %v173, 0.01
  %v302 = vmul.f32 %v174, 0.01
  %v303 = vmul.f32 %v175, 0.01
  %v304 = vmul.f32 %v176, 0.01
  %v305 = vmul.f32 %v177, 0.01
  %v306 = vmul.f32 %v178, 0.01
  %v307 = vmul.f32 %v179, 0.01
  %v308 = vmul.f32 %v180, 0.01
  %v309 = vmul.f32 %v181, 0.01
  %v310 = vmul.f32 %v182, 0.01
  %v311 = vmul.f32 %v183, 0.01
  %v312 = vmul.f32 %v184, 0.01
  %v313 = vmul.f32 %v185, 0.01
  %v314 = vmul.f32 %v186, 0.01
  %v315 = vmul.f32 %v187, 0.01
  %v316 = vmul.f32 %v188, 0.01
  %v317 = vmul.f32 %v189, 0.01
  %v318 = vmul.f32 %v190, 0.01
  %v319 = vmul.f32 %v191, 0.01
  %v320 = vmul.f32 %v192, 0.01
  %v321 = vmul.f32 %v193, 0.01
  %v322 = vmul.f32 %v194, 0.01
  %v323 = vmul.f32 %v195, 0.01
  %v324 = vmul.f32 %v196, 0.01
  %v325 = vmul.f32 %v197, 0.01
  %v326 = vmul.f32 %v198, 0.01
  %v327 = vmul.f32 %v199, 0.01
  %v328 = vmul.f32 %v200, 0.01
  %v329 = vmul.f32 %v201, 0.01
  %v330 = vmul.f32 %v202, 0.01
  %v331 = vmul.f32 %v203, 0.01
  %v332 = vmul.f32 %v204, 0.01
  %v333 = vmul.f32 %v205, 0.01
  %v334 = vmul.f32 %v206, 0.01
  %v335 = vsel %vm207, %v143, %v271
  %v336 = vsel %vm208, %v144, %v272
  %v337 = vsel %vm209, %v145, %v273
  %v338 = vsel %vm210, %v146, %v274
  %v339 = vsel %vm211, %v147, %v275
  %v340 = vsel %vm212, %v148, %v276
  %v341 = vsel %vm213, %v149, %v277
  %v342 = vsel %vm214, %v150, %v278
  %v343 = vsel %vm215, %v151, %v279
  %v344 = vsel %vm216, %v152, %v280
  %v345 = vsel %vm217, %v153, %v281
  %v346 = vsel %vm218, %v154, %v282
  %v347 = vsel %vm219, %v155, %v283
  %v348 = vsel %vm220, %v156, %v284
  %v349 = vsel %vm221, %v157, %v285
  %v350 = vsel %vm222, %v158, %v286
  %v351 = vsel %vm223, %v159, %v287
  %v352 = vsel %vm224, %v160, %v288
  %v353 = vsel %vm225, %v161, %v289
  %v354 = vsel %vm226, %v162, %v290
  %v355 = vsel %vm227, %v163, %v291
  %v356 = vsel %vm228, %v164, %v292
  %v357 = vsel %vm229, %v165, %v293
  %v358 = vsel %vm230, %v166, %v294
  %v359 = vsel %vm231, %v167, %v295
  %v360 = vsel %vm232, %v168, %v296
  %v361 = vsel %vm233, %v169, %v297
  %v362 = vsel %vm234, %v170, %v298
  %v363 = vsel %vm235, %v171, %v299
  %v364 = vsel %vm236, %v172, %v300
  %v365 = vsel %vm237, %v173, %v301
  %v366 = vsel %vm238, %v174, %v302
  %v367 = vsel %vm239, %v175, %v303
  %v368 = vsel %vm240, %v176, %v304
  %v369 = vsel %vm241, %v177, %v305
  %v370 = vsel %vm242, %v178, %v306
  %v371 = vsel %vm243, %v179, %v307
  %v372 = vsel %vm244, %v180, %v308
  %v373 = vsel %vm245, %v181, %v309
  %v374 = vsel %vm246, %v182, %v310
  %v375 = vsel %vm247, %v183, %v311
  %v376 = vsel %vm248, %v184, %v312
  %v377 = vsel %vm249, %v185, %v313
  %v378 = vsel %vm250, %v186, %v314
  %v379 = vsel %vm251, %v187, %v315
  %v380 = vsel %vm252, %v188, %v316
  %v381 = vsel %vm253, %v189, %v317
  %v382 = vsel %vm254, %v190, %v318
  %v383 = vsel %vm255, %v191, %v319
  %v384 = vsel %vm256, %v192, %v320
  %v385 = vsel %vm257, %v193, %v321
  %v386 = vsel %vm258, %v194, %v322
  %v387 = vsel %vm259, %v195, %v323
  %v388 = vsel %vm260, %v196, %v324
  %v389 = vsel %vm261, %v197, %v325
  %v390 = vsel %vm262, %v198, %v326
  %v391 = vsel %vm263, %v199, %v327
  %v392 = vsel %vm264, %v200, %v328
  %v393 = vsel %vm265, %v201, %v329
  %v394 = vsel %vm266, %v202, %v330
  %v395 = vsel %vm267, %v203, %v331
  %v396 = vsel %vm268, %v204, %v332
  %v397 = vsel %vm269, %v205, %v333
  %v398 = vsel %vm270, %v206, %v334
  %vm399 = vcmask 31744
  %400 = vst.msk [vmem:[%s2] sm:$0xff] %vm399, %v335
  %401 = vst.msk [vmem:[%s2 + $0x8] sm:$0xff] %vm399, %v336
  %402 = vst.msk [vmem:[%s2 + $0x10] sm:$0xff] %vm399, %v337
  %403 = vst.msk [vmem:[%s2 + $0x18] sm:$0xff] %vm399, %v338
  %404 = vst.msk [vmem:[%s2 + $0x20] sm:$0xff] %vm399, %v339
  %405 = vst.msk [vmem:[%s2 + $0x28] sm:$0xff] %vm399, %v340
  %406 = vst.msk [vmem:[%s2 + $0x30] sm:$0xff] %vm399, %v341
  %407 = vst.msk [vmem:[%s2 + $0x38] sm:$0xff] %vm399, %v342
  %408 = vst.msk [vmem:[%s2 + $0x40] sm:$0xff] %vm399, %v343
  %409 = vst.msk [vmem:[%s2 + $0x48] sm:$0xff] %vm399, %v344
  %410 = vst.msk [vmem:[%s2 + $0x50] sm:$0xff] %vm399, %v345
  %411 = vst.msk [vmem:[%s2 + $0x58] sm:$0xff] %vm399, %v346
  %412 = vst.msk [vmem:[%s2 + $0x60] sm:$0xff] %vm399, %v347
  %413 = vst.msk [vmem:[%s2 + $0x68] sm:$0xff] %vm399, %v348
  %414 = vst.msk [vmem:[%s2 + $0x70] sm:$0xff] %vm399, %v349
  %415 = vst.msk [vmem:[%s2 + $0x78] sm:$0xff] %vm399, %v350
  %416 = vst.msk [vmem:[%s2 + $0x80] sm:$0xff] %vm399, %v351
  %417 = vst.msk [vmem:[%s2 + $0x88] sm:$0xff] %vm399, %v352
  %418 = vst.msk [vmem:[%s2 + $0x90] sm:$0xff] %vm399, %v353
  %419 = vst.msk [vmem:[%s2 + $0x98] sm:$0xff] %vm399, %v354
  %420 = vst.msk [vmem:[%s2 + $0xa0] sm:$0xff] %vm399, %v355
  %421 = vst.msk [vmem:[%s2 + $0xa8] sm:$0xff] %vm399, %v356
  %422 = vst.msk [vmem:[%s2 + $0xb0] sm:$0xff] %vm399, %v357
  %423 = vst.msk [vmem:[%s2 + $0xb8] sm:$0xff] %vm399, %v358
  %424 = vst.msk [vmem:[%s2 + $0xc0] sm:$0xff] %vm399, %v359
  %425 = vst.msk [vmem:[%s2 + $0xc8] sm:$0xff] %vm399, %v360
  %426 = vst.msk [vmem:[%s2 + $0xd0] sm:$0xff] %vm399, %v361
  %427 = vst.msk [vmem:[%s2 + $0xd8] sm:$0xff] %vm399, %v362
  %428 = vst.msk [vmem:[%s2 + $0xe0] sm:$0xff] %vm399, %v363
  %429 = vst.msk [vmem:[%s2 + $0xe8] sm:$0xff] %vm399, %v364
  %430 = vst.msk [vmem:[%s2 + $0xf0] sm:$0xff] %vm399, %v365
  %431 = vst.msk [vmem:[%s2 + $0xf8] sm:$0xff] %vm399, %v366
  %432 = vst.msk [vmem:[%s2 + $0x100] sm:$0xff] %vm399, %v367
  %433 = vst.msk [vmem:[%s2 + $0x108] sm:$0xff] %vm399, %v368
  %434 = vst.msk [vmem:[%s2 + $0x110] sm:$0xff] %vm399, %v369
  %435 = vst.msk [vmem:[%s2 + $0x118] sm:$0xff] %vm399, %v370
  %436 = vst.msk [vmem:[%s2 + $0x120] sm:$0xff] %vm399, %v371
  %437 = vst.msk [vmem:[%s2 + $0x128] sm:$0xff] %vm399, %v372
  %438 = vst.msk [vmem:[%s2 + $0x130] sm:$0xff] %vm399, %v373
  %439 = vst.msk [vmem:[%s2 + $0x138] sm:$0xff] %vm399, %v374
  %440 = vst.msk [vmem:[%s2 + $0x140] sm:$0xff] %vm399, %v375
  %441 = vst.msk [vmem:[%s2 + $0x148] sm:$0xff] %vm399, %v376
  %442 = vst.msk [vmem:[%s2 + $0x150] sm:$0xff] %vm399, %v377
  %443 = vst.msk [vmem:[%s2 + $0x158] sm:$0xff] %vm399, %v378
  %444 = vst.msk [vmem:[%s2 + $0x160] sm:$0xff] %vm399, %v379
  %445 = vst.msk [vmem:[%s2 + $0x168] sm:$0xff] %vm399, %v380
  %446 = vst.msk [vmem:[%s2 + $0x170] sm:$0xff] %vm399, %v381
  %447 = vst.msk [vmem:[%s2 + $0x178] sm:$0xff] %vm399, %v382
  %448 = vst.msk [vmem:[%s2 + $0x180] sm:$0xff] %vm399, %v383
  %449 = vst.msk [vmem:[%s2 + $0x188] sm:$0xff] %vm399, %v384
  %450 = vst.msk [vmem:[%s2 + $0x190] sm:$0xff] %vm399, %v385
  %451 = vst.msk [vmem:[%s2 + $0x198] sm:$0xff] %vm399, %v386
  %452 = vst.msk [vmem:[%s2 + $0x1a0] sm:$0xff] %vm399, %v387
  %453 = vst.msk [vmem:[%s2 + $0x1a8] sm:$0xff] %vm399, %v388
  %454 = vst.msk [vmem:[%s2 + $0x1b0] sm:$0xff] %vm399, %v389
  %455 = vst.msk [vmem:[%s2 + $0x1b8] sm:$0xff] %vm399, %v390
  %456 = vst.msk [vmem:[%s2 + $0x1c0] sm:$0xff] %vm399, %v391
  %457 = vst.msk [vmem:[%s2 + $0x1c8] sm:$0xff] %vm399, %v392
  %458 = vst.msk [vmem:[%s2 + $0x1d0] sm:$0xff] %vm399, %v393
  %459 = vst.msk [vmem:[%s2 + $0x1d8] sm:$0xff] %vm399, %v394
  %460 = vst.msk [vmem:[%s2 + $0x1e0] sm:$0xff] %vm399, %v395
  %461 = vst.msk [vmem:[%s2 + $0x1e8] sm:$0xff] %vm399, %v396
  %462 = vst.msk [vmem:[%s2 + $0x1f0] sm:$0xff] %vm399, %v397
  %463 = vst.msk [vmem:[%s2 + $0x1f8] sm:$0xff] %vm399, %v398
  // Predicated region
  $region10: #{convolution_set.13} parent=0 // pred_check
    _
  $region11: #{convolution_set.13} parent=0 // pred_check_branch
    %465 = sbr.rel (0) target = $region13
  $region12: #{convolution_set.13} parent=0 // pred_region
    _
  $region13: #{convolution_set.13} parent=0 // pred_fallthru
    _
  // Predicated region
  $region14: #{convolution_set.13} parent=0 // pred_check
    _
  $region15: #{convolution_set.13} parent=0 // pred_check_branch
    %467 = sbr.rel (0) target = $region17
  $region16: #{convolution_set.13} parent=0 // pred_region
    _
  $region17: #{convolution_set.13} parent=0 // pred_fallthru
    _

</llo_original>
